<compile_context>
chip_gen: v6e
topology: v6e:2x2x1
jax: 0.10.0
libtpu: 0.0.40
codegen_flags: <defaults>
</compile_context>

<pallas_src>
import jax
import jax.numpy as jnp
import numpy as np
from jax.experimental import pallas as pl
from jax.experimental.pallas import tpu as pltpu

BN_EPS = 1e-5
HIGHEST = jax.lax.Precision.HIGHEST


# ---------------------------------------------------------------------------
# Small shared math helpers
# ---------------------------------------------------------------------------
def _bn_train(y, g, beta):
    """BatchNorm1d, training mode: per-batch mean, biased variance."""
    mean = jnp.mean(y, axis=0, keepdims=True)
    var = jnp.mean((y - mean) ** 2, axis=0, keepdims=True)
    return (y - mean) * jax.lax.rsqrt(var + BN_EPS) * g + beta


def _rowdot(a, b):
    """torch.matmul(a.unsqueeze(1), b.unsqueeze(2)).squeeze(1) -> (B, 1)."""
    return jnp.sum(a * b, axis=1, keepdims=True)


# ---------------------------------------------------------------------------
# Pallas kernel
# ---------------------------------------------------------------------------
def gfn_kernel(xs_ref, watt_ref, batt_ref, w1_ref, w2_ref,
               b2_ref, g2_ref, be2_ref,
               b3a_ref, g3a_ref, be3a_ref,
               b3b_ref, g3b_ref, be3b_ref,
               out_ref, vstack_ref):
    K = xs_ref.shape[1]
    B = xs_ref.shape[0] // 3

    xs = xs_ref[...]                                       # (3B, K) f32
    x1, x2, x3 = xs[0:B], xs[B:2 * B], xs[2 * B:3 * B]

    # ---- FirstLayer attention: VPU multiply + lane reduce (no N=1 matmul) ----
    logits = jnp.sum(xs * watt_ref[...], axis=1, keepdims=True) + batt_ref[...]
    att = jax.nn.sigmoid(logits)                           # (3B, 1)
    a1, a2, a3 = att[0:B], att[B:2 * B], att[2 * B:3 * B]
    U = (a1 * x1 + a2 * x2 + a3 * x3) * (1.0 / 3.0)

    # ---- Stage-1: one stacked MXU matmul for every product of raw X ----
    # w1 = [w2a | w2b | w3ba]   (K, 3K), f32, full precision.
    p1 = jnp.dot(xs, w1_ref[...], precision=HIGHEST,
                 preferred_element_type=jnp.float32)       # (3B, 3K) f32
    A = p1[:, 0:K]              # X_i @ w2a
    Bm = p1[:, K:2 * K]         # X_i @ w2b
    C = p1[:, 2 * K:3 * K]      # X_i @ w3ba

    b2, g2, be2 = b2_ref[...], g2_ref[...], be2_ref[...]
    V12 = _bn_train(A[0:B] + Bm[B:2 * B] + b2, g2, be2)
    V13 = _bn_train(A[0:B] + Bm[2 * B:3 * B] + b2, g2, be2)
    V23 = _bn_train(A[B:2 * B] + Bm[2 * B:3 * B] + b2, g2, be2)

    S12, S13, S23 = _rowdot(x1, x2), _rowdot(x1, x3), _rowdot(x2, x3)
    a12h = (a1 + a2) / (S12 + 0.5)
    a13h = (a1 + a3) / (S13 + 0.5)
    a23h = (a2 + a3) / (S23 + 0.5)
    a12 = a12h / (a13h + a23h)
    a13 = a13h / (a12h + a23h)
    a23 = a23h / (a12h + a13h)
    Bout = a12 * V12 + a13 * V13 + a23 * V23

    # ---- Stage-2: stack [V12;V13;V23] and hit [w3aa | w3ab | w3bb] once ----
    vstack_ref[0:B, :] = V12
    vstack_ref[B:2 * B, :] = V13
    vstack_ref[2 * B:3 * B, :] = V23
    p2 = jnp.dot(vstack_ref[...], w2_ref[...], precision=HIGHEST,
                 preferred_element_type=jnp.float32)       # (3B, 3K) f32
    A2 = p2[:, 0:K]             # V_pair @ w3aa
    B2 = p2[:, K:2 * K]         # V_pair @ w3ab
    C2 = p2[:, 2 * K:3 * K]     # V_pair @ w3bb

    # ThirdLayer / fusion_module_1  (SecondLayer applied to V12, V13, V23)
    b3a, g3a, be3a = b3a_ref[...], g3a_ref[...], be3a_ref[...]
    V1213 = _bn_train(A2[0:B] + B2[B:2 * B] + b3a, g3a, be3a)
    V1223 = _bn_train(A2[0:B] + B2[2 * B:3 * B] + b3a, g3a, be3a)
    V1323 = _bn_train(A2[B:2 * B] + B2[2 * B:3 * B] + b3a, g3a, be3a)

    # ThirdLayer / fusion_module_2  (each X_i fused with the opposite pair)
    b3b, g3b, be3b = b3b_ref[...], g3b_ref[...], be3b_ref[...]
    V1_23 = _bn_train(C[0:B] + C2[2 * B:3 * B] + b3b, g3b, be3b)
    V2_13 = _bn_train(C[B:2 * B] + C2[B:2 * B] + b3b, g3b, be3b)
    V3_12 = _bn_train(C[2 * B:3 * B] + C2[0:B] + b3b, g3b, be3b)

    S1213, S1223, S1323 = _rowdot(V12, V13), _rowdot(V12, V23), _rowdot(V13, V23)
    a1213h = (a12 + a13) / (S1213 + 0.5)
    a1223h = (a12 + a23) / (S1223 + 0.5)
    a1323h = (a13 + a23) / (S1323 + 0.5)
    a1213 = a1213h / (a1223h + a1323h)
    a1223 = a1223h / (a1213h + a1323h)
    a1323 = a1323h / (a1213h + a1223h)

    S1_23, S2_13, S3_12 = _rowdot(x1, V23), _rowdot(x2, V13), _rowdot(x3, V12)
    a1_23h = (a1 + a23) / (S1_23 + 0.5)
    a2_13h = (a2 + a13) / (S2_13 + 0.5)
    a3_12h = (a3 + a12) / (S3_12 + 0.5)
    a1_23 = a1_23h / (a2_13h + a3_12h)
    a2_13 = a2_13h / (a1_23h + a3_12h)
    a3_12 = a3_12h / (a1_23h + a2_13h)

    O = (a1_23 * V1_23 + a2_13 * V2_13 + a3_12 * V3_12
         + a1213 * V1213 + a1223 * V1223 + a1323 * V1323)

    out_ref[:, 0:K] = U
    out_ref[:, K:2 * K] = Bout
    out_ref[:, 2 * K:3 * K] = O


# ---------------------------------------------------------------------------
# Wrapper
# ---------------------------------------------------------------------------
@jax.jit
def gfn_forward(x1, x2, x3, params):
    B, K = x1.shape
    # Stack the three modalities so all stage-1 products come from one matmul.
    xs = jnp.concatenate([x1, x2, x3], axis=0)                         # (3B, K)
    # Concatenate the weight blocks that multiply raw X's and (V12,V13,V23).
    w1 = jnp.concatenate([params["w2a"], params["w2b"], params["w3ba"]],
                         axis=1)                                       # (K, 3K) f32
    w2 = jnp.concatenate([params["w3aa"], params["w3ab"], params["w3bb"]],
                         axis=1)                                       # (K, 3K) f32

    args = (xs, params["w_att"], params["b_att"], w1, w2,
            params["b2"], params["g2"], params["be2"],
            params["b3a"], params["g3a"], params["be3a"],
            params["b3b"], params["g3b"], params["be3b"])

    in_specs = [pl.BlockSpec(memory_space=pltpu.MemorySpace.VMEM) for _ in args]
    return pl.pallas_call(
        gfn_kernel,
        out_shape=jax.ShapeDtypeStruct((B, 3 * K), jnp.float32),
        in_specs=in_specs,
        out_specs=pl.BlockSpec(memory_space=pltpu.MemorySpace.VMEM),
        scratch_shapes=[pltpu.VMEM((3 * B, K), jnp.float32)],
    )(*args)


# ---------------------------------------------------------------------------
# Pure-JAX reference (faithful to the PyTorch module, f32, full precision)
# ---------------------------------------------------------------------------
def gfn_reference(x1, x2, x3, p):
    def att(x):
        return jax.nn.sigmoid(
            jnp.sum(x * p["w_att"], axis=1, keepdims=True) + p["b_att"])

    def fuse(xa, xb, wa, wb, b, g, beta):
        y = (jnp.dot(xa, wa, precision=HIGHEST, preferred_element_type=jnp.float32)
             + jnp.dot(xb, wb, precision=HIGHEST, preferred_element_type=jnp.float32)
             + b)
        return _bn_train(y, g, beta)

    a1, a2, a3 = att(x1), att(x2), att(x3)
    U = (a1 * x1 + a2 * x2 + a3 * x3) * (1.0 / 3.0)

    V12 = fuse(x1, x2, p["w2a"], p["w2b"], p["b2"], p["g2"], p["be2"])
    V13 = fuse(x1, x3, p["w2a"], p["w2b"], p["b2"], p["g2"], p["be2"])
    V23 = fuse(x2, x3, p["w2a"], p["w2b"], p["b2"], p["g2"], p["be2"])
    S12, S13, S23 = _rowdot(x1, x2), _rowdot(x1, x3), _rowdot(x2, x3)
    a12h = (a1 + a2) / (S12 + 0.5)
    a13h = (a1 + a3) / (S13 + 0.5)
    a23h = (a2 + a3) / (S23 + 0.5)
    a12 = a12h / (a13h + a23h)
    a13 = a13h / (a12h + a23h)
    a23 = a23h / (a12h + a13h)
    Bout = a12 * V12 + a13 * V13 + a23 * V23

    V1213 = fuse(V12, V13, p["w3aa"], p["w3ab"], p["b3a"], p["g3a"], p["be3a"])
    V1223 = fuse(V12, V23, p["w3aa"], p["w3ab"], p["b3a"], p["g3a"], p["be3a"])
    V1323 = fuse(V13, V23, p["w3aa"], p["w3ab"], p["b3a"], p["g3a"], p["be3a"])
    S1213, S1223, S1323 = _rowdot(V12, V13), _rowdot(V12, V23), _rowdot(V13, V23)
    a1213h = (a12 + a13) / (S1213 + 0.5)
    a1223h = (a12 + a23) / (S1223 + 0.5)
    a1323h = (a13 + a23) / (S1323 + 0.5)
    a1213 = a1213h / (a1223h + a1323h)
    a1223 = a1223h / (a1213h + a1323h)
    a1323 = a1323h / (a1213h + a1223h)

    V1_23 = fuse(x1, V23, p["w3ba"], p["w3bb"], p["b3b"], p["g3b"], p["be3b"])
    V2_13 = fuse(x2, V13, p["w3ba"], p["w3bb"], p["b3b"], p["g3b"], p["be3b"])
    V3_12 = fuse(x3, V12, p["w3ba"], p["w3bb"], p["b3b"], p["g3b"], p["be3b"])
    S1_23, S2_13, S3_12 = _rowdot(x1, V23), _rowdot(x2, V13), _rowdot(x3, V12)
    a1_23h = (a1 + a23) / (S1_23 + 0.5)
    a2_13h = (a2 + a13) / (S2_13 + 0.5)
    a3_12h = (a3 + a12) / (S3_12 + 0.5)
    a1_23 = a1_23h / (a2_13h + a3_12h)
    a2_13 = a2_13h / (a1_23h + a3_12h)
    a3_12 = a3_12h / (a1_23h + a2_13h)

    O = (a1_23 * V1_23 + a2_13 * V2_13 + a3_12 * V3_12
         + a1213 * V1213 + a1223 * V1223 + a1323 * V1323)
    return jnp.concatenate([U, Bout, O], axis=1)


# ---------------------------------------------------------------------------
# Deterministic parameter init (PyTorch-style uniform for Linear, BN defaults)
# ---------------------------------------------------------------------------
def init_params(key, k):
    keys = jax.random.split(key, 11)

    def uni(kk, shape, fan_in):
        bound = 1.0 / np.sqrt(fan_in)
        return jax.random.uniform(kk, shape, jnp.float32, -bound, bound)

    p = {}
    # FirstLayer attention: Linear(k, 1) -> weight kept as a (1, k) row.
    p["w_att"] = uni(keys[0], (1, k), k)
    p["b_att"] = uni(keys[1], (1, 1), k)
    # SecondLayer fusion: Linear(2k, k) split halves (pre-transposed) + BatchNorm1d(k)
    p["w2a"] = uni(keys[2], (k, k), 2 * k)
    p["w2b"] = uni(keys[3], (k, k), 2 * k)
    p["b2"] = uni(keys[4], (1, k), 2 * k)
    p["g2"] = jnp.ones((1, k), jnp.float32)
    p["be2"] = jnp.zeros((1, k), jnp.float32)
    # ThirdLayer / fusion_module_1
    p["w3aa"] = uni(keys[5], (k, k), 2 * k)
    p["w3ab"] = uni(keys[6], (k, k), 2 * k)
    p["b3a"] = uni(keys[7], (1, k), 2 * k)
    p["g3a"] = jnp.ones((1, k), jnp.float32)
    p["be3a"] = jnp.zeros((1, k), jnp.float32)
    # ThirdLayer / fusion_module_2
    p["w3ba"] = uni(keys[8], (k, k), 2 * k)
    p["w3bb"] = uni(keys[9], (k, k), 2 * k)
    p["b3b"] = uni(keys[10], (1, k), 2 * k)
    p["g3b"] = jnp.ones((1, k), jnp.float32)
    p["be3b"] = jnp.zeros((1, k), jnp.float32)
    return p


if __name__ == "__main__":
    B, K = 8, 128  # small shapes: batch=8, feature dim k=128

    root = jax.random.PRNGKey(0)
    kx1, kx2, kx3, kp = jax.random.split(root, 4)
    # Small input scale keeps the raw-X (S + 0.5) denominators away from 0.
    x1 = 0.1 * jax.random.normal(kx1, (B, K), jnp.float32)
    x2 = 0.1 * jax.random.normal(kx2, (B, K), jnp.float32)
    x3 = 0.1 * jax.random.normal(kx3, (B, K), jnp.float32)
    params = init_params(kp, K)

    out = jax.block_until_ready(gfn_forward(x1, x2, x3, params))
    ref = jax.block_until_ready(gfn_reference(x1, x2, x3, params))

    assert out.shape == (B, 3 * K), out.shape
    assert np.all(np.isfinite(np.asarray(out)))
    # The GFN attention weights divide by (S + 0.5) terms that can sit close to
    # zero for BN-normalized activations, so parts of the `O` block are
    # intrinsically ill-conditioned; with full-f32 matmuls on both paths the
    # agreement is typically ~1e-4, but we leave headroom for the amplified rows.
    np.testing.assert_allclose(np.asarray(out), np.asarray(ref),
                               rtol=5e-2, atol=5e-2)
    print("KERNEL_OK")
</pallas_src>

<mosaic_0001>
module attributes {stable_mosaic.version = 11 : i64} {
  func.func @gfn_kernel(%arg0: memref<24x128xf32, #tpu.memory_space<vmem>>, %arg1: memref<1x128xf32, #tpu.memory_space<vmem>>, %arg2: memref<1x1xf32, #tpu.memory_space<vmem>>, %arg3: memref<128x384xf32, #tpu.memory_space<vmem>>, %arg4: memref<128x384xf32, #tpu.memory_space<vmem>>, %arg5: memref<1x128xf32, #tpu.memory_space<vmem>>, %arg6: memref<1x128xf32, #tpu.memory_space<vmem>>, %arg7: memref<1x128xf32, #tpu.memory_space<vmem>>, %arg8: memref<1x128xf32, #tpu.memory_space<vmem>>, %arg9: memref<1x128xf32, #tpu.memory_space<vmem>>, %arg10: memref<1x128xf32, #tpu.memory_space<vmem>>, %arg11: memref<1x128xf32, #tpu.memory_space<vmem>>, %arg12: memref<1x128xf32, #tpu.memory_space<vmem>>, %arg13: memref<1x128xf32, #tpu.memory_space<vmem>>, %arg14: memref<8x384xf32, #tpu.memory_space<vmem>>, %arg15: memref<24x128xf32, #tpu.memory_space<vmem>>) attributes {dimension_semantics = [], scalar_prefetch = 0 : i64, scratch_operands = 1 : i64, tpu.core_type = #tpu.core_type<tc>} {
    %c0 = arith.constant 0 : index
    %c0_0 = arith.constant 0 : index
    %0 = vector.load %arg0[%c0, %c0_0] : memref<24x128xf32, #tpu.memory_space<vmem>>, vector<24x128xf32>
    %1 = vector.extract_strided_slice %0 {offsets = [0, 0], sizes = [8, 128], strides = [1, 1]} : vector<24x128xf32> to vector<8x128xf32>
    %2 = vector.extract_strided_slice %0 {offsets = [8, 0], sizes = [8, 128], strides = [1, 1]} : vector<24x128xf32> to vector<8x128xf32>
    %3 = vector.extract_strided_slice %0 {offsets = [16, 0], sizes = [8, 128], strides = [1, 1]} : vector<24x128xf32> to vector<8x128xf32>
    %c0_1 = arith.constant 0 : index
    %c0_2 = arith.constant 0 : index
    %4 = vector.load %arg1[%c0_1, %c0_2] : memref<1x128xf32, #tpu.memory_space<vmem>>, vector<1x128xf32>
    %5 = vector.broadcast %4 : vector<1x128xf32> to vector<24x128xf32>
    %6 = arith.mulf %0, %5 : vector<24x128xf32>
    %cst = arith.constant dense<0.000000e+00> : vector<24xf32>
    %7 = vector.multi_reduction <add>, %6, %cst [1] : vector<24x128xf32> to vector<24xf32>
    %8 = vector.shape_cast %7 : vector<24xf32> to vector<24x1xf32>
    %c0_3 = arith.constant 0 : index
    %c0_4 = arith.constant 0 : index
    %9 = vector.load %arg2[%c0_3, %c0_4] : memref<1x1xf32, #tpu.memory_space<vmem>>, vector<1x1xf32>
    %10 = vector.broadcast %9 : vector<1x1xf32> to vector<24x1xf32>
    %11 = arith.addf %8, %10 : vector<24x1xf32>
    %12 = arith.negf %11 : vector<24x1xf32>
    %13 = math.exp %12 : vector<24x1xf32>
    %cst_5 = arith.constant 1.000000e+00 : f32
    %14 = vector.broadcast %cst_5 : f32 to vector<24x1xf32>
    %15 = arith.addf %14, %13 : vector<24x1xf32>
    %16 = arith.divf %14, %15 : vector<24x1xf32>
    %17 = vector.extract_strided_slice %16 {offsets = [0, 0], sizes = [8, 1], strides = [1, 1]} : vector<24x1xf32> to vector<8x1xf32>
    %18 = vector.extract_strided_slice %16 {offsets = [8, 0], sizes = [8, 1], strides = [1, 1]} : vector<24x1xf32> to vector<8x1xf32>
    %19 = vector.extract_strided_slice %16 {offsets = [16, 0], sizes = [8, 1], strides = [1, 1]} : vector<24x1xf32> to vector<8x1xf32>
    %20 = vector.broadcast %17 : vector<8x1xf32> to vector<8x128xf32>
    %21 = arith.mulf %20, %1 : vector<8x128xf32>
    %22 = vector.broadcast %18 : vector<8x1xf32> to vector<8x128xf32>
    %23 = arith.mulf %22, %2 : vector<8x128xf32>
    %24 = arith.addf %21, %23 : vector<8x128xf32>
    %25 = vector.broadcast %19 : vector<8x1xf32> to vector<8x128xf32>
    %26 = arith.mulf %25, %3 : vector<8x128xf32>
    %27 = arith.addf %24, %26 : vector<8x128xf32>
    %cst_6 = arith.constant 0.333333343 : f32
    %28 = vector.broadcast %cst_6 : f32 to vector<8x128xf32>
    %29 = arith.mulf %27, %28 : vector<8x128xf32>
    %c0_7 = arith.constant 0 : index
    %c0_8 = arith.constant 0 : index
    %30 = vector.load %arg3[%c0_7, %c0_8] : memref<128x384xf32, #tpu.memory_space<vmem>>, vector<128x384xf32>
    %cst_9 = arith.constant dense<0.000000e+00> : vector<24x384xf32>
    %31 = tpu.matmul %0, %30, %cst_9 {dimension_numbers = #tpu.dot_dimension_numbers<[1], [0], [0], [1], [0, 0, 1, 1], [], []>, precision = #tpu.contract_precision<fp32>} : vector<24x128xf32>, vector<128x384xf32>, vector<24x384xf32> -> vector<24x384xf32>
    %32 = vector.extract_strided_slice %31 {offsets = [0, 0], sizes = [24, 128], strides = [1, 1]} : vector<24x384xf32> to vector<24x128xf32>
    %33 = vector.extract_strided_slice %31 {offsets = [0, 128], sizes = [24, 128], strides = [1, 1]} : vector<24x384xf32> to vector<24x128xf32>
    %34 = vector.extract_strided_slice %31 {offsets = [0, 256], sizes = [24, 128], strides = [1, 1]} : vector<24x384xf32> to vector<24x128xf32>
    %c0_10 = arith.constant 0 : index
    %c0_11 = arith.constant 0 : index
    %35 = vector.load %arg5[%c0_10, %c0_11] : memref<1x128xf32, #tpu.memory_space<vmem>>, vector<1x128xf32>
    %c0_12 = arith.constant 0 : index
    %c0_13 = arith.constant 0 : index
    %36 = vector.load %arg6[%c0_12, %c0_13] : memref<1x128xf32, #tpu.memory_space<vmem>>, vector<1x128xf32>
    %c0_14 = arith.constant 0 : index
    %c0_15 = arith.constant 0 : index
    %37 = vector.load %arg7[%c0_14, %c0_15] : memref<1x128xf32, #tpu.memory_space<vmem>>, vector<1x128xf32>
    %38 = vector.extract_strided_slice %32 {offsets = [0, 0], sizes = [8, 128], strides = [1, 1]} : vector<24x128xf32> to vector<8x128xf32>
    %39 = vector.extract_strided_slice %33 {offsets = [8, 0], sizes = [8, 128], strides = [1, 1]} : vector<24x128xf32> to vector<8x128xf32>
    %40 = arith.addf %38, %39 : vector<8x128xf32>
    %41 = vector.broadcast %35 : vector<1x128xf32> to vector<8x128xf32>
    %42 = arith.addf %40, %41 : vector<8x128xf32>
    %cst_16 = arith.constant dense<0.000000e+00> : vector<128xf32>
    %43 = vector.multi_reduction <add>, %42, %cst_16 [0] : vector<8x128xf32> to vector<128xf32>
    %44 = vector.shape_cast %43 : vector<128xf32> to vector<1x128xf32>
    %cst_17 = arith.constant 8.000000e+00 : f32
    %45 = vector.broadcast %cst_17 : f32 to vector<1x128xf32>
    %46 = arith.divf %44, %45 : vector<1x128xf32>
    %47 = vector.broadcast %46 : vector<1x128xf32> to vector<8x128xf32>
    %48 = arith.subf %42, %47 : vector<8x128xf32>
    %49 = arith.mulf %48, %48 : vector<8x128xf32>
    %cst_18 = arith.constant dense<0.000000e+00> : vector<128xf32>
    %50 = vector.multi_reduction <add>, %49, %cst_18 [0] : vector<8x128xf32> to vector<128xf32>
    %51 = vector.shape_cast %50 : vector<128xf32> to vector<1x128xf32>
    %cst_19 = arith.constant 8.000000e+00 : f32
    %52 = vector.broadcast %cst_19 : f32 to vector<1x128xf32>
    %53 = arith.divf %51, %52 : vector<1x128xf32>
    %54 = vector.broadcast %46 : vector<1x128xf32> to vector<8x128xf32>
    %55 = arith.subf %42, %54 : vector<8x128xf32>
    %cst_20 = arith.constant 9.99999974E-6 : f32
    %56 = vector.broadcast %cst_20 : f32 to vector<1x128xf32>
    %57 = arith.addf %53, %56 : vector<1x128xf32>
    %58 = math.rsqrt %57 : vector<1x128xf32>
    %59 = vector.broadcast %58 : vector<1x128xf32> to vector<8x128xf32>
    %60 = arith.mulf %55, %59 : vector<8x128xf32>
    %61 = vector.broadcast %36 : vector<1x128xf32> to vector<8x128xf32>
    %62 = arith.mulf %60, %61 : vector<8x128xf32>
    %63 = vector.broadcast %37 : vector<1x128xf32> to vector<8x128xf32>
    %64 = arith.addf %62, %63 : vector<8x128xf32>
    %65 = vector.extract_strided_slice %32 {offsets = [0, 0], sizes = [8, 128], strides = [1, 1]} : vector<24x128xf32> to vector<8x128xf32>
    %66 = vector.extract_strided_slice %33 {offsets = [16, 0], sizes = [8, 128], strides = [1, 1]} : vector<24x128xf32> to vector<8x128xf32>
    %67 = arith.addf %65, %66 : vector<8x128xf32>
    %68 = vector.broadcast %35 : vector<1x128xf32> to vector<8x128xf32>
    %69 = arith.addf %67, %68 : vector<8x128xf32>
    %cst_21 = arith.constant dense<0.000000e+00> : vector<128xf32>
    %70 = vector.multi_reduction <add>, %69, %cst_21 [0] : vector<8x128xf32> to vector<128xf32>
    %71 = vector.shape_cast %70 : vector<128xf32> to vector<1x128xf32>
    %cst_22 = arith.constant 8.000000e+00 : f32
    %72 = vector.broadcast %cst_22 : f32 to vector<1x128xf32>
    %73 = arith.divf %71, %72 : vector<1x128xf32>
    %74 = vector.broadcast %73 : vector<1x128xf32> to vector<8x128xf32>
    %75 = arith.subf %69, %74 : vector<8x128xf32>
    %76 = arith.mulf %75, %75 : vector<8x128xf32>
    %cst_23 = arith.constant dense<0.000000e+00> : vector<128xf32>
    %77 = vector.multi_reduction <add>, %76, %cst_23 [0] : vector<8x128xf32> to vector<128xf32>
    %78 = vector.shape_cast %77 : vector<128xf32> to vector<1x128xf32>
    %cst_24 = arith.constant 8.000000e+00 : f32
    %79 = vector.broadcast %cst_24 : f32 to vector<1x128xf32>
    %80 = arith.divf %78, %79 : vector<1x128xf32>
    %81 = vector.broadcast %73 : vector<1x128xf32> to vector<8x128xf32>
    %82 = arith.subf %69, %81 : vector<8x128xf32>
    %cst_25 = arith.constant 9.99999974E-6 : f32
    %83 = vector.broadcast %cst_25 : f32 to vector<1x128xf32>
    %84 = arith.addf %80, %83 : vector<1x128xf32>
    %85 = math.rsqrt %84 : vector<1x128xf32>
    %86 = vector.broadcast %85 : vector<1x128xf32> to vector<8x128xf32>
    %87 = arith.mulf %82, %86 : vector<8x128xf32>
    %88 = vector.broadcast %36 : vector<1x128xf32> to vector<8x128xf32>
    %89 = arith.mulf %87, %88 : vector<8x128xf32>
    %90 = vector.broadcast %37 : vector<1x128xf32> to vector<8x128xf32>
    %91 = arith.addf %89, %90 : vector<8x128xf32>
    %92 = vector.extract_strided_slice %32 {offsets = [8, 0], sizes = [8, 128], strides = [1, 1]} : vector<24x128xf32> to vector<8x128xf32>
    %93 = vector.extract_strided_slice %33 {offsets = [16, 0], sizes = [8, 128], strides = [1, 1]} : vector<24x128xf32> to vector<8x128xf32>
    %94 = arith.addf %92, %93 : vector<8x128xf32>
    %95 = vector.broadcast %35 : vector<1x128xf32> to vector<8x128xf32>
    %96 = arith.addf %94, %95 : vector<8x128xf32>
    %cst_26 = arith.constant dense<0.000000e+00> : vector<128xf32>
    %97 = vector.multi_reduction <add>, %96, %cst_26 [0] : vector<8x128xf32> to vector<128xf32>
    %98 = vector.shape_cast %97 : vector<128xf32> to vector<1x128xf32>
    %cst_27 = arith.constant 8.000000e+00 : f32
    %99 = vector.broadcast %cst_27 : f32 to vector<1x128xf32>
    %100 = arith.divf %98, %99 : vector<1x128xf32>
    %101 = vector.broadcast %100 : vector<1x128xf32> to vector<8x128xf32>
    %102 = arith.subf %96, %101 : vector<8x128xf32>
    %103 = arith.mulf %102, %102 : vector<8x128xf32>
    %cst_28 = arith.constant dense<0.000000e+00> : vector<128xf32>
    %104 = vector.multi_reduction <add>, %103, %cst_28 [0] : vector<8x128xf32> to vector<128xf32>
    %105 = vector.shape_cast %104 : vector<128xf32> to vector<1x128xf32>
    %cst_29 = arith.constant 8.000000e+00 : f32
    %106 = vector.broadcast %cst_29 : f32 to vector<1x128xf32>
    %107 = arith.divf %105, %106 : vector<1x128xf32>
    %108 = vector.broadcast %100 : vector<1x128xf32> to vector<8x128xf32>
    %109 = arith.subf %96, %108 : vector<8x128xf32>
    %cst_30 = arith.constant 9.99999974E-6 : f32
    %110 = vector.broadcast %cst_30 : f32 to vector<1x128xf32>
    %111 = arith.addf %107, %110 : vector<1x128xf32>
    %112 = math.rsqrt %111 : vector<1x128xf32>
    %113 = vector.broadcast %112 : vector<1x128xf32> to vector<8x128xf32>
    %114 = arith.mulf %109, %113 : vector<8x128xf32>
    %115 = vector.broadcast %36 : vector<1x128xf32> to vector<8x128xf32>
    %116 = arith.mulf %114, %115 : vector<8x128xf32>
    %117 = vector.broadcast %37 : vector<1x128xf32> to vector<8x128xf32>
    %118 = arith.addf %116, %117 : vector<8x128xf32>
    %119 = arith.mulf %1, %2 : vector<8x128xf32>
    %cst_31 = arith.constant dense<0.000000e+00> : vector<8xf32>
    %120 = vector.multi_reduction <add>, %119, %cst_31 [1] : vector<8x128xf32> to vector<8xf32>
    %121 = vector.shape_cast %120 : vector<8xf32> to vector<8x1xf32>
    %122 = arith.mulf %1, %3 : vector<8x128xf32>
    %cst_32 = arith.constant dense<0.000000e+00> : vector<8xf32>
    %123 = vector.multi_reduction <add>, %122, %cst_32 [1] : vector<8x128xf32> to vector<8xf32>
    %124 = vector.shape_cast %123 : vector<8xf32> to vector<8x1xf32>
    %125 = arith.mulf %2, %3 : vector<8x128xf32>
    %cst_33 = arith.constant dense<0.000000e+00> : vector<8xf32>
    %126 = vector.multi_reduction <add>, %125, %cst_33 [1] : vector<8x128xf32> to vector<8xf32>
    %127 = vector.shape_cast %126 : vector<8xf32> to vector<8x1xf32>
    %128 = arith.addf %17, %18 : vector<8x1xf32>
    %cst_34 = arith.constant 5.000000e-01 : f32
    %129 = vector.broadcast %cst_34 : f32 to vector<8x1xf32>
    %130 = arith.addf %121, %129 : vector<8x1xf32>
    %131 = arith.divf %128, %130 : vector<8x1xf32>
    %132 = arith.addf %17, %19 : vector<8x1xf32>
    %cst_35 = arith.constant 5.000000e-01 : f32
    %133 = vector.broadcast %cst_35 : f32 to vector<8x1xf32>
    %134 = arith.addf %124, %133 : vector<8x1xf32>
    %135 = arith.divf %132, %134 : vector<8x1xf32>
    %136 = arith.addf %18, %19 : vector<8x1xf32>
    %cst_36 = arith.constant 5.000000e-01 : f32
    %137 = vector.broadcast %cst_36 : f32 to vector<8x1xf32>
    %138 = arith.addf %127, %137 : vector<8x1xf32>
    %139 = arith.divf %136, %138 : vector<8x1xf32>
    %140 = arith.addf %135, %139 : vector<8x1xf32>
    %141 = arith.divf %131, %140 : vector<8x1xf32>
    %142 = arith.addf %131, %139 : vector<8x1xf32>
    %143 = arith.divf %135, %142 : vector<8x1xf32>
    %144 = arith.addf %131, %135 : vector<8x1xf32>
    %145 = arith.divf %139, %144 : vector<8x1xf32>
    %146 = vector.broadcast %141 : vector<8x1xf32> to vector<8x128xf32>
    %147 = arith.mulf %146, %64 : vector<8x128xf32>
    %148 = vector.broadcast %143 : vector<8x1xf32> to vector<8x128xf32>
    %149 = arith.mulf %148, %91 : vector<8x128xf32>
    %150 = arith.addf %147, %149 : vector<8x128xf32>
    %151 = vector.broadcast %145 : vector<8x1xf32> to vector<8x128xf32>
    %152 = arith.mulf %151, %118 : vector<8x128xf32>
    %153 = arith.addf %150, %152 : vector<8x128xf32>
    %c0_37 = arith.constant 0 : index
    %c0_38 = arith.constant 0 : index
    %154 = vector.load %arg15[%c0_37, %c0_38] : memref<24x128xf32, #tpu.memory_space<vmem>>, vector<8x128xf32>
    tpu.vector_store %arg15[%c0_37, %c0_38], %64 {strides = array<i32>} : memref<24x128xf32, #tpu.memory_space<vmem>>, vector<8x128xf32>,
    %c8 = arith.constant 8 : index
    %c0_39 = arith.constant 0 : index
    %155 = vector.load %arg15[%c8, %c0_39] : memref<24x128xf32, #tpu.memory_space<vmem>>, vector<8x128xf32>
    tpu.vector_store %arg15[%c8, %c0_39], %91 {strides = array<i32>} : memref<24x128xf32, #tpu.memory_space<vmem>>, vector<8x128xf32>,
    %c16 = arith.constant 16 : index
    %c0_40 = arith.constant 0 : index
    %156 = vector.load %arg15[%c16, %c0_40] : memref<24x128xf32, #tpu.memory_space<vmem>>, vector<8x128xf32>
    tpu.vector_store %arg15[%c16, %c0_40], %118 {strides = array<i32>} : memref<24x128xf32, #tpu.memory_space<vmem>>, vector<8x128xf32>,
    %c0_41 = arith.constant 0 : index
    %c0_42 = arith.constant 0 : index
    %157 = vector.load %arg15[%c0_41, %c0_42] : memref<24x128xf32, #tpu.memory_space<vmem>>, vector<24x128xf32>
    %c0_43 = arith.constant 0 : index
    %c0_44 = arith.constant 0 : index
    %158 = vector.load %arg4[%c0_43, %c0_44] : memref<128x384xf32, #tpu.memory_space<vmem>>, vector<128x384xf32>
    %cst_45 = arith.constant dense<0.000000e+00> : vector<24x384xf32>
    %159 = tpu.matmul %157, %158, %cst_45 {dimension_numbers = #tpu.dot_dimension_numbers<[1], [0], [0], [1], [0, 0, 1, 1], [], []>, precision = #tpu.contract_precision<fp32>} : vector<24x128xf32>, vector<128x384xf32>, vector<24x384xf32> -> vector<24x384xf32>
    %160 = vector.extract_strided_slice %159 {offsets = [0, 0], sizes = [24, 128], strides = [1, 1]} : vector<24x384xf32> to vector<24x128xf32>
    %161 = vector.extract_strided_slice %159 {offsets = [0, 128], sizes = [24, 128], strides = [1, 1]} : vector<24x384xf32> to vector<24x128xf32>
    %162 = vector.extract_strided_slice %159 {offsets = [0, 256], sizes = [24, 128], strides = [1, 1]} : vector<24x384xf32> to vector<24x128xf32>
    %c0_46 = arith.constant 0 : index
    %c0_47 = arith.constant 0 : index
    %163 = vector.load %arg8[%c0_46, %c0_47] : memref<1x128xf32, #tpu.memory_space<vmem>>, vector<1x128xf32>
    %c0_48 = arith.constant 0 : index
    %c0_49 = arith.constant 0 : index
    %164 = vector.load %arg9[%c0_48, %c0_49] : memref<1x128xf32, #tpu.memory_space<vmem>>, vector<1x128xf32>
    %c0_50 = arith.constant 0 : index
    %c0_51 = arith.constant 0 : index
    %165 = vector.load %arg10[%c0_50, %c0_51] : memref<1x128xf32, #tpu.memory_space<vmem>>, vector<1x128xf32>
    %166 = vector.extract_strided_slice %160 {offsets = [0, 0], sizes = [8, 128], strides = [1, 1]} : vector<24x128xf32> to vector<8x128xf32>
    %167 = vector.extract_strided_slice %161 {offsets = [8, 0], sizes = [8, 128], strides = [1, 1]} : vector<24x128xf32> to vector<8x128xf32>
    %168 = arith.addf %166, %167 : vector<8x128xf32>
    %169 = vector.broadcast %163 : vector<1x128xf32> to vector<8x128xf32>
    %170 = arith.addf %168, %169 : vector<8x128xf32>
    %cst_52 = arith.constant dense<0.000000e+00> : vector<128xf32>
    %171 = vector.multi_reduction <add>, %170, %cst_52 [0] : vector<8x128xf32> to vector<128xf32>
    %172 = vector.shape_cast %171 : vector<128xf32> to vector<1x128xf32>
    %cst_53 = arith.constant 8.000000e+00 : f32
    %173 = vector.broadcast %cst_53 : f32 to vector<1x128xf32>
    %174 = arith.divf %172, %173 : vector<1x128xf32>
    %175 = vector.broadcast %174 : vector<1x128xf32> to vector<8x128xf32>
    %176 = arith.subf %170, %175 : vector<8x128xf32>
    %177 = arith.mulf %176, %176 : vector<8x128xf32>
    %cst_54 = arith.constant dense<0.000000e+00> : vector<128xf32>
    %178 = vector.multi_reduction <add>, %177, %cst_54 [0] : vector<8x128xf32> to vector<128xf32>
    %179 = vector.shape_cast %178 : vector<128xf32> to vector<1x128xf32>
    %cst_55 = arith.constant 8.000000e+00 : f32
    %180 = vector.broadcast %cst_55 : f32 to vector<1x128xf32>
    %181 = arith.divf %179, %180 : vector<1x128xf32>
    %182 = vector.broadcast %174 : vector<1x128xf32> to vector<8x128xf32>
    %183 = arith.subf %170, %182 : vector<8x128xf32>
    %cst_56 = arith.constant 9.99999974E-6 : f32
    %184 = vector.broadcast %cst_56 : f32 to vector<1x128xf32>
    %185 = arith.addf %181, %184 : vector<1x128xf32>
    %186 = math.rsqrt %185 : vector<1x128xf32>
    %187 = vector.broadcast %186 : vector<1x128xf32> to vector<8x128xf32>
    %188 = arith.mulf %183, %187 : vector<8x128xf32>
    %189 = vector.broadcast %164 : vector<1x128xf32> to vector<8x128xf32>
    %190 = arith.mulf %188, %189 : vector<8x128xf32>
    %191 = vector.broadcast %165 : vector<1x128xf32> to vector<8x128xf32>
    %192 = arith.addf %190, %191 : vector<8x128xf32>
    %193 = vector.extract_strided_slice %160 {offsets = [0, 0], sizes = [8, 128], strides = [1, 1]} : vector<24x128xf32> to vector<8x128xf32>
    %194 = vector.extract_strided_slice %161 {offsets = [16, 0], sizes = [8, 128], strides = [1, 1]} : vector<24x128xf32> to vector<8x128xf32>
    %195 = arith.addf %193, %194 : vector<8x128xf32>
    %196 = vector.broadcast %163 : vector<1x128xf32> to vector<8x128xf32>
    %197 = arith.addf %195, %196 : vector<8x128xf32>
    %cst_57 = arith.constant dense<0.000000e+00> : vector<128xf32>
    %198 = vector.multi_reduction <add>, %197, %cst_57 [0] : vector<8x128xf32> to vector<128xf32>
    %199 = vector.shape_cast %198 : vector<128xf32> to vector<1x128xf32>
    %cst_58 = arith.constant 8.000000e+00 : f32
    %200 = vector.broadcast %cst_58 : f32 to vector<1x128xf32>
    %201 = arith.divf %199, %200 : vector<1x128xf32>
    %202 = vector.broadcast %201 : vector<1x128xf32> to vector<8x128xf32>
    %203 = arith.subf %197, %202 : vector<8x128xf32>
    %204 = arith.mulf %203, %203 : vector<8x128xf32>
    %cst_59 = arith.constant dense<0.000000e+00> : vector<128xf32>
    %205 = vector.multi_reduction <add>, %204, %cst_59 [0] : vector<8x128xf32> to vector<128xf32>
    %206 = vector.shape_cast %205 : vector<128xf32> to vector<1x128xf32>
    %cst_60 = arith.constant 8.000000e+00 : f32
    %207 = vector.broadcast %cst_60 : f32 to vector<1x128xf32>
    %208 = arith.divf %206, %207 : vector<1x128xf32>
    %209 = vector.broadcast %201 : vector<1x128xf32> to vector<8x128xf32>
    %210 = arith.subf %197, %209 : vector<8x128xf32>
    %cst_61 = arith.constant 9.99999974E-6 : f32
    %211 = vector.broadcast %cst_61 : f32 to vector<1x128xf32>
    %212 = arith.addf %208, %211 : vector<1x128xf32>
    %213 = math.rsqrt %212 : vector<1x128xf32>
    %214 = vector.broadcast %213 : vector<1x128xf32> to vector<8x128xf32>
    %215 = arith.mulf %210, %214 : vector<8x128xf32>
    %216 = vector.broadcast %164 : vector<1x128xf32> to vector<8x128xf32>
    %217 = arith.mulf %215, %216 : vector<8x128xf32>
    %218 = vector.broadcast %165 : vector<1x128xf32> to vector<8x128xf32>
    %219 = arith.addf %217, %218 : vector<8x128xf32>
    %220 = vector.extract_strided_slice %160 {offsets = [8, 0], sizes = [8, 128], strides = [1, 1]} : vector<24x128xf32> to vector<8x128xf32>
    %221 = vector.extract_strided_slice %161 {offsets = [16, 0], sizes = [8, 128], strides = [1, 1]} : vector<24x128xf32> to vector<8x128xf32>
    %222 = arith.addf %220, %221 : vector<8x128xf32>
    %223 = vector.broadcast %163 : vector<1x128xf32> to vector<8x128xf32>
    %224 = arith.addf %222, %223 : vector<8x128xf32>
    %cst_62 = arith.constant dense<0.000000e+00> : vector<128xf32>
    %225 = vector.multi_reduction <add>, %224, %cst_62 [0] : vector<8x128xf32> to vector<128xf32>
    %226 = vector.shape_cast %225 : vector<128xf32> to vector<1x128xf32>
    %cst_63 = arith.constant 8.000000e+00 : f32
    %227 = vector.broadcast %cst_63 : f32 to vector<1x128xf32>
    %228 = arith.divf %226, %227 : vector<1x128xf32>
    %229 = vector.broadcast %228 : vector<1x128xf32> to vector<8x128xf32>
    %230 = arith.subf %224, %229 : vector<8x128xf32>
    %231 = arith.mulf %230, %230 : vector<8x128xf32>
    %cst_64 = arith.constant dense<0.000000e+00> : vector<128xf32>
    %232 = vector.multi_reduction <add>, %231, %cst_64 [0] : vector<8x128xf32> to vector<128xf32>
    %233 = vector.shape_cast %232 : vector<128xf32> to vector<1x128xf32>
    %cst_65 = arith.constant 8.000000e+00 : f32
    %234 = vector.broadcast %cst_65 : f32 to vector<1x128xf32>
    %235 = arith.divf %233, %234 : vector<1x128xf32>
    %236 = vector.broadcast %228 : vector<1x128xf32> to vector<8x128xf32>
    %237 = arith.subf %224, %236 : vector<8x128xf32>
    %cst_66 = arith.constant 9.99999974E-6 : f32
    %238 = vector.broadcast %cst_66 : f32 to vector<1x128xf32>
    %239 = arith.addf %235, %238 : vector<1x128xf32>
    %240 = math.rsqrt %239 : vector<1x128xf32>
    %241 = vector.broadcast %240 : vector<1x128xf32> to vector<8x128xf32>
    %242 = arith.mulf %237, %241 : vector<8x128xf32>
    %243 = vector.broadcast %164 : vector<1x128xf32> to vector<8x128xf32>
    %244 = arith.mulf %242, %243 : vector<8x128xf32>
    %245 = vector.broadcast %165 : vector<1x128xf32> to vector<8x128xf32>
    %246 = arith.addf %244, %245 : vector<8x128xf32>
    %c0_67 = arith.constant 0 : index
    %c0_68 = arith.constant 0 : index
    %247 = vector.load %arg11[%c0_67, %c0_68] : memref<1x128xf32, #tpu.memory_space<vmem>>, vector<1x128xf32>
    %c0_69 = arith.constant 0 : index
    %c0_70 = arith.constant 0 : index
    %248 = vector.load %arg12[%c0_69, %c0_70] : memref<1x128xf32, #tpu.memory_space<vmem>>, vector<1x128xf32>
    %c0_71 = arith.constant 0 : index
    %c0_72 = arith.constant 0 : index
    %249 = vector.load %arg13[%c0_71, %c0_72] : memref<1x128xf32, #tpu.memory_space<vmem>>, vector<1x128xf32>
    %250 = vector.extract_strided_slice %34 {offsets = [0, 0], sizes = [8, 128], strides = [1, 1]} : vector<24x128xf32> to vector<8x128xf32>
    %251 = vector.extract_strided_slice %162 {offsets = [16, 0], sizes = [8, 128], strides = [1, 1]} : vector<24x128xf32> to vector<8x128xf32>
    %252 = arith.addf %250, %251 : vector<8x128xf32>
    %253 = vector.broadcast %247 : vector<1x128xf32> to vector<8x128xf32>
    %254 = arith.addf %252, %253 : vector<8x128xf32>
    %cst_73 = arith.constant dense<0.000000e+00> : vector<128xf32>
    %255 = vector.multi_reduction <add>, %254, %cst_73 [0] : vector<8x128xf32> to vector<128xf32>
    %256 = vector.shape_cast %255 : vector<128xf32> to vector<1x128xf32>
    %cst_74 = arith.constant 8.000000e+00 : f32
    %257 = vector.broadcast %cst_74 : f32 to vector<1x128xf32>
    %258 = arith.divf %256, %257 : vector<1x128xf32>
    %259 = vector.broadcast %258 : vector<1x128xf32> to vector<8x128xf32>
    %260 = arith.subf %254, %259 : vector<8x128xf32>
    %261 = arith.mulf %260, %260 : vector<8x128xf32>
    %cst_75 = arith.constant dense<0.000000e+00> : vector<128xf32>
    %262 = vector.multi_reduction <add>, %261, %cst_75 [0] : vector<8x128xf32> to vector<128xf32>
    %263 = vector.shape_cast %262 : vector<128xf32> to vector<1x128xf32>
    %cst_76 = arith.constant 8.000000e+00 : f32
    %264 = vector.broadcast %cst_76 : f32 to vector<1x128xf32>
    %265 = arith.divf %263, %264 : vector<1x128xf32>
    %266 = vector.broadcast %258 : vector<1x128xf32> to vector<8x128xf32>
    %267 = arith.subf %254, %266 : vector<8x128xf32>
    %cst_77 = arith.constant 9.99999974E-6 : f32
    %268 = vector.broadcast %cst_77 : f32 to vector<1x128xf32>
    %269 = arith.addf %265, %268 : vector<1x128xf32>
    %270 = math.rsqrt %269 : vector<1x128xf32>
    %271 = vector.broadcast %270 : vector<1x128xf32> to vector<8x128xf32>
    %272 = arith.mulf %267, %271 : vector<8x128xf32>
    %273 = vector.broadcast %248 : vector<1x128xf32> to vector<8x128xf32>
    %274 = arith.mulf %272, %273 : vector<8x128xf32>
    %275 = vector.broadcast %249 : vector<1x128xf32> to vector<8x128xf32>
    %276 = arith.addf %274, %275 : vector<8x128xf32>
    %277 = vector.extract_strided_slice %34 {offsets = [8, 0], sizes = [8, 128], strides = [1, 1]} : vector<24x128xf32> to vector<8x128xf32>
    %278 = vector.extract_strided_slice %162 {offsets = [8, 0], sizes = [8, 128], strides = [1, 1]} : vector<24x128xf32> to vector<8x128xf32>
    %279 = arith.addf %277, %278 : vector<8x128xf32>
    %280 = vector.broadcast %247 : vector<1x128xf32> to vector<8x128xf32>
    %281 = arith.addf %279, %280 : vector<8x128xf32>
    %cst_78 = arith.constant dense<0.000000e+00> : vector<128xf32>
    %282 = vector.multi_reduction <add>, %281, %cst_78 [0] : vector<8x128xf32> to vector<128xf32>
    %283 = vector.shape_cast %282 : vector<128xf32> to vector<1x128xf32>
    %cst_79 = arith.constant 8.000000e+00 : f32
    %284 = vector.broadcast %cst_79 : f32 to vector<1x128xf32>
    %285 = arith.divf %283, %284 : vector<1x128xf32>
    %286 = vector.broadcast %285 : vector<1x128xf32> to vector<8x128xf32>
    %287 = arith.subf %281, %286 : vector<8x128xf32>
    %288 = arith.mulf %287, %287 : vector<8x128xf32>
    %cst_80 = arith.constant dense<0.000000e+00> : vector<128xf32>
    %289 = vector.multi_reduction <add>, %288, %cst_80 [0] : vector<8x128xf32> to vector<128xf32>
    %290 = vector.shape_cast %289 : vector<128xf32> to vector<1x128xf32>
    %cst_81 = arith.constant 8.000000e+00 : f32
    %291 = vector.broadcast %cst_81 : f32 to vector<1x128xf32>
    %292 = arith.divf %290, %291 : vector<1x128xf32>
    %293 = vector.broadcast %285 : vector<1x128xf32> to vector<8x128xf32>
    %294 = arith.subf %281, %293 : vector<8x128xf32>
    %cst_82 = arith.constant 9.99999974E-6 : f32
    %295 = vector.broadcast %cst_82 : f32 to vector<1x128xf32>
    %296 = arith.addf %292, %295 : vector<1x128xf32>
    %297 = math.rsqrt %296 : vector<1x128xf32>
    %298 = vector.broadcast %297 : vector<1x128xf32> to vector<8x128xf32>
    %299 = arith.mulf %294, %298 : vector<8x128xf32>
    %300 = vector.broadcast %248 : vector<1x128xf32> to vector<8x128xf32>
    %301 = arith.mulf %299, %300 : vector<8x128xf32>
    %302 = vector.broadcast %249 : vector<1x128xf32> to vector<8x128xf32>
    %303 = arith.addf %301, %302 : vector<8x128xf32>
    %304 = vector.extract_strided_slice %34 {offsets = [16, 0], sizes = [8, 128], strides = [1, 1]} : vector<24x128xf32> to vector<8x128xf32>
    %305 = vector.extract_strided_slice %162 {offsets = [0, 0], sizes = [8, 128], strides = [1, 1]} : vector<24x128xf32> to vector<8x128xf32>
    %306 = arith.addf %304, %305 : vector<8x128xf32>
    %307 = vector.broadcast %247 : vector<1x128xf32> to vector<8x128xf32>
    %308 = arith.addf %306, %307 : vector<8x128xf32>
    %cst_83 = arith.constant dense<0.000000e+00> : vector<128xf32>
    %309 = vector.multi_reduction <add>, %308, %cst_83 [0] : vector<8x128xf32> to vector<128xf32>
    %310 = vector.shape_cast %309 : vector<128xf32> to vector<1x128xf32>
    %cst_84 = arith.constant 8.000000e+00 : f32
    %311 = vector.broadcast %cst_84 : f32 to vector<1x128xf32>
    %312 = arith.divf %310, %311 : vector<1x128xf32>
    %313 = vector.broadcast %312 : vector<1x128xf32> to vector<8x128xf32>
    %314 = arith.subf %308, %313 : vector<8x128xf32>
    %315 = arith.mulf %314, %314 : vector<8x128xf32>
    %cst_85 = arith.constant dense<0.000000e+00> : vector<128xf32>
    %316 = vector.multi_reduction <add>, %315, %cst_85 [0] : vector<8x128xf32> to vector<128xf32>
    %317 = vector.shape_cast %316 : vector<128xf32> to vector<1x128xf32>
    %cst_86 = arith.constant 8.000000e+00 : f32
    %318 = vector.broadcast %cst_86 : f32 to vector<1x128xf32>
    %319 = arith.divf %317, %318 : vector<1x128xf32>
    %320 = vector.broadcast %312 : vector<1x128xf32> to vector<8x128xf32>
    %321 = arith.subf %308, %320 : vector<8x128xf32>
    %cst_87 = arith.constant 9.99999974E-6 : f32
    %322 = vector.broadcast %cst_87 : f32 to vector<1x128xf32>
    %323 = arith.addf %319, %322 : vector<1x128xf32>
    %324 = math.rsqrt %323 : vector<1x128xf32>
    %325 = vector.broadcast %324 : vector<1x128xf32> to vector<8x128xf32>
    %326 = arith.mulf %321, %325 : vector<8x128xf32>
    %327 = vector.broadcast %248 : vector<1x128xf32> to vector<8x128xf32>
    %328 = arith.mulf %326, %327 : vector<8x128xf32>
    %329 = vector.broadcast %249 : vector<1x128xf32> to vector<8x128xf32>
    %330 = arith.addf %328, %329 : vector<8x128xf32>
    %331 = arith.mulf %64, %91 : vector<8x128xf32>
    %cst_88 = arith.constant dense<0.000000e+00> : vector<8xf32>
    %332 = vector.multi_reduction <add>, %331, %cst_88 [1] : vector<8x128xf32> to vector<8xf32>
    %333 = vector.shape_cast %332 : vector<8xf32> to vector<8x1xf32>
    %334 = arith.mulf %64, %118 : vector<8x128xf32>
    %cst_89 = arith.constant dense<0.000000e+00> : vector<8xf32>
    %335 = vector.multi_reduction <add>, %334, %cst_89 [1] : vector<8x128xf32> to vector<8xf32>
    %336 = vector.shape_cast %335 : vector<8xf32> to vector<8x1xf32>
    %337 = arith.mulf %91, %118 : vector<8x128xf32>
    %cst_90 = arith.constant dense<0.000000e+00> : vector<8xf32>
    %338 = vector.multi_reduction <add>, %337, %cst_90 [1] : vector<8x128xf32> to vector<8xf32>
    %339 = vector.shape_cast %338 : vector<8xf32> to vector<8x1xf32>
    %340 = arith.addf %141, %143 : vector<8x1xf32>
    %cst_91 = arith.constant 5.000000e-01 : f32
    %341 = vector.broadcast %cst_91 : f32 to vector<8x1xf32>
    %342 = arith.addf %333, %341 : vector<8x1xf32>
    %343 = arith.divf %340, %342 : vector<8x1xf32>
    %344 = arith.addf %141, %145 : vector<8x1xf32>
    %cst_92 = arith.constant 5.000000e-01 : f32
    %345 = vector.broadcast %cst_92 : f32 to vector<8x1xf32>
    %346 = arith.addf %336, %345 : vector<8x1xf32>
    %347 = arith.divf %344, %346 : vector<8x1xf32>
    %348 = arith.addf %143, %145 : vector<8x1xf32>
    %cst_93 = arith.constant 5.000000e-01 : f32
    %349 = vector.broadcast %cst_93 : f32 to vector<8x1xf32>
    %350 = arith.addf %339, %349 : vector<8x1xf32>
    %351 = arith.divf %348, %350 : vector<8x1xf32>
    %352 = arith.addf %347, %351 : vector<8x1xf32>
    %353 = arith.divf %343, %352 : vector<8x1xf32>
    %354 = arith.addf %343, %351 : vector<8x1xf32>
    %355 = arith.divf %347, %354 : vector<8x1xf32>
    %356 = arith.addf %343, %347 : vector<8x1xf32>
    %357 = arith.divf %351, %356 : vector<8x1xf32>
    %358 = arith.mulf %1, %118 : vector<8x128xf32>
    %cst_94 = arith.constant dense<0.000000e+00> : vector<8xf32>
    %359 = vector.multi_reduction <add>, %358, %cst_94 [1] : vector<8x128xf32> to vector<8xf32>
    %360 = vector.shape_cast %359 : vector<8xf32> to vector<8x1xf32>
    %361 = arith.mulf %2, %91 : vector<8x128xf32>
    %cst_95 = arith.constant dense<0.000000e+00> : vector<8xf32>
    %362 = vector.multi_reduction <add>, %361, %cst_95 [1] : vector<8x128xf32> to vector<8xf32>
    %363 = vector.shape_cast %362 : vector<8xf32> to vector<8x1xf32>
    %364 = arith.mulf %3, %64 : vector<8x128xf32>
    %cst_96 = arith.constant dense<0.000000e+00> : vector<8xf32>
    %365 = vector.multi_reduction <add>, %364, %cst_96 [1] : vector<8x128xf32> to vector<8xf32>
    %366 = vector.shape_cast %365 : vector<8xf32> to vector<8x1xf32>
    %367 = arith.addf %17, %145 : vector<8x1xf32>
    %cst_97 = arith.constant 5.000000e-01 : f32
    %368 = vector.broadcast %cst_97 : f32 to vector<8x1xf32>
    %369 = arith.addf %360, %368 : vector<8x1xf32>
    %370 = arith.divf %367, %369 : vector<8x1xf32>
    %371 = arith.addf %18, %143 : vector<8x1xf32>
    %cst_98 = arith.constant 5.000000e-01 : f32
    %372 = vector.broadcast %cst_98 : f32 to vector<8x1xf32>
    %373 = arith.addf %363, %372 : vector<8x1xf32>
    %374 = arith.divf %371, %373 : vector<8x1xf32>
    %375 = arith.addf %19, %141 : vector<8x1xf32>
    %cst_99 = arith.constant 5.000000e-01 : f32
    %376 = vector.broadcast %cst_99 : f32 to vector<8x1xf32>
    %377 = arith.addf %366, %376 : vector<8x1xf32>
    %378 = arith.divf %375, %377 : vector<8x1xf32>
    %379 = arith.addf %374, %378 : vector<8x1xf32>
    %380 = arith.divf %370, %379 : vector<8x1xf32>
    %381 = arith.addf %370, %378 : vector<8x1xf32>
    %382 = arith.divf %374, %381 : vector<8x1xf32>
    %383 = arith.addf %370, %374 : vector<8x1xf32>
    %384 = arith.divf %378, %383 : vector<8x1xf32>
    %385 = vector.broadcast %380 : vector<8x1xf32> to vector<8x128xf32>
    %386 = arith.mulf %385, %276 : vector<8x128xf32>
    %387 = vector.broadcast %382 : vector<8x1xf32> to vector<8x128xf32>
    %388 = arith.mulf %387, %303 : vector<8x128xf32>
    %389 = arith.addf %386, %388 : vector<8x128xf32>
    %390 = vector.broadcast %384 : vector<8x1xf32> to vector<8x128xf32>
    %391 = arith.mulf %390, %330 : vector<8x128xf32>
    %392 = arith.addf %389, %391 : vector<8x128xf32>
    %393 = vector.broadcast %353 : vector<8x1xf32> to vector<8x128xf32>
    %394 = arith.mulf %393, %192 : vector<8x128xf32>
    %395 = arith.addf %392, %394 : vector<8x128xf32>
    %396 = vector.broadcast %355 : vector<8x1xf32> to vector<8x128xf32>
    %397 = arith.mulf %396, %219 : vector<8x128xf32>
    %398 = arith.addf %395, %397 : vector<8x128xf32>
    %399 = vector.broadcast %357 : vector<8x1xf32> to vector<8x128xf32>
    %400 = arith.mulf %399, %246 : vector<8x128xf32>
    %401 = arith.addf %398, %400 : vector<8x128xf32>
    %c0_100 = arith.constant 0 : index
    %c0_101 = arith.constant 0 : index
    %402 = vector.load %arg14[%c0_100, %c0_101] : memref<8x384xf32, #tpu.memory_space<vmem>>, vector<8x128xf32>
    tpu.vector_store %arg14[%c0_100, %c0_101], %29 {strides = array<i32>} : memref<8x384xf32, #tpu.memory_space<vmem>>, vector<8x128xf32>,
    %c0_102 = arith.constant 0 : index
    %c128 = arith.constant 128 : index
    %403 = vector.load %arg14[%c0_102, %c128] : memref<8x384xf32, #tpu.memory_space<vmem>>, vector<8x128xf32>
    tpu.vector_store %arg14[%c0_102, %c128], %153 {strides = array<i32>} : memref<8x384xf32, #tpu.memory_space<vmem>>, vector<8x128xf32>,
    %c0_103 = arith.constant 0 : index
    %c256 = arith.constant 256 : index
    %404 = vector.load %arg14[%c0_103, %c256] : memref<8x384xf32, #tpu.memory_space<vmem>>, vector<8x128xf32>
    tpu.vector_store %arg14[%c0_103, %c256], %401 {strides = array<i32>} : memref<8x384xf32, #tpu.memory_space<vmem>>, vector<8x128xf32>,
    return
  }
}

</mosaic_0001>

<llo_original>
// kernel: gfn_forward.1
$region0: #{gfn_forward.1}
  #allocation0 [shape = 'u32[]', space=smem, size = 0x4, offset = 0x4, fixed_abs, tag = 'smem constant byte address 0x4 - core index']
  #allocation1 [shape = 'u32[144,128]{1,0:T(1,128)}', space=vmem, size = 0x12000, scoped, tag = 'internal scratch']
  #allocation2 [shape = 'f32[24,128]{1,0:T(8,128)}', space=vmem, size = 0x3000, scoped, tag = 'scratch operand']
  #allocation3 [shape = 'f32[1,1]{1,0:T(1,128)S(1)}', space=vmem, size = 0x200, scoped, tag = 'scoped memory for gfn_forward.1']
  %s0 = inlined_call_operand.vmem [shape: f32[24,128], index: 0, kind: input, shape index: {}]
  %s1 = inlined_call_operand.vmem [shape: f32[1,128], index: 1, kind: input, shape index: {}]
  %s2 = inlined_call_operand.<no memory space> [shape: f32[1,1], index: 2, kind: input, shape index: {}]
  %s3 = inlined_call_operand.vmem [shape: f32[128,384], index: 3, kind: input, shape index: {}]
  %s4 = inlined_call_operand.vmem [shape: f32[128,384], index: 4, kind: input, shape index: {}]
  %s5 = inlined_call_operand.vmem [shape: f32[1,128], index: 5, kind: input, shape index: {}]
  %s6 = inlined_call_operand.vmem [shape: f32[1,128], index: 6, kind: input, shape index: {}]
  %s7 = inlined_call_operand.vmem [shape: f32[1,128], index: 7, kind: input, shape index: {}]
  %s8 = inlined_call_operand.vmem [shape: f32[1,128], index: 8, kind: input, shape index: {}]
  %s9 = inlined_call_operand.vmem [shape: f32[1,128], index: 9, kind: input, shape index: {}]
  %s10 = inlined_call_operand.vmem [shape: f32[1,128], index: 10, kind: input, shape index: {}]
  %s11 = inlined_call_operand.vmem [shape: f32[1,128], index: 11, kind: input, shape index: {}]
  %s12 = inlined_call_operand.vmem [shape: f32[1,128], index: 12, kind: input, shape index: {}]
  %s13 = inlined_call_operand.vmem [shape: f32[1,128], index: 13, kind: input, shape index: {}]
  %s14 = inlined_call_operand.hbm [shape: f32[8,384], index: 14, kind: output, shape index: {}]
  %s15 = sld [smem:[#allocation0]]
  $region66: #{gfn_forward.1} parent=0
    _
  %s17 = ssub.s32 1, %s15
  %s18 = scalar_select 0, %s17, %s15
  %v19 = vstv %s2
  %20 = vst [vmem:[#allocation3] sm:$0x1] %v19
  $region1: #{gfn_forward.1} parent=0
    #allocation4 [shape = 'u8[12288]{0}', space=vmem, size = 0x3000, scoped, tag = 'output window, operand 0, single buffered']
    #allocation5 [shape = 's32[1]{0}', space=sflag, size = 0x4, scoped, tag = 'scoped memory for gfn_forward.1']
    %21 = vsyncpa [#allocation5], 0
    // Predicated region
    $region2: #{gfn_forward.1} parent=1 // pred_check
      _
    $region3: #{gfn_forward.1} parent=1 // pred_check_branch
      %23 = sbr.rel (0) target = $region5
    $region4: #{gfn_forward.1} parent=1 // pred_region
      _
    $region5: #{gfn_forward.1} parent=1 // pred_fallthru
      _
    // Predicated region
    $region6: #{gfn_forward.1} parent=1 // pred_check
      _
    $region7: #{gfn_forward.1} parent=1 // pred_check_branch
      %25 = sbr.rel (0) target = $region9
    $region8: #{gfn_forward.1} parent=1 // pred_region
      _
    $region9: #{gfn_forward.1} parent=1 // pred_fallthru
      _
    // Predicated region
    $region10: #{gfn_forward.1} parent=1 // pred_check
      _
    $region11: #{gfn_forward.1} parent=1 // pred_check_branch
      %27 = sbr.rel (0) target = $region13
    $region12: #{gfn_forward.1} parent=1 // pred_region
      _
    $region13: #{gfn_forward.1} parent=1 // pred_fallthru
      _
    // Predicated region
    $region14: #{gfn_forward.1} parent=1 // pred_check
      _
    $region15: #{gfn_forward.1} parent=1 // pred_check_branch
      %29 = sbr.rel (0) target = $region17
    $region16: #{gfn_forward.1} parent=1 // pred_region
      _
    $region17: #{gfn_forward.1} parent=1 // pred_fallthru
      _
    // Predicated region
    $region18: #{gfn_forward.1} parent=1 // pred_check
      _
    $region19: #{gfn_forward.1} parent=1 // pred_check_branch
      %31 = sbr.rel (0) target = $region21
    $region20: #{gfn_forward.1} parent=1 // pred_region
      _
    $region21: #{gfn_forward.1} parent=1 // pred_fallthru
      _
    // Predicated region
    $region22: #{gfn_forward.1} parent=1 // pred_check
      _
    $region23: #{gfn_forward.1} parent=1 // pred_check_branch
      %33 = sbr.rel (0) target = $region25
    $region24: #{gfn_forward.1} parent=1 // pred_region
      _
    $region25: #{gfn_forward.1} parent=1 // pred_fallthru
      _
    // Predicated region
    $region26: #{gfn_forward.1} parent=1 // pred_check
      _
    $region27: #{gfn_forward.1} parent=1 // pred_check_branch
      %35 = sbr.rel (0) target = $region29
    $region28: #{gfn_forward.1} parent=1 // pred_region
      _
    $region29: #{gfn_forward.1} parent=1 // pred_fallthru
      _
    // Predicated region
    $region30: #{gfn_forward.1} parent=1 // pred_check
      _
    $region31: #{gfn_forward.1} parent=1 // pred_check_branch
      %37 = sbr.rel (0) target = $region33
    $region32: #{gfn_forward.1} parent=1 // pred_region
      _
    $region33: #{gfn_forward.1} parent=1 // pred_fallthru
      _
    // Predicated region
    $region34: #{gfn_forward.1} parent=1 // pred_check
      _
    $region35: #{gfn_forward.1} parent=1 // pred_check_branch
      %39 = sbr.rel (0) target = $region37
    $region36: #{gfn_forward.1} parent=1 // pred_region
      _
    $region37: #{gfn_forward.1} parent=1 // pred_fallthru
      _
    // Predicated region
    $region38: #{gfn_forward.1} parent=1 // pred_check
      _
    $region39: #{gfn_forward.1} parent=1 // pred_check_branch
      %41 = sbr.rel (0) target = $region41
    $region40: #{gfn_forward.1} parent=1 // pred_region
      _
    $region41: #{gfn_forward.1} parent=1 // pred_fallthru
      _
    // Predicated region
    $region42: #{gfn_forward.1} parent=1 // pred_check
      _
    $region43: #{gfn_forward.1} parent=1 // pred_check_branch
      %43 = sbr.rel (0) target = $region45
    $region44: #{gfn_forward.1} parent=1 // pred_region
      _
    $region45: #{gfn_forward.1} parent=1 // pred_fallthru
      _
    // Predicated region
    $region46: #{gfn_forward.1} parent=1 // pred_check
      _
    $region47: #{gfn_forward.1} parent=1 // pred_check_branch
      %45 = sbr.rel (0) target = $region49
    $region48: #{gfn_forward.1} parent=1 // pred_region
      _
    $region49: #{gfn_forward.1} parent=1 // pred_fallthru
      _
    // Predicated region
    $region50: #{gfn_forward.1} parent=1 // pred_check
      _
    $region51: #{gfn_forward.1} parent=1 // pred_check_branch
      %47 = sbr.rel (0) target = $region53
    $region52: #{gfn_forward.1} parent=1 // pred_region
      _
    $region53: #{gfn_forward.1} parent=1 // pred_fallthru
      _
    // Predicated region
    $region54: #{gfn_forward.1} parent=1 // pred_check
      _
    $region55: #{gfn_forward.1} parent=1 // pred_check_branch
      %49 = sbr.rel (0) target = $region57
    $region56: #{gfn_forward.1} parent=1 // pred_region
      _
    $region57: #{gfn_forward.1} parent=1 // pred_fallthru
      _
    %v50 = vld [vmem:[%s0] sm:$0xff]
    %v51 = vld [vmem:[%s0 + $0x8] sm:$0xff]
    %v52 = vld [vmem:[%s0 + $0x10] sm:$0xff]
    %v53 = vld [vmem:[%s1] sm:$0x1]
    %v55 = vlaneseq
    %v56 = vshrl.u32 %v55, 7
    %v57 = vsub.s32 0, %v56
    %v58 = vrot.slane %v53, %v57
    %v60 = vmul.f32 %v50, %v58
    %v61 = vmul.f32 %v51, %v58
    %v62 = vmul.f32 %v52, %v58
    %63 = vadd.xlane.f32.xlu0 %v60
    %v64 = vpop.xlane.xlu0 %63
    %65 = vadd.xlane.f32.xlu0 %v61
    %v66 = vpop.xlane.xlu0 %65
    %67 = vadd.xlane.f32.xlu0 %v62
    %v68 = vpop.xlane.xlu0 %67
    %v69 = vld [vmem:[#allocation3] sm:$0x1]
    %v71 = vlaneseq
    %v72 = vshrl.u32 %v71, 7
    %v73 = vsub.s32 0, %v72
    %v74 = vrot.slane %v69, %v73
    %v76 = vadd.f32 %v64, %v74
    %v77 = vadd.f32 %v66, %v74
    %v78 = vadd.f32 %v68, %v74
    %v79 = vxor.u32 %v76, 2147483648
    %v80 = vxor.u32 %v77, 2147483648
    %v81 = vxor.u32 %v78, 2147483648
    %v82 = vmul.f32 %v79, 1.442695
    %v83 = vpow.pop %v82
    %v84 = vmul.f32 %v80, 1.442695
    %v85 = vpow.pop %v84
    %v86 = vmul.f32 %v81, 1.442695
    %v87 = vpow.pop %v86
    %v88 = vadd.f32 %v83, 1.0
    %v89 = vadd.f32 %v85, 1.0
    %v90 = vadd.f32 %v87, 1.0
    %v91 = vrcp.pop %v88
    %v92 = vmul.f32 1.0, %v91
    %v93 = vrcp.pop %v89
    %v94 = vmul.f32 1.0, %v93
    %v95 = vrcp.pop %v90
    %v96 = vmul.f32 1.0, %v95
    %98 = vset.pattern.permute.xlu0 0
    %99 = vperm.xlu0 %98, %v92
    %v100 = vpop.permute.xlu0 %99
    %v102 = vmul.f32 %v100, %v50
    %104 = vset.pattern.permute.xlu0 0
    %105 = vperm.xlu0 %104, %v94
    %v106 = vpop.permute.xlu0 %105
    %v108 = vmul.f32 %v106, %v51
    %v109 = vadd.f32 %v102, %v108
    %111 = vset.pattern.permute.xlu0 0
    %112 = vperm.xlu0 %111, %v96
    %v113 = vpop.permute.xlu0 %112
    %v115 = vmul.f32 %v113, %v52
    %v116 = vadd.f32 %v109, %v115
    %v117 = vmul.f32 %v116, 0.33333334
    %v118 = vld [vmem:[%s3] sm:$0xff]
    %v119 = vld [vmem:[%s3 + $0x8] sm:$0xff]
    %v120 = vld [vmem:[%s3 + $0x10] sm:$0xff]
    %v121 = vld [vmem:[%s3 + $0x18] sm:$0xff]
    %v122 = vld [vmem:[%s3 + $0x20] sm:$0xff]
    %v123 = vld [vmem:[%s3 + $0x28] sm:$0xff]
    %v124 = vld [vmem:[%s3 + $0x30] sm:$0xff]
    %v125 = vld [vmem:[%s3 + $0x38] sm:$0xff]
    %v126 = vld [vmem:[%s3 + $0x40] sm:$0xff]
    %v127 = vld [vmem:[%s3 + $0x48] sm:$0xff]
    %v128 = vld [vmem:[%s3 + $0x50] sm:$0xff]
    %v129 = vld [vmem:[%s3 + $0x58] sm:$0xff]
    %v130 = vld [vmem:[%s3 + $0x60] sm:$0xff]
    %v131 = vld [vmem:[%s3 + $0x68] sm:$0xff]
    %v132 = vld [vmem:[%s3 + $0x70] sm:$0xff]
    %v133 = vld [vmem:[%s3 + $0x78] sm:$0xff]
    %v134 = vld [vmem:[%s3 + $0x80] sm:$0xff]
    %v135 = vld [vmem:[%s3 + $0x88] sm:$0xff]
    %v136 = vld [vmem:[%s3 + $0x90] sm:$0xff]
    %v137 = vld [vmem:[%s3 + $0x98] sm:$0xff]
    %v138 = vld [vmem:[%s3 + $0xa0] sm:$0xff]
    %v139 = vld [vmem:[%s3 + $0xa8] sm:$0xff]
    %v140 = vld [vmem:[%s3 + $0xb0] sm:$0xff]
    %v141 = vld [vmem:[%s3 + $0xb8] sm:$0xff]
    %v142 = vld [vmem:[%s3 + $0xc0] sm:$0xff]
    %v143 = vld [vmem:[%s3 + $0xc8] sm:$0xff]
    %v144 = vld [vmem:[%s3 + $0xd0] sm:$0xff]
    %v145 = vld [vmem:[%s3 + $0xd8] sm:$0xff]
    %v146 = vld [vmem:[%s3 + $0xe0] sm:$0xff]
    %v147 = vld [vmem:[%s3 + $0xe8] sm:$0xff]
    %v148 = vld [vmem:[%s3 + $0xf0] sm:$0xff]
    %v149 = vld [vmem:[%s3 + $0xf8] sm:$0xff]
    %v150 = vld [vmem:[%s3 + $0x100] sm:$0xff]
    %v151 = vld [vmem:[%s3 + $0x108] sm:$0xff]
    %v152 = vld [vmem:[%s3 + $0x110] sm:$0xff]
    %v153 = vld [vmem:[%s3 + $0x118] sm:$0xff]
    %v154 = vld [vmem:[%s3 + $0x120] sm:$0xff]
    %v155 = vld [vmem:[%s3 + $0x128] sm:$0xff]
    %v156 = vld [vmem:[%s3 + $0x130] sm:$0xff]
    %v157 = vld [vmem:[%s3 + $0x138] sm:$0xff]
    %v158 = vld [vmem:[%s3 + $0x140] sm:$0xff]
    %v159 = vld [vmem:[%s3 + $0x148] sm:$0xff]
    %v160 = vld [vmem:[%s3 + $0x150] sm:$0xff]
    %v161 = vld [vmem:[%s3 + $0x158] sm:$0xff]
    %v162 = vld [vmem:[%s3 + $0x160] sm:$0xff]
    %v163 = vld [vmem:[%s3 + $0x168] sm:$0xff]
    %v164 = vld [vmem:[%s3 + $0x170] sm:$0xff]
    %v165 = vld [vmem:[%s3 + $0x178] sm:$0xff]
    %v166 = vand.u32 %v164, 4294901760
    %167 = vmatprep.subr.mxu0 %v166
    %v168 = vand.u32 %v163, 4294901760
    %169 = vmatpush1.msra.mxu0 %v168
    %v170 = vand.u32 %v161, 4294901760
    %171 = vmatprep.subr.mxu0 %v170
    %v172 = vand.u32 %v160, 4294901760
    %173 = vmatpush1.msra.mxu0 %v172
    %v174 = vand.u32 %v158, 4294901760
    %175 = vmatprep.subr.mxu0 %v174
    %v176 = vand.u32 %v157, 4294901760
    %177 = vmatpush1.msra.mxu0 %v176
    %v178 = vand.u32 %v155, 4294901760
    %179 = vmatprep.subr.mxu0 %v178
    %v180 = vand.u32 %v154, 4294901760
    %181 = vmatpush1.msra.mxu0 %v180
    %v182 = vand.u32 %v152, 4294901760
    %183 = vmatprep.subr.mxu0 %v182
    %v184 = vand.u32 %v151, 4294901760
    %185 = vmatpush1.msra.mxu0 %v184
    %v186 = vand.u32 %v149, 4294901760
    %187 = vmatprep.subr.mxu0 %v186
    %v188 = vand.u32 %v148, 4294901760
    %189 = vmatpush1.msra.mxu0 %v188
    %v190 = vand.u32 %v146, 4294901760
    %191 = vmatprep.subr.mxu0 %v190
    %v192 = vand.u32 %v145, 4294901760
    %193 = vmatpush1.msra.mxu0 %v192
    %v194 = vand.u32 %v143, 4294901760
    %195 = vmatprep.subr.mxu0 %v194
    %v196 = vand.u32 %v142, 4294901760
    %197 = vmatpush1.msra.mxu0 %v196
    %v198 = vand.u32 %v140, 4294901760
    %199 = vmatprep.subr.mxu0 %v198
    %v200 = vand.u32 %v139, 4294901760
    %201 = vmatpush1.msra.mxu0 %v200
    %v202 = vand.u32 %v137, 4294901760
    %203 = vmatprep.subr.mxu0 %v202
    %v204 = vand.u32 %v136, 4294901760
    %205 = vmatpush1.msra.mxu0 %v204
    %v206 = vand.u32 %v134, 4294901760
    %207 = vmatprep.subr.mxu0 %v206
    %v208 = vand.u32 %v133, 4294901760
    %209 = vmatpush1.msra.mxu0 %v208
    %v210 = vand.u32 %v131, 4294901760
    %211 = vmatprep.subr.mxu0 %v210
    %v212 = vand.u32 %v130, 4294901760
    %213 = vmatpush1.msra.mxu0 %v212
    %v214 = vand.u32 %v128, 4294901760
    %215 = vmatprep.subr.mxu0 %v214
    %v216 = vand.u32 %v127, 4294901760
    %217 = vmatpush1.msra.mxu0 %v216
    %v218 = vand.u32 %v125, 4294901760
    %219 = vmatprep.subr.mxu0 %v218
    %v220 = vand.u32 %v124, 4294901760
    %221 = vmatpush1.msra.mxu0 %v220
    %v222 = vand.u32 %v122, 4294901760
    %223 = vmatprep.subr.mxu0 %v222
    %v224 = vand.u32 %v121, 4294901760
    %225 = vmatpush1.msra.mxu0 %v224
    %v226 = vand.u32 %v119, 4294901760
    %227 = vmatprep.subr.mxu0 %v226
    %v228 = vand.u32 %v118, 4294901760
    %229 = vmatpush1.msra.mxu0 %v228
    %230 = vmatprep.subr.mxu0 0.0
    %231 = vmatpush2.msra.mxu0 0.0
    %232 = vmatprep.subr.mxu0 0.0
    %233 = vmatpush2.msra.mxu0 0.0
    %234 = vmatprep.subr.mxu0 0.0
    %235 = vmatpush2.msra.mxu0 0.0
    %236 = vmatprep.subr.mxu0 0.0
    %237 = vmatpush2.msra.mxu0 0.0
    %238 = vmatprep.subr.mxu0 0.0
    %239 = vmatpush2.msra.mxu0 0.0
    %240 = vmatprep.subr.mxu0 0.0
    %241 = vmatpush2.msra.mxu0 0.0
    %242 = vmatprep.subr.mxu0 0.0
    %243 = vmatpush2.msra.mxu0 0.0
    %244 = vmatprep.subr.mxu0 0.0
    %245 = vmatpush2.msra.mxu0 0.0
    %246 = vmatprep.subr.mxu0 0.0
    %247 = vmatpush2.msra.mxu0 0.0
    %248 = vmatprep.subr.mxu0 0.0
    %249 = vmatpush2.msra.mxu0 0.0
    %250 = vmatprep.subr.mxu0 0.0
    %251 = vmatpush2.msra.mxu0 0.0
    %252 = vmatprep.subr.mxu0 0.0
    %253 = vmatpush2.msra.mxu0 0.0
    %254 = vmatprep.subr.mxu0 0.0
    %255 = vmatpush2.msra.mxu0 0.0
    %256 = vmatprep.subr.mxu0 0.0
    %257 = vmatpush2.msra.mxu0 0.0
    %258 = vmatprep.subr.mxu0 0.0
    %259 = vmatpush2.msra.mxu0 0.0
    %260 = vmatprep.subr.mxu0 0.0
    %261 = vmatpush2.msra.mxu0 0.0
    %262 = vmatprep.mubr.f32.mxu0 0.0
    %v263 = vand.u32 %v50, 4294901760
    %v264 = vsub.f32 %v50, %v263
    %v265 = vand.u32 %v264, 4294901760
    %v266 = vsub.f32 %v264, %v265
    %v267 = vand.u32 %v266, 4294901760
    %268 = vmatmul.mubr.f32.gmra.mxu0 %v267
    %v269 = vpop.f32.mrf.mxu0
    %v270 = vadd.f32 0.0, %v269
    %v271 = vpop.f32.mrf.mxu0
    %272 = vmatprep.mubr.f32.mxu0 0.0
    %v273 = vand.u32 %v51, 4294901760
    %v274 = vsub.f32 %v51, %v273
    %v275 = vand.u32 %v274, 4294901760
    %v276 = vsub.f32 %v274, %v275
    %v277 = vand.u32 %v276, 4294901760
    %278 = vmatmul.mubr.f32.gmra.mxu0 %v277
    %v279 = vpop.f32.mrf.mxu0
    %v280 = vadd.f32 0.0, %v279
    %v281 = vpop.f32.mrf.mxu0
    %v282 = vadd.f32 0.0, %v281
    %283 = vmatprep.mubr.f32.mxu0 0.0
    %v284 = vand.u32 %v52, 4294901760
    %v285 = vsub.f32 %v52, %v284
    %v286 = vand.u32 %v285, 4294901760
    %v287 = vsub.f32 %v285, %v286
    %v288 = vand.u32 %v287, 4294901760
    %289 = vmatmul.mubr.f32.gmra.mxu0 %v288
    %v290 = vpop.f32.mrf.mxu0
    %v291 = vpop.f32.mrf.mxu0
    %v292 = vadd.f32 0.0, %v291
    %293 = vdwg.mxu0
    %v294 = vand.u32 %v164, 4294901760
    %v295 = vsub.f32 %v164, %v294
    %v296 = vand.u32 %v295, 4294901760
    %v297 = vsub.f32 %v295, %v296
    %v298 = vand.u32 %v297, 4294901760
    %299 = vmatprep.subr.mxu0 %v298
    %v300 = vand.u32 %v163, 4294901760
    %v301 = vsub.f32 %v163, %v300
    %v302 = vand.u32 %v301, 4294901760
    %v303 = vsub.f32 %v301, %v302
    %v304 = vand.u32 %v303, 4294901760
    %305 = vmatpush1.msra.mxu0 %v304
    %v306 = vand.u32 %v161, 4294901760
    %v307 = vsub.f32 %v161, %v306
    %v308 = vand.u32 %v307, 4294901760
    %v309 = vsub.f32 %v307, %v308
    %v310 = vand.u32 %v309, 4294901760
    %311 = vmatprep.subr.mxu0 %v310
    %v312 = vand.u32 %v160, 4294901760
    %v313 = vsub.f32 %v160, %v312
    %v314 = vand.u32 %v313, 4294901760
    %v315 = vsub.f32 %v313, %v314
    %v316 = vand.u32 %v315, 4294901760
    %317 = vmatpush1.msra.mxu0 %v316
    %v318 = vand.u32 %v158, 4294901760
    %v319 = vsub.f32 %v158, %v318
    %v320 = vand.u32 %v319, 4294901760
    %v321 = vsub.f32 %v319, %v320
    %v322 = vand.u32 %v321, 4294901760
    %323 = vmatprep.subr.mxu0 %v322
    %v324 = vand.u32 %v157, 4294901760
    %v325 = vsub.f32 %v157, %v324
    %v326 = vand.u32 %v325, 4294901760
    %v327 = vsub.f32 %v325, %v326
    %v328 = vand.u32 %v327, 4294901760
    %329 = vmatpush1.msra.mxu0 %v328
    %v330 = vand.u32 %v155, 4294901760
    %v331 = vsub.f32 %v155, %v330
    %v332 = vand.u32 %v331, 4294901760
    %v333 = vsub.f32 %v331, %v332
    %v334 = vand.u32 %v333, 4294901760
    %335 = vmatprep.subr.mxu0 %v334
    %v336 = vand.u32 %v154, 4294901760
    %v337 = vsub.f32 %v154, %v336
    %v338 = vand.u32 %v337, 4294901760
    %v339 = vsub.f32 %v337, %v338
    %v340 = vand.u32 %v339, 4294901760
    %341 = vmatpush1.msra.mxu0 %v340
    %v342 = vand.u32 %v152, 4294901760
    %v343 = vsub.f32 %v152, %v342
    %v344 = vand.u32 %v343, 4294901760
    %v345 = vsub.f32 %v343, %v344
    %v346 = vand.u32 %v345, 4294901760
    %347 = vmatprep.subr.mxu0 %v346
    %v348 = vand.u32 %v151, 4294901760
    %v349 = vsub.f32 %v151, %v348
    %v350 = vand.u32 %v349, 4294901760
    %v351 = vsub.f32 %v349, %v350
    %v352 = vand.u32 %v351, 4294901760
    %353 = vmatpush1.msra.mxu0 %v352
    %v354 = vand.u32 %v149, 4294901760
    %v355 = vsub.f32 %v149, %v354
    %v356 = vand.u32 %v355, 4294901760
    %v357 = vsub.f32 %v355, %v356
    %v358 = vand.u32 %v357, 4294901760
    %359 = vmatprep.subr.mxu0 %v358
    %v360 = vand.u32 %v148, 4294901760
    %v361 = vsub.f32 %v148, %v360
    %v362 = vand.u32 %v361, 4294901760
    %v363 = vsub.f32 %v361, %v362
    %v364 = vand.u32 %v363, 4294901760
    %365 = vmatpush1.msra.mxu0 %v364
    %v366 = vand.u32 %v146, 4294901760
    %v367 = vsub.f32 %v146, %v366
    %v368 = vand.u32 %v367, 4294901760
    %v369 = vsub.f32 %v367, %v368
    %v370 = vand.u32 %v369, 4294901760
    %371 = vmatprep.subr.mxu0 %v370
    %v372 = vand.u32 %v145, 4294901760
    %v373 = vsub.f32 %v145, %v372
    %v374 = vand.u32 %v373, 4294901760
    %v375 = vsub.f32 %v373, %v374
    %v376 = vand.u32 %v375, 4294901760
    %377 = vmatpush1.msra.mxu0 %v376
    %v378 = vand.u32 %v143, 4294901760
    %v379 = vsub.f32 %v143, %v378
    %v380 = vand.u32 %v379, 4294901760
    %v381 = vsub.f32 %v379, %v380
    %v382 = vand.u32 %v381, 4294901760
    %383 = vmatprep.subr.mxu0 %v382
    %v384 = vand.u32 %v142, 4294901760
    %v385 = vsub.f32 %v142, %v384
    %v386 = vand.u32 %v385, 4294901760
    %v387 = vsub.f32 %v385, %v386
    %v388 = vand.u32 %v387, 4294901760
    %389 = vmatpush1.msra.mxu0 %v388
    %v390 = vand.u32 %v140, 4294901760
    %v391 = vsub.f32 %v140, %v390
    %v392 = vand.u32 %v391, 4294901760
    %v393 = vsub.f32 %v391, %v392
    %v394 = vand.u32 %v393, 4294901760
    %395 = vmatprep.subr.mxu0 %v394
    %v396 = vand.u32 %v139, 4294901760
    %v397 = vsub.f32 %v139, %v396
    %v398 = vand.u32 %v397, 4294901760
    %v399 = vsub.f32 %v397, %v398
    %v400 = vand.u32 %v399, 4294901760
    %401 = vmatpush1.msra.mxu0 %v400
    %v402 = vand.u32 %v137, 4294901760
    %v403 = vsub.f32 %v137, %v402
    %v404 = vand.u32 %v403, 4294901760
    %v405 = vsub.f32 %v403, %v404
    %v406 = vand.u32 %v405, 4294901760
    %407 = vmatprep.subr.mxu0 %v406
    %v408 = vand.u32 %v136, 4294901760
    %v409 = vsub.f32 %v136, %v408
    %v410 = vand.u32 %v409, 4294901760
    %v411 = vsub.f32 %v409, %v410
    %v412 = vand.u32 %v411, 4294901760
    %413 = vmatpush1.msra.mxu0 %v412
    %v414 = vand.u32 %v134, 4294901760
    %v415 = vsub.f32 %v134, %v414
    %v416 = vand.u32 %v415, 4294901760
    %v417 = vsub.f32 %v415, %v416
    %v418 = vand.u32 %v417, 4294901760
    %419 = vmatprep.subr.mxu0 %v418
    %v420 = vand.u32 %v133, 4294901760
    %v421 = vsub.f32 %v133, %v420
    %v422 = vand.u32 %v421, 4294901760
    %v423 = vsub.f32 %v421, %v422
    %v424 = vand.u32 %v423, 4294901760
    %425 = vmatpush1.msra.mxu0 %v424
    %v426 = vand.u32 %v131, 4294901760
    %v427 = vsub.f32 %v131, %v426
    %v428 = vand.u32 %v427, 4294901760
    %v429 = vsub.f32 %v427, %v428
    %v430 = vand.u32 %v429, 4294901760
    %431 = vmatprep.subr.mxu0 %v430
    %v432 = vand.u32 %v130, 4294901760
    %v433 = vsub.f32 %v130, %v432
    %v434 = vand.u32 %v433, 4294901760
    %v435 = vsub.f32 %v433, %v434
    %v436 = vand.u32 %v435, 4294901760
    %437 = vmatpush1.msra.mxu0 %v436
    %v438 = vand.u32 %v128, 4294901760
    %v439 = vsub.f32 %v128, %v438
    %v440 = vand.u32 %v439, 4294901760
    %v441 = vsub.f32 %v439, %v440
    %v442 = vand.u32 %v441, 4294901760
    %443 = vmatprep.subr.mxu0 %v442
    %v444 = vand.u32 %v127, 4294901760
    %v445 = vsub.f32 %v127, %v444
    %v446 = vand.u32 %v445, 4294901760
    %v447 = vsub.f32 %v445, %v446
    %v448 = vand.u32 %v447, 4294901760
    %449 = vmatpush1.msra.mxu0 %v448
    %v450 = vand.u32 %v125, 4294901760
    %v451 = vsub.f32 %v125, %v450
    %v452 = vand.u32 %v451, 4294901760
    %v453 = vsub.f32 %v451, %v452
    %v454 = vand.u32 %v453, 4294901760
    %455 = vmatprep.subr.mxu0 %v454
    %v456 = vand.u32 %v124, 4294901760
    %v457 = vsub.f32 %v124, %v456
    %v458 = vand.u32 %v457, 4294901760
    %v459 = vsub.f32 %v457, %v458
    %v460 = vand.u32 %v459, 4294901760
    %461 = vmatpush1.msra.mxu0 %v460
    %v462 = vand.u32 %v122, 4294901760
    %v463 = vsub.f32 %v122, %v462
    %v464 = vand.u32 %v463, 4294901760
    %v465 = vsub.f32 %v463, %v464
    %v466 = vand.u32 %v465, 4294901760
    %467 = vmatprep.subr.mxu0 %v466
    %v468 = vand.u32 %v121, 4294901760
    %v469 = vsub.f32 %v121, %v468
    %v470 = vand.u32 %v469, 4294901760
    %v471 = vsub.f32 %v469, %v470
    %v472 = vand.u32 %v471, 4294901760
    %473 = vmatpush1.msra.mxu0 %v472
    %v474 = vand.u32 %v119, 4294901760
    %v475 = vsub.f32 %v119, %v474
    %v476 = vand.u32 %v475, 4294901760
    %v477 = vsub.f32 %v475, %v476
    %v478 = vand.u32 %v477, 4294901760
    %479 = vmatprep.subr.mxu0 %v478
    %v480 = vand.u32 %v118, 4294901760
    %v481 = vsub.f32 %v118, %v480
    %v482 = vand.u32 %v481, 4294901760
    %v483 = vsub.f32 %v481, %v482
    %v484 = vand.u32 %v483, 4294901760
    %485 = vmatpush1.msra.mxu0 %v484
    %486 = vmatprep.subr.mxu0 0.0
    %487 = vmatpush2.msra.mxu0 0.0
    %488 = vmatprep.subr.mxu0 0.0
    %489 = vmatpush2.msra.mxu0 0.0
    %490 = vmatprep.subr.mxu0 0.0
    %491 = vmatpush2.msra.mxu0 0.0
    %492 = vmatprep.subr.mxu0 0.0
    %493 = vmatpush2.msra.mxu0 0.0
    %494 = vmatprep.subr.mxu0 0.0
    %495 = vmatpush2.msra.mxu0 0.0
    %496 = vmatprep.subr.mxu0 0.0
    %497 = vmatpush2.msra.mxu0 0.0
    %498 = vmatprep.subr.mxu0 0.0
    %499 = vmatpush2.msra.mxu0 0.0
    %500 = vmatprep.subr.mxu0 0.0
    %501 = vmatpush2.msra.mxu0 0.0
    %502 = vmatprep.subr.mxu0 0.0
    %503 = vmatpush2.msra.mxu0 0.0
    %504 = vmatprep.subr.mxu0 0.0
    %505 = vmatpush2.msra.mxu0 0.0
    %506 = vmatprep.subr.mxu0 0.0
    %507 = vmatpush2.msra.mxu0 0.0
    %508 = vmatprep.subr.mxu0 0.0
    %509 = vmatpush2.msra.mxu0 0.0
    %510 = vmatprep.subr.mxu0 0.0
    %511 = vmatpush2.msra.mxu0 0.0
    %512 = vmatprep.subr.mxu0 0.0
    %513 = vmatpush2.msra.mxu0 0.0
    %514 = vmatprep.subr.mxu0 0.0
    %515 = vmatpush2.msra.mxu0 0.0
    %516 = vmatprep.subr.mxu0 0.0
    %517 = vmatpush2.msra.mxu0 0.0
    %518 = vmatprep.mubr.f32.mxu0 0.0
    %v519 = vand.u32 %v50, 4294901760
    %520 = vmatmul.mubr.f32.gmra.mxu0 %v519
    %v521 = vpop.f32.mrf.mxu0
    %v522 = vadd.f32 %v270, %v521
    %v523 = vpop.f32.mrf.mxu0
    %524 = vmatprep.mubr.f32.mxu0 0.0
    %v525 = vand.u32 %v51, 4294901760
    %526 = vmatmul.mubr.f32.gmra.mxu0 %v525
    %v527 = vpop.f32.mrf.mxu0
    %v528 = vadd.f32 %v280, %v527
    %v529 = vpop.f32.mrf.mxu0
    %v530 = vadd.f32 %v282, %v529
    %531 = vmatprep.mubr.f32.mxu0 0.0
    %v532 = vand.u32 %v52, 4294901760
    %533 = vmatmul.mubr.f32.gmra.mxu0 %v532
    %v534 = vpop.f32.mrf.mxu0
    %v535 = vpop.f32.mrf.mxu0
    %v536 = vadd.f32 %v292, %v535
    %537 = vdwg.mxu0
    %v538 = vand.u32 %v164, 4294901760
    %v539 = vsub.f32 %v164, %v538
    %540 = vmatprep.subr.mxu0 %v539
    %v541 = vand.u32 %v163, 4294901760
    %v542 = vsub.f32 %v163, %v541
    %543 = vmatpush1.msra.mxu0 %v542
    %v544 = vand.u32 %v161, 4294901760
    %v545 = vsub.f32 %v161, %v544
    %546 = vmatprep.subr.mxu0 %v545
    %v547 = vand.u32 %v160, 4294901760
    %v548 = vsub.f32 %v160, %v547
    %549 = vmatpush1.msra.mxu0 %v548
    %v550 = vand.u32 %v158, 4294901760
    %v551 = vsub.f32 %v158, %v550
    %552 = vmatprep.subr.mxu0 %v551
    %v553 = vand.u32 %v157, 4294901760
    %v554 = vsub.f32 %v157, %v553
    %555 = vmatpush1.msra.mxu0 %v554
    %v556 = vand.u32 %v155, 4294901760
    %v557 = vsub.f32 %v155, %v556
    %558 = vmatprep.subr.mxu0 %v557
    %v559 = vand.u32 %v154, 4294901760
    %v560 = vsub.f32 %v154, %v559
    %561 = vmatpush1.msra.mxu0 %v560
    %v562 = vand.u32 %v152, 4294901760
    %v563 = vsub.f32 %v152, %v562
    %564 = vmatprep.subr.mxu0 %v563
    %v565 = vand.u32 %v151, 4294901760
    %v566 = vsub.f32 %v151, %v565
    %567 = vmatpush1.msra.mxu0 %v566
    %v568 = vand.u32 %v149, 4294901760
    %v569 = vsub.f32 %v149, %v568
    %570 = vmatprep.subr.mxu0 %v569
    %v571 = vand.u32 %v148, 4294901760
    %v572 = vsub.f32 %v148, %v571
    %573 = vmatpush1.msra.mxu0 %v572
    %v574 = vand.u32 %v146, 4294901760
    %v575 = vsub.f32 %v146, %v574
    %576 = vmatprep.subr.mxu0 %v575
    %v577 = vand.u32 %v145, 4294901760
    %v578 = vsub.f32 %v145, %v577
    %579 = vmatpush1.msra.mxu0 %v578
    %v580 = vand.u32 %v143, 4294901760
    %v581 = vsub.f32 %v143, %v580
    %582 = vmatprep.subr.mxu0 %v581
    %v583 = vand.u32 %v142, 4294901760
    %v584 = vsub.f32 %v142, %v583
    %585 = vmatpush1.msra.mxu0 %v584
    %v586 = vand.u32 %v140, 4294901760
    %v587 = vsub.f32 %v140, %v586
    %588 = vmatprep.subr.mxu0 %v587
    %v589 = vand.u32 %v139, 4294901760
    %v590 = vsub.f32 %v139, %v589
    %591 = vmatpush1.msra.mxu0 %v590
    %v592 = vand.u32 %v137, 4294901760
    %v593 = vsub.f32 %v137, %v592
    %594 = vmatprep.subr.mxu0 %v593
    %v595 = vand.u32 %v136, 4294901760
    %v596 = vsub.f32 %v136, %v595
    %597 = vmatpush1.msra.mxu0 %v596
    %v598 = vand.u32 %v134, 4294901760
    %v599 = vsub.f32 %v134, %v598
    %600 = vmatprep.subr.mxu0 %v599
    %v601 = vand.u32 %v133, 4294901760
    %v602 = vsub.f32 %v133, %v601
    %603 = vmatpush1.msra.mxu0 %v602
    %v604 = vand.u32 %v131, 4294901760
    %v605 = vsub.f32 %v131, %v604
    %606 = vmatprep.subr.mxu0 %v605
    %v607 = vand.u32 %v130, 4294901760
    %v608 = vsub.f32 %v130, %v607
    %609 = vmatpush1.msra.mxu0 %v608
    %v610 = vand.u32 %v128, 4294901760
    %v611 = vsub.f32 %v128, %v610
    %612 = vmatprep.subr.mxu0 %v611
    %v613 = vand.u32 %v127, 4294901760
    %v614 = vsub.f32 %v127, %v613
    %615 = vmatpush1.msra.mxu0 %v614
    %v616 = vand.u32 %v125, 4294901760
    %v617 = vsub.f32 %v125, %v616
    %618 = vmatprep.subr.mxu0 %v617
    %v619 = vand.u32 %v124, 4294901760
    %v620 = vsub.f32 %v124, %v619
    %621 = vmatpush1.msra.mxu0 %v620
    %v622 = vand.u32 %v122, 4294901760
    %v623 = vsub.f32 %v122, %v622
    %624 = vmatprep.subr.mxu0 %v623
    %v625 = vand.u32 %v121, 4294901760
    %v626 = vsub.f32 %v121, %v625
    %627 = vmatpush1.msra.mxu0 %v626
    %v628 = vand.u32 %v119, 4294901760
    %v629 = vsub.f32 %v119, %v628
    %630 = vmatprep.subr.mxu0 %v629
    %v631 = vand.u32 %v118, 4294901760
    %v632 = vsub.f32 %v118, %v631
    %633 = vmatpush1.msra.mxu0 %v632
    %634 = vmatprep.subr.mxu0 0.0
    %635 = vmatpush2.msra.mxu0 0.0
    %636 = vmatprep.subr.mxu0 0.0
    %637 = vmatpush2.msra.mxu0 0.0
    %638 = vmatprep.subr.mxu0 0.0
    %639 = vmatpush2.msra.mxu0 0.0
    %640 = vmatprep.subr.mxu0 0.0
    %641 = vmatpush2.msra.mxu0 0.0
    %642 = vmatprep.subr.mxu0 0.0
    %643 = vmatpush2.msra.mxu0 0.0
    %644 = vmatprep.subr.mxu0 0.0
    %645 = vmatpush2.msra.mxu0 0.0
    %646 = vmatprep.subr.mxu0 0.0
    %647 = vmatpush2.msra.mxu0 0.0
    %648 = vmatprep.subr.mxu0 0.0
    %649 = vmatpush2.msra.mxu0 0.0
    %650 = vmatprep.subr.mxu0 0.0
    %651 = vmatpush2.msra.mxu0 0.0
    %652 = vmatprep.subr.mxu0 0.0
    %653 = vmatpush2.msra.mxu0 0.0
    %654 = vmatprep.subr.mxu0 0.0
    %655 = vmatpush2.msra.mxu0 0.0
    %656 = vmatprep.subr.mxu0 0.0
    %657 = vmatpush2.msra.mxu0 0.0
    %658 = vmatprep.subr.mxu0 0.0
    %659 = vmatpush2.msra.mxu0 0.0
    %660 = vmatprep.subr.mxu0 0.0
    %661 = vmatpush2.msra.mxu0 0.0
    %662 = vmatprep.subr.mxu0 0.0
    %663 = vmatpush2.msra.mxu0 0.0
    %664 = vmatprep.subr.mxu0 0.0
    %665 = vmatpush2.msra.mxu0 0.0
    %666 = vmatprep.mubr.f32.mxu0 0.0
    %v667 = vand.u32 %v50, 4294901760
    %v668 = vsub.f32 %v50, %v667
    %669 = vmatmul.mubr.f32.gmra.mxu0 %v668
    %v670 = vpop.f32.mrf.mxu0
    %v671 = vadd.f32 %v522, %v670
    %v672 = vpop.f32.mrf.mxu0
    %673 = vmatprep.mubr.f32.mxu0 0.0
    %v674 = vand.u32 %v51, 4294901760
    %v675 = vsub.f32 %v51, %v674
    %676 = vmatmul.mubr.f32.gmra.mxu0 %v675
    %v677 = vpop.f32.mrf.mxu0
    %v678 = vadd.f32 %v528, %v677
    %v679 = vpop.f32.mrf.mxu0
    %v680 = vadd.f32 %v530, %v679
    %681 = vmatprep.mubr.f32.mxu0 0.0
    %v682 = vand.u32 %v52, 4294901760
    %v683 = vsub.f32 %v52, %v682
    %684 = vmatmul.mubr.f32.gmra.mxu0 %v683
    %v685 = vpop.f32.mrf.mxu0
    %v686 = vpop.f32.mrf.mxu0
    %v687 = vadd.f32 %v536, %v686
    %688 = vdwg.mxu0
    %v689 = vand.u32 %v164, 4294901760
    %690 = vmatprep.subr.mxu0 %v689
    %v691 = vand.u32 %v163, 4294901760
    %692 = vmatpush1.msra.mxu0 %v691
    %v693 = vand.u32 %v161, 4294901760
    %694 = vmatprep.subr.mxu0 %v693
    %v695 = vand.u32 %v160, 4294901760
    %696 = vmatpush1.msra.mxu0 %v695
    %v697 = vand.u32 %v158, 4294901760
    %698 = vmatprep.subr.mxu0 %v697
    %v699 = vand.u32 %v157, 4294901760
    %700 = vmatpush1.msra.mxu0 %v699
    %v701 = vand.u32 %v155, 4294901760
    %702 = vmatprep.subr.mxu0 %v701
    %v703 = vand.u32 %v154, 4294901760
    %704 = vmatpush1.msra.mxu0 %v703
    %v705 = vand.u32 %v152, 4294901760
    %706 = vmatprep.subr.mxu0 %v705
    %v707 = vand.u32 %v151, 4294901760
    %708 = vmatpush1.msra.mxu0 %v707
    %v709 = vand.u32 %v149, 4294901760
    %710 = vmatprep.subr.mxu0 %v709
    %v711 = vand.u32 %v148, 4294901760
    %712 = vmatpush1.msra.mxu0 %v711
    %v713 = vand.u32 %v146, 4294901760
    %714 = vmatprep.subr.mxu0 %v713
    %v715 = vand.u32 %v145, 4294901760
    %716 = vmatpush1.msra.mxu0 %v715
    %v717 = vand.u32 %v143, 4294901760
    %718 = vmatprep.subr.mxu0 %v717
    %v719 = vand.u32 %v142, 4294901760
    %720 = vmatpush1.msra.mxu0 %v719
    %v721 = vand.u32 %v140, 4294901760
    %722 = vmatprep.subr.mxu0 %v721
    %v723 = vand.u32 %v139, 4294901760
    %724 = vmatpush1.msra.mxu0 %v723
    %v725 = vand.u32 %v137, 4294901760
    %726 = vmatprep.subr.mxu0 %v725
    %v727 = vand.u32 %v136, 4294901760
    %728 = vmatpush1.msra.mxu0 %v727
    %v729 = vand.u32 %v134, 4294901760
    %730 = vmatprep.subr.mxu0 %v729
    %v731 = vand.u32 %v133, 4294901760
    %732 = vmatpush1.msra.mxu0 %v731
    %v733 = vand.u32 %v131, 4294901760
    %734 = vmatprep.subr.mxu0 %v733
    %v735 = vand.u32 %v130, 4294901760
    %736 = vmatpush1.msra.mxu0 %v735
    %v737 = vand.u32 %v128, 4294901760
    %738 = vmatprep.subr.mxu0 %v737
    %v739 = vand.u32 %v127, 4294901760
    %740 = vmatpush1.msra.mxu0 %v739
    %v741 = vand.u32 %v125, 4294901760
    %742 = vmatprep.subr.mxu0 %v741
    %v743 = vand.u32 %v124, 4294901760
    %744 = vmatpush1.msra.mxu0 %v743
    %v745 = vand.u32 %v122, 4294901760
    %746 = vmatprep.subr.mxu0 %v745
    %v747 = vand.u32 %v121, 4294901760
    %748 = vmatpush1.msra.mxu0 %v747
    %v749 = vand.u32 %v119, 4294901760
    %750 = vmatprep.subr.mxu0 %v749
    %v751 = vand.u32 %v118, 4294901760
    %752 = vmatpush1.msra.mxu0 %v751
    %753 = vmatprep.subr.mxu0 0.0
    %754 = vmatpush2.msra.mxu0 0.0
    %755 = vmatprep.subr.mxu0 0.0
    %756 = vmatpush2.msra.mxu0 0.0
    %757 = vmatprep.subr.mxu0 0.0
    %758 = vmatpush2.msra.mxu0 0.0
    %759 = vmatprep.subr.mxu0 0.0
    %760 = vmatpush2.msra.mxu0 0.0
    %761 = vmatprep.subr.mxu0 0.0
    %762 = vmatpush2.msra.mxu0 0.0
    %763 = vmatprep.subr.mxu0 0.0
    %764 = vmatpush2.msra.mxu0 0.0
    %765 = vmatprep.subr.mxu0 0.0
    %766 = vmatpush2.msra.mxu0 0.0
    %767 = vmatprep.subr.mxu0 0.0
    %768 = vmatpush2.msra.mxu0 0.0
    %769 = vmatprep.subr.mxu0 0.0
    %770 = vmatpush2.msra.mxu0 0.0
    %771 = vmatprep.subr.mxu0 0.0
    %772 = vmatpush2.msra.mxu0 0.0
    %773 = vmatprep.subr.mxu0 0.0
    %774 = vmatpush2.msra.mxu0 0.0
    %775 = vmatprep.subr.mxu0 0.0
    %776 = vmatpush2.msra.mxu0 0.0
    %777 = vmatprep.subr.mxu0 0.0
    %778 = vmatpush2.msra.mxu0 0.0
    %779 = vmatprep.subr.mxu0 0.0
    %780 = vmatpush2.msra.mxu0 0.0
    %781 = vmatprep.subr.mxu0 0.0
    %782 = vmatpush2.msra.mxu0 0.0
    %783 = vmatprep.subr.mxu0 0.0
    %784 = vmatpush2.msra.mxu0 0.0
    %785 = vmatprep.mubr.f32.mxu0 0.0
    %v786 = vand.u32 %v50, 4294901760
    %v787 = vsub.f32 %v50, %v786
    %v788 = vand.u32 %v787, 4294901760
    %789 = vmatmul.mubr.f32.gmra.mxu0 %v788
    %v790 = vpop.f32.mrf.mxu0
    %v791 = vadd.f32 %v671, %v790
    %v792 = vpop.f32.mrf.mxu0
    %793 = vmatprep.mubr.f32.mxu0 0.0
    %v794 = vand.u32 %v51, 4294901760
    %v795 = vsub.f32 %v51, %v794
    %v796 = vand.u32 %v795, 4294901760
    %797 = vmatmul.mubr.f32.gmra.mxu0 %v796
    %v798 = vpop.f32.mrf.mxu0
    %v799 = vadd.f32 %v678, %v798
    %v800 = vpop.f32.mrf.mxu0
    %v801 = vadd.f32 %v680, %v800
    %802 = vmatprep.mubr.f32.mxu0 0.0
    %v803 = vand.u32 %v52, 4294901760
    %v804 = vsub.f32 %v52, %v803
    %v805 = vand.u32 %v804, 4294901760
    %806 = vmatmul.mubr.f32.gmra.mxu0 %v805
    %v807 = vpop.f32.mrf.mxu0
    %v808 = vpop.f32.mrf.mxu0
    %v809 = vadd.f32 %v687, %v808
    %810 = vdwg.mxu0
    %v811 = vand.u32 %v164, 4294901760
    %v812 = vsub.f32 %v164, %v811
    %v813 = vand.u32 %v812, 4294901760
    %814 = vmatprep.subr.mxu0 %v813
    %v815 = vand.u32 %v163, 4294901760
    %v816 = vsub.f32 %v163, %v815
    %v817 = vand.u32 %v816, 4294901760
    %818 = vmatpush1.msra.mxu0 %v817
    %v819 = vand.u32 %v161, 4294901760
    %v820 = vsub.f32 %v161, %v819
    %v821 = vand.u32 %v820, 4294901760
    %822 = vmatprep.subr.mxu0 %v821
    %v823 = vand.u32 %v160, 4294901760
    %v824 = vsub.f32 %v160, %v823
    %v825 = vand.u32 %v824, 4294901760
    %826 = vmatpush1.msra.mxu0 %v825
    %v827 = vand.u32 %v158, 4294901760
    %v828 = vsub.f32 %v158, %v827
    %v829 = vand.u32 %v828, 4294901760
    %830 = vmatprep.subr.mxu0 %v829
    %v831 = vand.u32 %v157, 4294901760
    %v832 = vsub.f32 %v157, %v831
    %v833 = vand.u32 %v832, 4294901760
    %834 = vmatpush1.msra.mxu0 %v833
    %v835 = vand.u32 %v155, 4294901760
    %v836 = vsub.f32 %v155, %v835
    %v837 = vand.u32 %v836, 4294901760
    %838 = vmatprep.subr.mxu0 %v837
    %v839 = vand.u32 %v154, 4294901760
    %v840 = vsub.f32 %v154, %v839
    %v841 = vand.u32 %v840, 4294901760
    %842 = vmatpush1.msra.mxu0 %v841
    %v843 = vand.u32 %v152, 4294901760
    %v844 = vsub.f32 %v152, %v843
    %v845 = vand.u32 %v844, 4294901760
    %846 = vmatprep.subr.mxu0 %v845
    %v847 = vand.u32 %v151, 4294901760
    %v848 = vsub.f32 %v151, %v847
    %v849 = vand.u32 %v848, 4294901760
    %850 = vmatpush1.msra.mxu0 %v849
    %v851 = vand.u32 %v149, 4294901760
    %v852 = vsub.f32 %v149, %v851
    %v853 = vand.u32 %v852, 4294901760
    %854 = vmatprep.subr.mxu0 %v853
    %v855 = vand.u32 %v148, 4294901760
    %v856 = vsub.f32 %v148, %v855
    %v857 = vand.u32 %v856, 4294901760
    %858 = vmatpush1.msra.mxu0 %v857
    %v859 = vand.u32 %v146, 4294901760
    %v860 = vsub.f32 %v146, %v859
    %v861 = vand.u32 %v860, 4294901760
    %862 = vmatprep.subr.mxu0 %v861
    %v863 = vand.u32 %v145, 4294901760
    %v864 = vsub.f32 %v145, %v863
    %v865 = vand.u32 %v864, 4294901760
    %866 = vmatpush1.msra.mxu0 %v865
    %v867 = vand.u32 %v143, 4294901760
    %v868 = vsub.f32 %v143, %v867
    %v869 = vand.u32 %v868, 4294901760
    %870 = vmatprep.subr.mxu0 %v869
    %v871 = vand.u32 %v142, 4294901760
    %v872 = vsub.f32 %v142, %v871
    %v873 = vand.u32 %v872, 4294901760
    %874 = vmatpush1.msra.mxu0 %v873
    %v875 = vand.u32 %v140, 4294901760
    %v876 = vsub.f32 %v140, %v875
    %v877 = vand.u32 %v876, 4294901760
    %878 = vmatprep.subr.mxu0 %v877
    %v879 = vand.u32 %v139, 4294901760
    %v880 = vsub.f32 %v139, %v879
    %v881 = vand.u32 %v880, 4294901760
    %882 = vmatpush1.msra.mxu0 %v881
    %v883 = vand.u32 %v137, 4294901760
    %v884 = vsub.f32 %v137, %v883
    %v885 = vand.u32 %v884, 4294901760
    %886 = vmatprep.subr.mxu0 %v885
    %v887 = vand.u32 %v136, 4294901760
    %v888 = vsub.f32 %v136, %v887
    %v889 = vand.u32 %v888, 4294901760
    %890 = vmatpush1.msra.mxu0 %v889
    %v891 = vand.u32 %v134, 4294901760
    %v892 = vsub.f32 %v134, %v891
    %v893 = vand.u32 %v892, 4294901760
    %894 = vmatprep.subr.mxu0 %v893
    %v895 = vand.u32 %v133, 4294901760
    %v896 = vsub.f32 %v133, %v895
    %v897 = vand.u32 %v896, 4294901760
    %898 = vmatpush1.msra.mxu0 %v897
    %v899 = vand.u32 %v131, 4294901760
    %v900 = vsub.f32 %v131, %v899
    %v901 = vand.u32 %v900, 4294901760
    %902 = vmatprep.subr.mxu0 %v901
    %v903 = vand.u32 %v130, 4294901760
    %v904 = vsub.f32 %v130, %v903
    %v905 = vand.u32 %v904, 4294901760
    %906 = vmatpush1.msra.mxu0 %v905
    %v907 = vand.u32 %v128, 4294901760
    %v908 = vsub.f32 %v128, %v907
    %v909 = vand.u32 %v908, 4294901760
    %910 = vmatprep.subr.mxu0 %v909
    %v911 = vand.u32 %v127, 4294901760
    %v912 = vsub.f32 %v127, %v911
    %v913 = vand.u32 %v912, 4294901760
    %914 = vmatpush1.msra.mxu0 %v913
    %v915 = vand.u32 %v125, 4294901760
    %v916 = vsub.f32 %v125, %v915
    %v917 = vand.u32 %v916, 4294901760
    %918 = vmatprep.subr.mxu0 %v917
    %v919 = vand.u32 %v124, 4294901760
    %v920 = vsub.f32 %v124, %v919
    %v921 = vand.u32 %v920, 4294901760
    %922 = vmatpush1.msra.mxu0 %v921
    %v923 = vand.u32 %v122, 4294901760
    %v924 = vsub.f32 %v122, %v923
    %v925 = vand.u32 %v924, 4294901760
    %926 = vmatprep.subr.mxu0 %v925
    %v927 = vand.u32 %v121, 4294901760
    %v928 = vsub.f32 %v121, %v927
    %v929 = vand.u32 %v928, 4294901760
    %930 = vmatpush1.msra.mxu0 %v929
    %v931 = vand.u32 %v119, 4294901760
    %v932 = vsub.f32 %v119, %v931
    %v933 = vand.u32 %v932, 4294901760
    %934 = vmatprep.subr.mxu0 %v933
    %v935 = vand.u32 %v118, 4294901760
    %v936 = vsub.f32 %v118, %v935
    %v937 = vand.u32 %v936, 4294901760
    %938 = vmatpush1.msra.mxu0 %v937
    %939 = vmatprep.subr.mxu0 0.0
    %940 = vmatpush2.msra.mxu0 0.0
    %941 = vmatprep.subr.mxu0 0.0
    %942 = vmatpush2.msra.mxu0 0.0
    %943 = vmatprep.subr.mxu0 0.0
    %944 = vmatpush2.msra.mxu0 0.0
    %945 = vmatprep.subr.mxu0 0.0
    %946 = vmatpush2.msra.mxu0 0.0
    %947 = vmatprep.subr.mxu0 0.0
    %948 = vmatpush2.msra.mxu0 0.0
    %949 = vmatprep.subr.mxu0 0.0
    %950 = vmatpush2.msra.mxu0 0.0
    %951 = vmatprep.subr.mxu0 0.0
    %952 = vmatpush2.msra.mxu0 0.0
    %953 = vmatprep.subr.mxu0 0.0
    %954 = vmatpush2.msra.mxu0 0.0
    %955 = vmatprep.subr.mxu0 0.0
    %956 = vmatpush2.msra.mxu0 0.0
    %957 = vmatprep.subr.mxu0 0.0
    %958 = vmatpush2.msra.mxu0 0.0
    %959 = vmatprep.subr.mxu0 0.0
    %960 = vmatpush2.msra.mxu0 0.0
    %961 = vmatprep.subr.mxu0 0.0
    %962 = vmatpush2.msra.mxu0 0.0
    %963 = vmatprep.subr.mxu0 0.0
    %964 = vmatpush2.msra.mxu0 0.0
    %965 = vmatprep.subr.mxu0 0.0
    %966 = vmatpush2.msra.mxu0 0.0
    %967 = vmatprep.subr.mxu0 0.0
    %968 = vmatpush2.msra.mxu0 0.0
    %969 = vmatprep.subr.mxu0 0.0
    %970 = vmatpush2.msra.mxu0 0.0
    %971 = vmatprep.mubr.f32.mxu0 0.0
    %v972 = vand.u32 %v50, 4294901760
    %973 = vmatmul.mubr.f32.gmra.mxu0 %v972
    %v974 = vpop.f32.mrf.mxu0
    %v975 = vadd.f32 %v791, %v974
    %v976 = vpop.f32.mrf.mxu0
    %977 = vmatprep.mubr.f32.mxu0 0.0
    %v978 = vand.u32 %v51, 4294901760
    %979 = vmatmul.mubr.f32.gmra.mxu0 %v978
    %v980 = vpop.f32.mrf.mxu0
    %v981 = vadd.f32 %v799, %v980
    %v982 = vpop.f32.mrf.mxu0
    %v983 = vadd.f32 %v801, %v982
    %984 = vmatprep.mubr.f32.mxu0 0.0
    %v985 = vand.u32 %v52, 4294901760
    %986 = vmatmul.mubr.f32.gmra.mxu0 %v985
    %v987 = vpop.f32.mrf.mxu0
    %v988 = vpop.f32.mrf.mxu0
    %v989 = vadd.f32 %v809, %v988
    %990 = vdwg.mxu0
    %v991 = vand.u32 %v164, 4294901760
    %992 = vmatprep.subr.mxu0 %v991
    %v993 = vand.u32 %v163, 4294901760
    %994 = vmatpush1.msra.mxu0 %v993
    %v995 = vand.u32 %v161, 4294901760
    %996 = vmatprep.subr.mxu0 %v995
    %v997 = vand.u32 %v160, 4294901760
    %998 = vmatpush1.msra.mxu0 %v997
    %v999 = vand.u32 %v158, 4294901760
    %1000 = vmatprep.subr.mxu0 %v999
    %v1001 = vand.u32 %v157, 4294901760
    %1002 = vmatpush1.msra.mxu0 %v1001
    %v1003 = vand.u32 %v155, 4294901760
    %1004 = vmatprep.subr.mxu0 %v1003
    %v1005 = vand.u32 %v154, 4294901760
    %1006 = vmatpush1.msra.mxu0 %v1005
    %v1007 = vand.u32 %v152, 4294901760
    %1008 = vmatprep.subr.mxu0 %v1007
    %v1009 = vand.u32 %v151, 4294901760
    %1010 = vmatpush1.msra.mxu0 %v1009
    %v1011 = vand.u32 %v149, 4294901760
    %1012 = vmatprep.subr.mxu0 %v1011
    %v1013 = vand.u32 %v148, 4294901760
    %1014 = vmatpush1.msra.mxu0 %v1013
    %v1015 = vand.u32 %v146, 4294901760
    %1016 = vmatprep.subr.mxu0 %v1015
    %v1017 = vand.u32 %v145, 4294901760
    %1018 = vmatpush1.msra.mxu0 %v1017
    %v1019 = vand.u32 %v143, 4294901760
    %1020 = vmatprep.subr.mxu0 %v1019
    %v1021 = vand.u32 %v142, 4294901760
    %1022 = vmatpush1.msra.mxu0 %v1021
    %v1023 = vand.u32 %v140, 4294901760
    %1024 = vmatprep.subr.mxu0 %v1023
    %v1025 = vand.u32 %v139, 4294901760
    %1026 = vmatpush1.msra.mxu0 %v1025
    %v1027 = vand.u32 %v137, 4294901760
    %1028 = vmatprep.subr.mxu0 %v1027
    %v1029 = vand.u32 %v136, 4294901760
    %1030 = vmatpush1.msra.mxu0 %v1029
    %v1031 = vand.u32 %v134, 4294901760
    %1032 = vmatprep.subr.mxu0 %v1031
    %v1033 = vand.u32 %v133, 4294901760
    %1034 = vmatpush1.msra.mxu0 %v1033
    %v1035 = vand.u32 %v131, 4294901760
    %1036 = vmatprep.subr.mxu0 %v1035
    %v1037 = vand.u32 %v130, 4294901760
    %1038 = vmatpush1.msra.mxu0 %v1037
    %v1039 = vand.u32 %v128, 4294901760
    %1040 = vmatprep.subr.mxu0 %v1039
    %v1041 = vand.u32 %v127, 4294901760
    %1042 = vmatpush1.msra.mxu0 %v1041
    %v1043 = vand.u32 %v125, 4294901760
    %1044 = vmatprep.subr.mxu0 %v1043
    %v1045 = vand.u32 %v124, 4294901760
    %1046 = vmatpush1.msra.mxu0 %v1045
    %v1047 = vand.u32 %v122, 4294901760
    %1048 = vmatprep.subr.mxu0 %v1047
    %v1049 = vand.u32 %v121, 4294901760
    %1050 = vmatpush1.msra.mxu0 %v1049
    %v1051 = vand.u32 %v119, 4294901760
    %1052 = vmatprep.subr.mxu0 %v1051
    %v1053 = vand.u32 %v118, 4294901760
    %1054 = vmatpush1.msra.mxu0 %v1053
    %1055 = vmatprep.subr.mxu0 0.0
    %1056 = vmatpush2.msra.mxu0 0.0
    %1057 = vmatprep.subr.mxu0 0.0
    %1058 = vmatpush2.msra.mxu0 0.0
    %1059 = vmatprep.subr.mxu0 0.0
    %1060 = vmatpush2.msra.mxu0 0.0
    %1061 = vmatprep.subr.mxu0 0.0
    %1062 = vmatpush2.msra.mxu0 0.0
    %1063 = vmatprep.subr.mxu0 0.0
    %1064 = vmatpush2.msra.mxu0 0.0
    %1065 = vmatprep.subr.mxu0 0.0
    %1066 = vmatpush2.msra.mxu0 0.0
    %1067 = vmatprep.subr.mxu0 0.0
    %1068 = vmatpush2.msra.mxu0 0.0
    %1069 = vmatprep.subr.mxu0 0.0
    %1070 = vmatpush2.msra.mxu0 0.0
    %1071 = vmatprep.subr.mxu0 0.0
    %1072 = vmatpush2.msra.mxu0 0.0
    %1073 = vmatprep.subr.mxu0 0.0
    %1074 = vmatpush2.msra.mxu0 0.0
    %1075 = vmatprep.subr.mxu0 0.0
    %1076 = vmatpush2.msra.mxu0 0.0
    %1077 = vmatprep.subr.mxu0 0.0
    %1078 = vmatpush2.msra.mxu0 0.0
    %1079 = vmatprep.subr.mxu0 0.0
    %1080 = vmatpush2.msra.mxu0 0.0
    %1081 = vmatprep.subr.mxu0 0.0
    %1082 = vmatpush2.msra.mxu0 0.0
    %1083 = vmatprep.subr.mxu0 0.0
    %1084 = vmatpush2.msra.mxu0 0.0
    %1085 = vmatprep.subr.mxu0 0.0
    %1086 = vmatpush2.msra.mxu0 0.0
    %1087 = vmatprep.mubr.f32.mxu0 0.0
    %v1088 = vand.u32 %v50, 4294901760
    %1089 = vmatmul.mubr.f32.gmra.mxu0 %v1088
    %v1090 = vpop.f32.mrf.mxu0
    %v1091 = vadd.f32 %v975, %v1090
    %v1092 = vpop.f32.mrf.mxu0
    %1093 = vmatprep.mubr.f32.mxu0 0.0
    %v1094 = vand.u32 %v51, 4294901760
    %1095 = vmatmul.mubr.f32.gmra.mxu0 %v1094
    %v1096 = vpop.f32.mrf.mxu0
    %v1097 = vadd.f32 %v981, %v1096
    %v1098 = vpop.f32.mrf.mxu0
    %v1099 = vadd.f32 %v983, %v1098
    %1100 = vmatprep.mubr.f32.mxu0 0.0
    %v1101 = vand.u32 %v52, 4294901760
    %1102 = vmatmul.mubr.f32.gmra.mxu0 %v1101
    %v1103 = vpop.f32.mrf.mxu0
    %v1104 = vpop.f32.mrf.mxu0
    %v1105 = vadd.f32 %v989, %v1104
    %1106 = vdwg.mxu0
    %1107 = vmatprep.subr.mxu0 0.0
    %v1108 = vand.u32 %v165, 4294901760
    %1109 = vmatpush1.msra.mxu0 %v1108
    %1110 = vmatprep.subr.mxu0 0.0
    %v1111 = vand.u32 %v162, 4294901760
    %1112 = vmatpush1.msra.mxu0 %v1111
    %1113 = vmatprep.subr.mxu0 0.0
    %v1114 = vand.u32 %v159, 4294901760
    %1115 = vmatpush1.msra.mxu0 %v1114
    %1116 = vmatprep.subr.mxu0 0.0
    %v1117 = vand.u32 %v156, 4294901760
    %1118 = vmatpush1.msra.mxu0 %v1117
    %1119 = vmatprep.subr.mxu0 0.0
    %v1120 = vand.u32 %v153, 4294901760
    %1121 = vmatpush1.msra.mxu0 %v1120
    %1122 = vmatprep.subr.mxu0 0.0
    %v1123 = vand.u32 %v150, 4294901760
    %1124 = vmatpush1.msra.mxu0 %v1123
    %1125 = vmatprep.subr.mxu0 0.0
    %v1126 = vand.u32 %v147, 4294901760
    %1127 = vmatpush1.msra.mxu0 %v1126
    %1128 = vmatprep.subr.mxu0 0.0
    %v1129 = vand.u32 %v144, 4294901760
    %1130 = vmatpush1.msra.mxu0 %v1129
    %1131 = vmatprep.subr.mxu0 0.0
    %v1132 = vand.u32 %v141, 4294901760
    %1133 = vmatpush1.msra.mxu0 %v1132
    %1134 = vmatprep.subr.mxu0 0.0
    %v1135 = vand.u32 %v138, 4294901760
    %1136 = vmatpush1.msra.mxu0 %v1135
    %1137 = vmatprep.subr.mxu0 0.0
    %v1138 = vand.u32 %v135, 4294901760
    %1139 = vmatpush1.msra.mxu0 %v1138
    %1140 = vmatprep.subr.mxu0 0.0
    %v1141 = vand.u32 %v132, 4294901760
    %1142 = vmatpush1.msra.mxu0 %v1141
    %1143 = vmatprep.subr.mxu0 0.0
    %v1144 = vand.u32 %v129, 4294901760
    %1145 = vmatpush1.msra.mxu0 %v1144
    %1146 = vmatprep.subr.mxu0 0.0
    %v1147 = vand.u32 %v126, 4294901760
    %1148 = vmatpush1.msra.mxu0 %v1147
    %1149 = vmatprep.subr.mxu0 0.0
    %v1150 = vand.u32 %v123, 4294901760
    %1151 = vmatpush1.msra.mxu0 %v1150
    %1152 = vmatprep.subr.mxu0 0.0
    %v1153 = vand.u32 %v120, 4294901760
    %1154 = vmatpush1.msra.mxu0 %v1153
    %1155 = vmatprep.subr.mxu0 0.0
    %1156 = vmatpush2.msra.mxu0 0.0
    %1157 = vmatprep.subr.mxu0 0.0
    %1158 = vmatpush2.msra.mxu0 0.0
    %1159 = vmatprep.subr.mxu0 0.0
    %1160 = vmatpush2.msra.mxu0 0.0
    %1161 = vmatprep.subr.mxu0 0.0
    %1162 = vmatpush2.msra.mxu0 0.0
    %1163 = vmatprep.subr.mxu0 0.0
    %1164 = vmatpush2.msra.mxu0 0.0
    %1165 = vmatprep.subr.mxu0 0.0
    %1166 = vmatpush2.msra.mxu0 0.0
    %1167 = vmatprep.subr.mxu0 0.0
    %1168 = vmatpush2.msra.mxu0 0.0
    %1169 = vmatprep.subr.mxu0 0.0
    %1170 = vmatpush2.msra.mxu0 0.0
    %1171 = vmatprep.subr.mxu0 0.0
    %1172 = vmatpush2.msra.mxu0 0.0
    %1173 = vmatprep.subr.mxu0 0.0
    %1174 = vmatpush2.msra.mxu0 0.0
    %1175 = vmatprep.subr.mxu0 0.0
    %1176 = vmatpush2.msra.mxu0 0.0
    %1177 = vmatprep.subr.mxu0 0.0
    %1178 = vmatpush2.msra.mxu0 0.0
    %1179 = vmatprep.subr.mxu0 0.0
    %1180 = vmatpush2.msra.mxu0 0.0
    %1181 = vmatprep.subr.mxu0 0.0
    %1182 = vmatpush2.msra.mxu0 0.0
    %1183 = vmatprep.subr.mxu0 0.0
    %1184 = vmatpush2.msra.mxu0 0.0
    %1185 = vmatprep.subr.mxu0 0.0
    %1186 = vmatpush2.msra.mxu0 0.0
    %1187 = vmatprep.mubr.f32.mxu0 0.0
    %v1188 = vand.u32 %v50, 4294901760
    %v1189 = vsub.f32 %v50, %v1188
    %v1190 = vand.u32 %v1189, 4294901760
    %v1191 = vsub.f32 %v1189, %v1190
    %v1192 = vand.u32 %v1191, 4294901760
    %1193 = vmatmul.mubr.f32.gmra.mxu0 %v1192
    %v1194 = vpop.f32.mrf.mxu0
    %v1195 = vadd.f32 0.0, %v1194
    %v1196 = vpop.f32.mrf.mxu0
    %1197 = vmatprep.mubr.f32.mxu0 0.0
    %v1198 = vand.u32 %v51, 4294901760
    %v1199 = vsub.f32 %v51, %v1198
    %v1200 = vand.u32 %v1199, 4294901760
    %v1201 = vsub.f32 %v1199, %v1200
    %v1202 = vand.u32 %v1201, 4294901760
    %1203 = vmatmul.mubr.f32.gmra.mxu0 %v1202
    %v1204 = vpop.f32.mrf.mxu0
    %v1205 = vadd.f32 0.0, %v1204
    %v1206 = vpop.f32.mrf.mxu0
    %1207 = vmatprep.mubr.f32.mxu0 0.0
    %v1208 = vand.u32 %v52, 4294901760
    %v1209 = vsub.f32 %v52, %v1208
    %v1210 = vand.u32 %v1209, 4294901760
    %v1211 = vsub.f32 %v1209, %v1210
    %v1212 = vand.u32 %v1211, 4294901760
    %1213 = vmatmul.mubr.f32.gmra.mxu0 %v1212
    %v1214 = vpop.f32.mrf.mxu0
    %v1215 = vadd.f32 0.0, %v1214
    %v1216 = vpop.f32.mrf.mxu0
    %1217 = vdwg.mxu0
    %1218 = vmatprep.subr.mxu0 0.0
    %v1219 = vand.u32 %v165, 4294901760
    %v1220 = vsub.f32 %v165, %v1219
    %v1221 = vand.u32 %v1220, 4294901760
    %v1222 = vsub.f32 %v1220, %v1221
    %v1223 = vand.u32 %v1222, 4294901760
    %1224 = vmatpush1.msra.mxu0 %v1223
    %1225 = vmatprep.subr.mxu0 0.0
    %v1226 = vand.u32 %v162, 4294901760
    %v1227 = vsub.f32 %v162, %v1226
    %v1228 = vand.u32 %v1227, 4294901760
    %v1229 = vsub.f32 %v1227, %v1228
    %v1230 = vand.u32 %v1229, 4294901760
    %1231 = vmatpush1.msra.mxu0 %v1230
    %1232 = vmatprep.subr.mxu0 0.0
    %v1233 = vand.u32 %v159, 4294901760
    %v1234 = vsub.f32 %v159, %v1233
    %v1235 = vand.u32 %v1234, 4294901760
    %v1236 = vsub.f32 %v1234, %v1235
    %v1237 = vand.u32 %v1236, 4294901760
    %1238 = vmatpush1.msra.mxu0 %v1237
    %1239 = vmatprep.subr.mxu0 0.0
    %v1240 = vand.u32 %v156, 4294901760
    %v1241 = vsub.f32 %v156, %v1240
    %v1242 = vand.u32 %v1241, 4294901760
    %v1243 = vsub.f32 %v1241, %v1242
    %v1244 = vand.u32 %v1243, 4294901760
    %1245 = vmatpush1.msra.mxu0 %v1244
    %1246 = vmatprep.subr.mxu0 0.0
    %v1247 = vand.u32 %v153, 4294901760
    %v1248 = vsub.f32 %v153, %v1247
    %v1249 = vand.u32 %v1248, 4294901760
    %v1250 = vsub.f32 %v1248, %v1249
    %v1251 = vand.u32 %v1250, 4294901760
    %1252 = vmatpush1.msra.mxu0 %v1251
    %1253 = vmatprep.subr.mxu0 0.0
    %v1254 = vand.u32 %v150, 4294901760
    %v1255 = vsub.f32 %v150, %v1254
    %v1256 = vand.u32 %v1255, 4294901760
    %v1257 = vsub.f32 %v1255, %v1256
    %v1258 = vand.u32 %v1257, 4294901760
    %1259 = vmatpush1.msra.mxu0 %v1258
    %1260 = vmatprep.subr.mxu0 0.0
    %v1261 = vand.u32 %v147, 4294901760
    %v1262 = vsub.f32 %v147, %v1261
    %v1263 = vand.u32 %v1262, 4294901760
    %v1264 = vsub.f32 %v1262, %v1263
    %v1265 = vand.u32 %v1264, 4294901760
    %1266 = vmatpush1.msra.mxu0 %v1265
    %1267 = vmatprep.subr.mxu0 0.0
    %v1268 = vand.u32 %v144, 4294901760
    %v1269 = vsub.f32 %v144, %v1268
    %v1270 = vand.u32 %v1269, 4294901760
    %v1271 = vsub.f32 %v1269, %v1270
    %v1272 = vand.u32 %v1271, 4294901760
    %1273 = vmatpush1.msra.mxu0 %v1272
    %1274 = vmatprep.subr.mxu0 0.0
    %v1275 = vand.u32 %v141, 4294901760
    %v1276 = vsub.f32 %v141, %v1275
    %v1277 = vand.u32 %v1276, 4294901760
    %v1278 = vsub.f32 %v1276, %v1277
    %v1279 = vand.u32 %v1278, 4294901760
    %1280 = vmatpush1.msra.mxu0 %v1279
    %1281 = vmatprep.subr.mxu0 0.0
    %v1282 = vand.u32 %v138, 4294901760
    %v1283 = vsub.f32 %v138, %v1282
    %v1284 = vand.u32 %v1283, 4294901760
    %v1285 = vsub.f32 %v1283, %v1284
    %v1286 = vand.u32 %v1285, 4294901760
    %1287 = vmatpush1.msra.mxu0 %v1286
    %1288 = vmatprep.subr.mxu0 0.0
    %v1289 = vand.u32 %v135, 4294901760
    %v1290 = vsub.f32 %v135, %v1289
    %v1291 = vand.u32 %v1290, 4294901760
    %v1292 = vsub.f32 %v1290, %v1291
    %v1293 = vand.u32 %v1292, 4294901760
    %1294 = vmatpush1.msra.mxu0 %v1293
    %1295 = vmatprep.subr.mxu0 0.0
    %v1296 = vand.u32 %v132, 4294901760
    %v1297 = vsub.f32 %v132, %v1296
    %v1298 = vand.u32 %v1297, 4294901760
    %v1299 = vsub.f32 %v1297, %v1298
    %v1300 = vand.u32 %v1299, 4294901760
    %1301 = vmatpush1.msra.mxu0 %v1300
    %1302 = vmatprep.subr.mxu0 0.0
    %v1303 = vand.u32 %v129, 4294901760
    %v1304 = vsub.f32 %v129, %v1303
    %v1305 = vand.u32 %v1304, 4294901760
    %v1306 = vsub.f32 %v1304, %v1305
    %v1307 = vand.u32 %v1306, 4294901760
    %1308 = vmatpush1.msra.mxu0 %v1307
    %1309 = vmatprep.subr.mxu0 0.0
    %v1310 = vand.u32 %v126, 4294901760
    %v1311 = vsub.f32 %v126, %v1310
    %v1312 = vand.u32 %v1311, 4294901760
    %v1313 = vsub.f32 %v1311, %v1312
    %v1314 = vand.u32 %v1313, 4294901760
    %1315 = vmatpush1.msra.mxu0 %v1314
    %1316 = vmatprep.subr.mxu0 0.0
    %v1317 = vand.u32 %v123, 4294901760
    %v1318 = vsub.f32 %v123, %v1317
    %v1319 = vand.u32 %v1318, 4294901760
    %v1320 = vsub.f32 %v1318, %v1319
    %v1321 = vand.u32 %v1320, 4294901760
    %1322 = vmatpush1.msra.mxu0 %v1321
    %1323 = vmatprep.subr.mxu0 0.0
    %v1324 = vand.u32 %v120, 4294901760
    %v1325 = vsub.f32 %v120, %v1324
    %v1326 = vand.u32 %v1325, 4294901760
    %v1327 = vsub.f32 %v1325, %v1326
    %v1328 = vand.u32 %v1327, 4294901760
    %1329 = vmatpush1.msra.mxu0 %v1328
    %1330 = vmatprep.subr.mxu0 0.0
    %1331 = vmatpush2.msra.mxu0 0.0
    %1332 = vmatprep.subr.mxu0 0.0
    %1333 = vmatpush2.msra.mxu0 0.0
    %1334 = vmatprep.subr.mxu0 0.0
    %1335 = vmatpush2.msra.mxu0 0.0
    %1336 = vmatprep.subr.mxu0 0.0
    %1337 = vmatpush2.msra.mxu0 0.0
    %1338 = vmatprep.subr.mxu0 0.0
    %1339 = vmatpush2.msra.mxu0 0.0
    %1340 = vmatprep.subr.mxu0 0.0
    %1341 = vmatpush2.msra.mxu0 0.0
    %1342 = vmatprep.subr.mxu0 0.0
    %1343 = vmatpush2.msra.mxu0 0.0
    %1344 = vmatprep.subr.mxu0 0.0
    %1345 = vmatpush2.msra.mxu0 0.0
    %1346 = vmatprep.subr.mxu0 0.0
    %1347 = vmatpush2.msra.mxu0 0.0
    %1348 = vmatprep.subr.mxu0 0.0
    %1349 = vmatpush2.msra.mxu0 0.0
    %1350 = vmatprep.subr.mxu0 0.0
    %1351 = vmatpush2.msra.mxu0 0.0
    %1352 = vmatprep.subr.mxu0 0.0
    %1353 = vmatpush2.msra.mxu0 0.0
    %1354 = vmatprep.subr.mxu0 0.0
    %1355 = vmatpush2.msra.mxu0 0.0
    %1356 = vmatprep.subr.mxu0 0.0
    %1357 = vmatpush2.msra.mxu0 0.0
    %1358 = vmatprep.subr.mxu0 0.0
    %1359 = vmatpush2.msra.mxu0 0.0
    %1360 = vmatprep.subr.mxu0 0.0
    %1361 = vmatpush2.msra.mxu0 0.0
    %1362 = vmatprep.mubr.f32.mxu0 0.0
    %v1363 = vand.u32 %v50, 4294901760
    %1364 = vmatmul.mubr.f32.gmra.mxu0 %v1363
    %v1365 = vpop.f32.mrf.mxu0
    %v1366 = vadd.f32 %v1195, %v1365
    %v1367 = vpop.f32.mrf.mxu0
    %1368 = vmatprep.mubr.f32.mxu0 0.0
    %v1369 = vand.u32 %v51, 4294901760
    %1370 = vmatmul.mubr.f32.gmra.mxu0 %v1369
    %v1371 = vpop.f32.mrf.mxu0
    %v1372 = vadd.f32 %v1205, %v1371
    %v1373 = vpop.f32.mrf.mxu0
    %1374 = vmatprep.mubr.f32.mxu0 0.0
    %v1375 = vand.u32 %v52, 4294901760
    %1376 = vmatmul.mubr.f32.gmra.mxu0 %v1375
    %v1377 = vpop.f32.mrf.mxu0
    %v1378 = vadd.f32 %v1215, %v1377
    %v1379 = vpop.f32.mrf.mxu0
    %1380 = vdwg.mxu0
    %1381 = vmatprep.subr.mxu0 0.0
    %v1382 = vand.u32 %v165, 4294901760
    %v1383 = vsub.f32 %v165, %v1382
    %1384 = vmatpush1.msra.mxu0 %v1383
    %1385 = vmatprep.subr.mxu0 0.0
    %v1386 = vand.u32 %v162, 4294901760
    %v1387 = vsub.f32 %v162, %v1386
    %1388 = vmatpush1.msra.mxu0 %v1387
    %1389 = vmatprep.subr.mxu0 0.0
    %v1390 = vand.u32 %v159, 4294901760
    %v1391 = vsub.f32 %v159, %v1390
    %1392 = vmatpush1.msra.mxu0 %v1391
    %1393 = vmatprep.subr.mxu0 0.0
    %v1394 = vand.u32 %v156, 4294901760
    %v1395 = vsub.f32 %v156, %v1394
    %1396 = vmatpush1.msra.mxu0 %v1395
    %1397 = vmatprep.subr.mxu0 0.0
    %v1398 = vand.u32 %v153, 4294901760
    %v1399 = vsub.f32 %v153, %v1398
    %1400 = vmatpush1.msra.mxu0 %v1399
    %1401 = vmatprep.subr.mxu0 0.0
    %v1402 = vand.u32 %v150, 4294901760
    %v1403 = vsub.f32 %v150, %v1402
    %1404 = vmatpush1.msra.mxu0 %v1403
    %1405 = vmatprep.subr.mxu0 0.0
    %v1406 = vand.u32 %v147, 4294901760
    %v1407 = vsub.f32 %v147, %v1406
    %1408 = vmatpush1.msra.mxu0 %v1407
    %1409 = vmatprep.subr.mxu0 0.0
    %v1410 = vand.u32 %v144, 4294901760
    %v1411 = vsub.f32 %v144, %v1410
    %1412 = vmatpush1.msra.mxu0 %v1411
    %1413 = vmatprep.subr.mxu0 0.0
    %v1414 = vand.u32 %v141, 4294901760
    %v1415 = vsub.f32 %v141, %v1414
    %1416 = vmatpush1.msra.mxu0 %v1415
    %1417 = vmatprep.subr.mxu0 0.0
    %v1418 = vand.u32 %v138, 4294901760
    %v1419 = vsub.f32 %v138, %v1418
    %1420 = vmatpush1.msra.mxu0 %v1419
    %1421 = vmatprep.subr.mxu0 0.0
    %v1422 = vand.u32 %v135, 4294901760
    %v1423 = vsub.f32 %v135, %v1422
    %1424 = vmatpush1.msra.mxu0 %v1423
    %1425 = vmatprep.subr.mxu0 0.0
    %v1426 = vand.u32 %v132, 4294901760
    %v1427 = vsub.f32 %v132, %v1426
    %1428 = vmatpush1.msra.mxu0 %v1427
    %1429 = vmatprep.subr.mxu0 0.0
    %v1430 = vand.u32 %v129, 4294901760
    %v1431 = vsub.f32 %v129, %v1430
    %1432 = vmatpush1.msra.mxu0 %v1431
    %1433 = vmatprep.subr.mxu0 0.0
    %v1434 = vand.u32 %v126, 4294901760
    %v1435 = vsub.f32 %v126, %v1434
    %1436 = vmatpush1.msra.mxu0 %v1435
    %1437 = vmatprep.subr.mxu0 0.0
    %v1438 = vand.u32 %v123, 4294901760
    %v1439 = vsub.f32 %v123, %v1438
    %1440 = vmatpush1.msra.mxu0 %v1439
    %1441 = vmatprep.subr.mxu0 0.0
    %v1442 = vand.u32 %v120, 4294901760
    %v1443 = vsub.f32 %v120, %v1442
    %1444 = vmatpush1.msra.mxu0 %v1443
    %1445 = vmatprep.subr.mxu0 0.0
    %1446 = vmatpush2.msra.mxu0 0.0
    %1447 = vmatprep.subr.mxu0 0.0
    %1448 = vmatpush2.msra.mxu0 0.0
    %1449 = vmatprep.subr.mxu0 0.0
    %1450 = vmatpush2.msra.mxu0 0.0
    %1451 = vmatprep.subr.mxu0 0.0
    %1452 = vmatpush2.msra.mxu0 0.0
    %1453 = vmatprep.subr.mxu0 0.0
    %1454 = vmatpush2.msra.mxu0 0.0
    %1455 = vmatprep.subr.mxu0 0.0
    %1456 = vmatpush2.msra.mxu0 0.0
    %1457 = vmatprep.subr.mxu0 0.0
    %1458 = vmatpush2.msra.mxu0 0.0
    %1459 = vmatprep.subr.mxu0 0.0
    %1460 = vmatpush2.msra.mxu0 0.0
    %1461 = vmatprep.subr.mxu0 0.0
    %1462 = vmatpush2.msra.mxu0 0.0
    %1463 = vmatprep.subr.mxu0 0.0
    %1464 = vmatpush2.msra.mxu0 0.0
    %1465 = vmatprep.subr.mxu0 0.0
    %1466 = vmatpush2.msra.mxu0 0.0
    %1467 = vmatprep.subr.mxu0 0.0
    %1468 = vmatpush2.msra.mxu0 0.0
    %1469 = vmatprep.subr.mxu0 0.0
    %1470 = vmatpush2.msra.mxu0 0.0
    %1471 = vmatprep.subr.mxu0 0.0
    %1472 = vmatpush2.msra.mxu0 0.0
    %1473 = vmatprep.subr.mxu0 0.0
    %1474 = vmatpush2.msra.mxu0 0.0
    %1475 = vmatprep.subr.mxu0 0.0
    %1476 = vmatpush2.msra.mxu0 0.0
    %1477 = vmatprep.mubr.f32.mxu0 0.0
    %v1478 = vand.u32 %v50, 4294901760
    %v1479 = vsub.f32 %v50, %v1478
    %1480 = vmatmul.mubr.f32.gmra.mxu0 %v1479
    %v1481 = vpop.f32.mrf.mxu0
    %v1482 = vadd.f32 %v1366, %v1481
    %v1483 = vpop.f32.mrf.mxu0
    %1484 = vmatprep.mubr.f32.mxu0 0.0
    %v1485 = vand.u32 %v51, 4294901760
    %v1486 = vsub.f32 %v51, %v1485
    %1487 = vmatmul.mubr.f32.gmra.mxu0 %v1486
    %v1488 = vpop.f32.mrf.mxu0
    %v1489 = vadd.f32 %v1372, %v1488
    %v1490 = vpop.f32.mrf.mxu0
    %1491 = vmatprep.mubr.f32.mxu0 0.0
    %v1492 = vand.u32 %v52, 4294901760
    %v1493 = vsub.f32 %v52, %v1492
    %1494 = vmatmul.mubr.f32.gmra.mxu0 %v1493
    %v1495 = vpop.f32.mrf.mxu0
    %v1496 = vadd.f32 %v1378, %v1495
    %v1497 = vpop.f32.mrf.mxu0
    %1498 = vdwg.mxu0
    %1499 = vmatprep.subr.mxu0 0.0
    %v1500 = vand.u32 %v165, 4294901760
    %1501 = vmatpush1.msra.mxu0 %v1500
    %1502 = vmatprep.subr.mxu0 0.0
    %v1503 = vand.u32 %v162, 4294901760
    %1504 = vmatpush1.msra.mxu0 %v1503
    %1505 = vmatprep.subr.mxu0 0.0
    %v1506 = vand.u32 %v159, 4294901760
    %1507 = vmatpush1.msra.mxu0 %v1506
    %1508 = vmatprep.subr.mxu0 0.0
    %v1509 = vand.u32 %v156, 4294901760
    %1510 = vmatpush1.msra.mxu0 %v1509
    %1511 = vmatprep.subr.mxu0 0.0
    %v1512 = vand.u32 %v153, 4294901760
    %1513 = vmatpush1.msra.mxu0 %v1512
    %1514 = vmatprep.subr.mxu0 0.0
    %v1515 = vand.u32 %v150, 4294901760
    %1516 = vmatpush1.msra.mxu0 %v1515
    %1517 = vmatprep.subr.mxu0 0.0
    %v1518 = vand.u32 %v147, 4294901760
    %1519 = vmatpush1.msra.mxu0 %v1518
    %1520 = vmatprep.subr.mxu0 0.0
    %v1521 = vand.u32 %v144, 4294901760
    %1522 = vmatpush1.msra.mxu0 %v1521
    %1523 = vmatprep.subr.mxu0 0.0
    %v1524 = vand.u32 %v141, 4294901760
    %1525 = vmatpush1.msra.mxu0 %v1524
    %1526 = vmatprep.subr.mxu0 0.0
    %v1527 = vand.u32 %v138, 4294901760
    %1528 = vmatpush1.msra.mxu0 %v1527
    %1529 = vmatprep.subr.mxu0 0.0
    %v1530 = vand.u32 %v135, 4294901760
    %1531 = vmatpush1.msra.mxu0 %v1530
    %1532 = vmatprep.subr.mxu0 0.0
    %v1533 = vand.u32 %v132, 4294901760
    %1534 = vmatpush1.msra.mxu0 %v1533
    %1535 = vmatprep.subr.mxu0 0.0
    %v1536 = vand.u32 %v129, 4294901760
    %1537 = vmatpush1.msra.mxu0 %v1536
    %1538 = vmatprep.subr.mxu0 0.0
    %v1539 = vand.u32 %v126, 4294901760
    %1540 = vmatpush1.msra.mxu0 %v1539
    %1541 = vmatprep.subr.mxu0 0.0
    %v1542 = vand.u32 %v123, 4294901760
    %1543 = vmatpush1.msra.mxu0 %v1542
    %1544 = vmatprep.subr.mxu0 0.0
    %v1545 = vand.u32 %v120, 4294901760
    %1546 = vmatpush1.msra.mxu0 %v1545
    %1547 = vmatprep.subr.mxu0 0.0
    %1548 = vmatpush2.msra.mxu0 0.0
    %1549 = vmatprep.subr.mxu0 0.0
    %1550 = vmatpush2.msra.mxu0 0.0
    %1551 = vmatprep.subr.mxu0 0.0
    %1552 = vmatpush2.msra.mxu0 0.0
    %1553 = vmatprep.subr.mxu0 0.0
    %1554 = vmatpush2.msra.mxu0 0.0
    %1555 = vmatprep.subr.mxu0 0.0
    %1556 = vmatpush2.msra.mxu0 0.0
    %1557 = vmatprep.subr.mxu0 0.0
    %1558 = vmatpush2.msra.mxu0 0.0
    %1559 = vmatprep.subr.mxu0 0.0
    %1560 = vmatpush2.msra.mxu0 0.0
    %1561 = vmatprep.subr.mxu0 0.0
    %1562 = vmatpush2.msra.mxu0 0.0
    %1563 = vmatprep.subr.mxu0 0.0
    %1564 = vmatpush2.msra.mxu0 0.0
    %1565 = vmatprep.subr.mxu0 0.0
    %1566 = vmatpush2.msra.mxu0 0.0
    %1567 = vmatprep.subr.mxu0 0.0
    %1568 = vmatpush2.msra.mxu0 0.0
    %1569 = vmatprep.subr.mxu0 0.0
    %1570 = vmatpush2.msra.mxu0 0.0
    %1571 = vmatprep.subr.mxu0 0.0
    %1572 = vmatpush2.msra.mxu0 0.0
    %1573 = vmatprep.subr.mxu0 0.0
    %1574 = vmatpush2.msra.mxu0 0.0
    %1575 = vmatprep.subr.mxu0 0.0
    %1576 = vmatpush2.msra.mxu0 0.0
    %1577 = vmatprep.subr.mxu0 0.0
    %1578 = vmatpush2.msra.mxu0 0.0
    %1579 = vmatprep.mubr.f32.mxu0 0.0
    %v1580 = vand.u32 %v50, 4294901760
    %v1581 = vsub.f32 %v50, %v1580
    %v1582 = vand.u32 %v1581, 4294901760
    %1583 = vmatmul.mubr.f32.gmra.mxu0 %v1582
    %v1584 = vpop.f32.mrf.mxu0
    %v1585 = vadd.f32 %v1482, %v1584
    %v1586 = vpop.f32.mrf.mxu0
    %1587 = vmatprep.mubr.f32.mxu0 0.0
    %v1588 = vand.u32 %v51, 4294901760
    %v1589 = vsub.f32 %v51, %v1588
    %v1590 = vand.u32 %v1589, 4294901760
    %1591 = vmatmul.mubr.f32.gmra.mxu0 %v1590
    %v1592 = vpop.f32.mrf.mxu0
    %v1593 = vadd.f32 %v1489, %v1592
    %v1594 = vpop.f32.mrf.mxu0
    %1595 = vmatprep.mubr.f32.mxu0 0.0
    %v1596 = vand.u32 %v52, 4294901760
    %v1597 = vsub.f32 %v52, %v1596
    %v1598 = vand.u32 %v1597, 4294901760
    %1599 = vmatmul.mubr.f32.gmra.mxu0 %v1598
    %v1600 = vpop.f32.mrf.mxu0
    %v1601 = vadd.f32 %v1496, %v1600
    %v1602 = vpop.f32.mrf.mxu0
    %1603 = vdwg.mxu0
    %1604 = vmatprep.subr.mxu0 0.0
    %v1605 = vand.u32 %v165, 4294901760
    %v1606 = vsub.f32 %v165, %v1605
    %v1607 = vand.u32 %v1606, 4294901760
    %1608 = vmatpush1.msra.mxu0 %v1607
    %1609 = vmatprep.subr.mxu0 0.0
    %v1610 = vand.u32 %v162, 4294901760
    %v1611 = vsub.f32 %v162, %v1610
    %v1612 = vand.u32 %v1611, 4294901760
    %1613 = vmatpush1.msra.mxu0 %v1612
    %1614 = vmatprep.subr.mxu0 0.0
    %v1615 = vand.u32 %v159, 4294901760
    %v1616 = vsub.f32 %v159, %v1615
    %v1617 = vand.u32 %v1616, 4294901760
    %1618 = vmatpush1.msra.mxu0 %v1617
    %1619 = vmatprep.subr.mxu0 0.0
    %v1620 = vand.u32 %v156, 4294901760
    %v1621 = vsub.f32 %v156, %v1620
    %v1622 = vand.u32 %v1621, 4294901760
    %1623 = vmatpush1.msra.mxu0 %v1622
    %1624 = vmatprep.subr.mxu0 0.0
    %v1625 = vand.u32 %v153, 4294901760
    %v1626 = vsub.f32 %v153, %v1625
    %v1627 = vand.u32 %v1626, 4294901760
    %1628 = vmatpush1.msra.mxu0 %v1627
    %1629 = vmatprep.subr.mxu0 0.0
    %v1630 = vand.u32 %v150, 4294901760
    %v1631 = vsub.f32 %v150, %v1630
    %v1632 = vand.u32 %v1631, 4294901760
    %1633 = vmatpush1.msra.mxu0 %v1632
    %1634 = vmatprep.subr.mxu0 0.0
    %v1635 = vand.u32 %v147, 4294901760
    %v1636 = vsub.f32 %v147, %v1635
    %v1637 = vand.u32 %v1636, 4294901760
    %1638 = vmatpush1.msra.mxu0 %v1637
    %1639 = vmatprep.subr.mxu0 0.0
    %v1640 = vand.u32 %v144, 4294901760
    %v1641 = vsub.f32 %v144, %v1640
    %v1642 = vand.u32 %v1641, 4294901760
    %1643 = vmatpush1.msra.mxu0 %v1642
    %1644 = vmatprep.subr.mxu0 0.0
    %v1645 = vand.u32 %v141, 4294901760
    %v1646 = vsub.f32 %v141, %v1645
    %v1647 = vand.u32 %v1646, 4294901760
    %1648 = vmatpush1.msra.mxu0 %v1647
    %1649 = vmatprep.subr.mxu0 0.0
    %v1650 = vand.u32 %v138, 4294901760
    %v1651 = vsub.f32 %v138, %v1650
    %v1652 = vand.u32 %v1651, 4294901760
    %1653 = vmatpush1.msra.mxu0 %v1652
    %1654 = vmatprep.subr.mxu0 0.0
    %v1655 = vand.u32 %v135, 4294901760
    %v1656 = vsub.f32 %v135, %v1655
    %v1657 = vand.u32 %v1656, 4294901760
    %1658 = vmatpush1.msra.mxu0 %v1657
    %1659 = vmatprep.subr.mxu0 0.0
    %v1660 = vand.u32 %v132, 4294901760
    %v1661 = vsub.f32 %v132, %v1660
    %v1662 = vand.u32 %v1661, 4294901760
    %1663 = vmatpush1.msra.mxu0 %v1662
    %1664 = vmatprep.subr.mxu0 0.0
    %v1665 = vand.u32 %v129, 4294901760
    %v1666 = vsub.f32 %v129, %v1665
    %v1667 = vand.u32 %v1666, 4294901760
    %1668 = vmatpush1.msra.mxu0 %v1667
    %1669 = vmatprep.subr.mxu0 0.0
    %v1670 = vand.u32 %v126, 4294901760
    %v1671 = vsub.f32 %v126, %v1670
    %v1672 = vand.u32 %v1671, 4294901760
    %1673 = vmatpush1.msra.mxu0 %v1672
    %1674 = vmatprep.subr.mxu0 0.0
    %v1675 = vand.u32 %v123, 4294901760
    %v1676 = vsub.f32 %v123, %v1675
    %v1677 = vand.u32 %v1676, 4294901760
    %1678 = vmatpush1.msra.mxu0 %v1677
    %1679 = vmatprep.subr.mxu0 0.0
    %v1680 = vand.u32 %v120, 4294901760
    %v1681 = vsub.f32 %v120, %v1680
    %v1682 = vand.u32 %v1681, 4294901760
    %1683 = vmatpush1.msra.mxu0 %v1682
    %1684 = vmatprep.subr.mxu0 0.0
    %1685 = vmatpush2.msra.mxu0 0.0
    %1686 = vmatprep.subr.mxu0 0.0
    %1687 = vmatpush2.msra.mxu0 0.0
    %1688 = vmatprep.subr.mxu0 0.0
    %1689 = vmatpush2.msra.mxu0 0.0
    %1690 = vmatprep.subr.mxu0 0.0
    %1691 = vmatpush2.msra.mxu0 0.0
    %1692 = vmatprep.subr.mxu0 0.0
    %1693 = vmatpush2.msra.mxu0 0.0
    %1694 = vmatprep.subr.mxu0 0.0
    %1695 = vmatpush2.msra.mxu0 0.0
    %1696 = vmatprep.subr.mxu0 0.0
    %1697 = vmatpush2.msra.mxu0 0.0
    %1698 = vmatprep.subr.mxu0 0.0
    %1699 = vmatpush2.msra.mxu0 0.0
    %1700 = vmatprep.subr.mxu0 0.0
    %1701 = vmatpush2.msra.mxu0 0.0
    %1702 = vmatprep.subr.mxu0 0.0
    %1703 = vmatpush2.msra.mxu0 0.0
    %1704 = vmatprep.subr.mxu0 0.0
    %1705 = vmatpush2.msra.mxu0 0.0
    %1706 = vmatprep.subr.mxu0 0.0
    %1707 = vmatpush2.msra.mxu0 0.0
    %1708 = vmatprep.subr.mxu0 0.0
    %1709 = vmatpush2.msra.mxu0 0.0
    %1710 = vmatprep.subr.mxu0 0.0
    %1711 = vmatpush2.msra.mxu0 0.0
    %1712 = vmatprep.subr.mxu0 0.0
    %1713 = vmatpush2.msra.mxu0 0.0
    %1714 = vmatprep.subr.mxu0 0.0
    %1715 = vmatpush2.msra.mxu0 0.0
    %1716 = vmatprep.mubr.f32.mxu0 0.0
    %v1717 = vand.u32 %v50, 4294901760
    %1718 = vmatmul.mubr.f32.gmra.mxu0 %v1717
    %v1719 = vpop.f32.mrf.mxu0
    %v1720 = vadd.f32 %v1585, %v1719
    %v1721 = vpop.f32.mrf.mxu0
    %1722 = vmatprep.mubr.f32.mxu0 0.0
    %v1723 = vand.u32 %v51, 4294901760
    %1724 = vmatmul.mubr.f32.gmra.mxu0 %v1723
    %v1725 = vpop.f32.mrf.mxu0
    %v1726 = vadd.f32 %v1593, %v1725
    %v1727 = vpop.f32.mrf.mxu0
    %1728 = vmatprep.mubr.f32.mxu0 0.0
    %v1729 = vand.u32 %v52, 4294901760
    %1730 = vmatmul.mubr.f32.gmra.mxu0 %v1729
    %v1731 = vpop.f32.mrf.mxu0
    %v1732 = vadd.f32 %v1601, %v1731
    %v1733 = vpop.f32.mrf.mxu0
    %1734 = vdwg.mxu0
    %1735 = vmatprep.subr.mxu0 0.0
    %v1736 = vand.u32 %v165, 4294901760
    %1737 = vmatpush1.msra.mxu0 %v1736
    %1738 = vmatprep.subr.mxu0 0.0
    %v1739 = vand.u32 %v162, 4294901760
    %1740 = vmatpush1.msra.mxu0 %v1739
    %1741 = vmatprep.subr.mxu0 0.0
    %v1742 = vand.u32 %v159, 4294901760
    %1743 = vmatpush1.msra.mxu0 %v1742
    %1744 = vmatprep.subr.mxu0 0.0
    %v1745 = vand.u32 %v156, 4294901760
    %1746 = vmatpush1.msra.mxu0 %v1745
    %1747 = vmatprep.subr.mxu0 0.0
    %v1748 = vand.u32 %v153, 4294901760
    %1749 = vmatpush1.msra.mxu0 %v1748
    %1750 = vmatprep.subr.mxu0 0.0
    %v1751 = vand.u32 %v150, 4294901760
    %1752 = vmatpush1.msra.mxu0 %v1751
    %1753 = vmatprep.subr.mxu0 0.0
    %v1754 = vand.u32 %v147, 4294901760
    %1755 = vmatpush1.msra.mxu0 %v1754
    %1756 = vmatprep.subr.mxu0 0.0
    %v1757 = vand.u32 %v144, 4294901760
    %1758 = vmatpush1.msra.mxu0 %v1757
    %1759 = vmatprep.subr.mxu0 0.0
    %v1760 = vand.u32 %v141, 4294901760
    %1761 = vmatpush1.msra.mxu0 %v1760
    %1762 = vmatprep.subr.mxu0 0.0
    %v1763 = vand.u32 %v138, 4294901760
    %1764 = vmatpush1.msra.mxu0 %v1763
    %1765 = vmatprep.subr.mxu0 0.0
    %v1766 = vand.u32 %v135, 4294901760
    %1767 = vmatpush1.msra.mxu0 %v1766
    %1768 = vmatprep.subr.mxu0 0.0
    %v1769 = vand.u32 %v132, 4294901760
    %1770 = vmatpush1.msra.mxu0 %v1769
    %1771 = vmatprep.subr.mxu0 0.0
    %v1772 = vand.u32 %v129, 4294901760
    %1773 = vmatpush1.msra.mxu0 %v1772
    %1774 = vmatprep.subr.mxu0 0.0
    %v1775 = vand.u32 %v126, 4294901760
    %1776 = vmatpush1.msra.mxu0 %v1775
    %1777 = vmatprep.subr.mxu0 0.0
    %v1778 = vand.u32 %v123, 4294901760
    %1779 = vmatpush1.msra.mxu0 %v1778
    %1780 = vmatprep.subr.mxu0 0.0
    %v1781 = vand.u32 %v120, 4294901760
    %1782 = vmatpush1.msra.mxu0 %v1781
    %1783 = vmatprep.subr.mxu0 0.0
    %1784 = vmatpush2.msra.mxu0 0.0
    %1785 = vmatprep.subr.mxu0 0.0
    %1786 = vmatpush2.msra.mxu0 0.0
    %1787 = vmatprep.subr.mxu0 0.0
    %1788 = vmatpush2.msra.mxu0 0.0
    %1789 = vmatprep.subr.mxu0 0.0
    %1790 = vmatpush2.msra.mxu0 0.0
    %1791 = vmatprep.subr.mxu0 0.0
    %1792 = vmatpush2.msra.mxu0 0.0
    %1793 = vmatprep.subr.mxu0 0.0
    %1794 = vmatpush2.msra.mxu0 0.0
    %1795 = vmatprep.subr.mxu0 0.0
    %1796 = vmatpush2.msra.mxu0 0.0
    %1797 = vmatprep.subr.mxu0 0.0
    %1798 = vmatpush2.msra.mxu0 0.0
    %1799 = vmatprep.subr.mxu0 0.0
    %1800 = vmatpush2.msra.mxu0 0.0
    %1801 = vmatprep.subr.mxu0 0.0
    %1802 = vmatpush2.msra.mxu0 0.0
    %1803 = vmatprep.subr.mxu0 0.0
    %1804 = vmatpush2.msra.mxu0 0.0
    %1805 = vmatprep.subr.mxu0 0.0
    %1806 = vmatpush2.msra.mxu0 0.0
    %1807 = vmatprep.subr.mxu0 0.0
    %1808 = vmatpush2.msra.mxu0 0.0
    %1809 = vmatprep.subr.mxu0 0.0
    %1810 = vmatpush2.msra.mxu0 0.0
    %1811 = vmatprep.subr.mxu0 0.0
    %1812 = vmatpush2.msra.mxu0 0.0
    %1813 = vmatprep.subr.mxu0 0.0
    %1814 = vmatpush2.msra.mxu0 0.0
    %1815 = vmatprep.mubr.f32.mxu0 0.0
    %v1816 = vand.u32 %v50, 4294901760
    %1817 = vmatmul.mubr.f32.gmra.mxu0 %v1816
    %v1818 = vpop.f32.mrf.mxu0
    %v1819 = vadd.f32 %v1720, %v1818
    %v1820 = vpop.f32.mrf.mxu0
    %1821 = vmatprep.mubr.f32.mxu0 0.0
    %v1822 = vand.u32 %v51, 4294901760
    %1823 = vmatmul.mubr.f32.gmra.mxu0 %v1822
    %v1824 = vpop.f32.mrf.mxu0
    %v1825 = vadd.f32 %v1726, %v1824
    %v1826 = vpop.f32.mrf.mxu0
    %1827 = vmatprep.mubr.f32.mxu0 0.0
    %v1828 = vand.u32 %v52, 4294901760
    %1829 = vmatmul.mubr.f32.gmra.mxu0 %v1828
    %v1830 = vpop.f32.mrf.mxu0
    %v1831 = vadd.f32 %v1732, %v1830
    %v1832 = vpop.f32.mrf.mxu0
    %1833 = vdwg.mxu0
    %v1834 = vld [vmem:[%s5] sm:$0x1]
    %v1835 = vld [vmem:[%s6] sm:$0x1]
    %v1836 = vld [vmem:[%s7] sm:$0x1]
    %v1837 = vadd.f32 %v1091, %v1099
    %v1839 = vlaneseq
    %v1840 = vshrl.u32 %v1839, 7
    %v1841 = vsub.s32 0, %v1840
    %v1842 = vrot.slane %v1834, %v1841
    %v1844 = vadd.f32 %v1837, %v1842
    %v1845 = vrot.slane %v1844, 4
    %v1846 = vadd.f32 %v1844, %v1845
    %v1847 = vrot.slane %v1846, 2
    %v1848 = vadd.f32 %v1846, %v1847
    %v1849 = vrot.slane %v1848, 1
    %v1850 = vadd.f32 %v1848, %v1849
    %v1851 = vrcp.pop 8.0
    %v1852 = vmul.f32 %v1850, %v1851
    %v1853 = vsub.f32 %v1844, %v1852
    %v1854 = vmul.f32 %v1853, %v1853
    %v1855 = vrot.slane %v1854, 4
    %v1856 = vadd.f32 %v1854, %v1855
    %v1857 = vrot.slane %v1856, 2
    %v1858 = vadd.f32 %v1856, %v1857
    %v1859 = vrot.slane %v1858, 1
    %v1860 = vadd.f32 %v1858, %v1859
    %v1861 = vmul.f32 %v1860, %v1851
    %v1862 = vadd.f32 %v1861, 1e-05
    %v1863 = vrsqrt.pop %v1862
    %v1864 = vmul.f32 %v1853, %v1863
    %v1866 = vlaneseq
    %v1867 = vshrl.u32 %v1866, 7
    %v1868 = vsub.s32 0, %v1867
    %v1869 = vrot.slane %v1835, %v1868
    %v1871 = vmul.f32 %v1864, %v1869
    %v1873 = vlaneseq
    %v1874 = vshrl.u32 %v1873, 7
    %v1875 = vsub.s32 0, %v1874
    %v1876 = vrot.slane %v1836, %v1875
    %v1878 = vadd.f32 %v1871, %v1876
    %v1879 = vadd.f32 %v1091, %v1105
    %v1880 = vadd.f32 %v1879, %v1842
    %v1881 = vrot.slane %v1880, 4
    %v1882 = vadd.f32 %v1880, %v1881
    %v1883 = vrot.slane %v1882, 2
    %v1884 = vadd.f32 %v1882, %v1883
    %v1885 = vrot.slane %v1884, 1
    %v1886 = vadd.f32 %v1884, %v1885
    %v1887 = vmul.f32 %v1886, %v1851
    %v1888 = vsub.f32 %v1880, %v1887
    %v1889 = vmul.f32 %v1888, %v1888
    %v1890 = vrot.slane %v1889, 4
    %v1891 = vadd.f32 %v1889, %v1890
    %v1892 = vrot.slane %v1891, 2
    %v1893 = vadd.f32 %v1891, %v1892
    %v1894 = vrot.slane %v1893, 1
    %v1895 = vadd.f32 %v1893, %v1894
    %v1896 = vmul.f32 %v1895, %v1851
    %v1897 = vadd.f32 %v1896, 1e-05
    %v1898 = vrsqrt.pop %v1897
    %v1899 = vmul.f32 %v1888, %v1898
    %v1900 = vmul.f32 %v1899, %v1869
    %v1901 = vadd.f32 %v1900, %v1876
    %v1902 = vadd.f32 %v1097, %v1105
    %v1903 = vadd.f32 %v1902, %v1842
    %v1904 = vrot.slane %v1903, 4
    %v1905 = vadd.f32 %v1903, %v1904
    %v1906 = vrot.slane %v1905, 2
    %v1907 = vadd.f32 %v1905, %v1906
    %v1908 = vrot.slane %v1907, 1
    %v1909 = vadd.f32 %v1907, %v1908
    %v1910 = vmul.f32 %v1909, %v1851
    %v1911 = vsub.f32 %v1903, %v1910
    %v1912 = vmul.f32 %v1911, %v1911
    %v1913 = vrot.slane %v1912, 4
    %v1914 = vadd.f32 %v1912, %v1913
    %v1915 = vrot.slane %v1914, 2
    %v1916 = vadd.f32 %v1914, %v1915
    %v1917 = vrot.slane %v1916, 1
    %v1918 = vadd.f32 %v1916, %v1917
    %v1919 = vmul.f32 %v1918, %v1851
    %v1920 = vadd.f32 %v1919, 1e-05
    %v1921 = vrsqrt.pop %v1920
    %v1922 = vmul.f32 %v1911, %v1921
    %v1923 = vmul.f32 %v1922, %v1869
    %v1924 = vadd.f32 %v1923, %v1876
    %v1925 = vmul.f32 %v50, %v51
    %1926 = vadd.xlane.f32.xlu0 %v1925
    %v1927 = vpop.xlane.xlu0 %1926
    %v1928 = vmul.f32 %v50, %v52
    %1929 = vadd.xlane.f32.xlu0 %v1928
    %v1930 = vpop.xlane.xlu0 %1929
    %v1931 = vmul.f32 %v51, %v52
    %1932 = vadd.xlane.f32.xlu0 %v1931
    %v1933 = vpop.xlane.xlu0 %1932
    %v1934 = vadd.f32 %v92, %v94
    %v1935 = vadd.f32 %v1927, 0.5
    %v1936 = vrcp.pop %v1935
    %v1937 = vmul.f32 %v1934, %v1936
    %v1938 = vadd.f32 %v92, %v96
    %v1939 = vadd.f32 %v1930, 0.5
    %v1940 = vrcp.pop %v1939
    %v1941 = vmul.f32 %v1938, %v1940
    %v1942 = vadd.f32 %v94, %v96
    %v1943 = vadd.f32 %v1933, 0.5
    %v1944 = vrcp.pop %v1943
    %v1945 = vmul.f32 %v1942, %v1944
    %v1946 = vadd.f32 %v1941, %v1945
    %v1947 = vrcp.pop %v1946
    %v1948 = vmul.f32 %v1937, %v1947
    %v1949 = vadd.f32 %v1937, %v1945
    %v1950 = vrcp.pop %v1949
    %v1951 = vmul.f32 %v1941, %v1950
    %v1952 = vadd.f32 %v1937, %v1941
    %v1953 = vrcp.pop %v1952
    %v1954 = vmul.f32 %v1945, %v1953
    %1956 = vset.pattern.permute.xlu0 0
    %1957 = vperm.xlu0 %1956, %v1948
    %v1958 = vpop.permute.xlu0 %1957
    %v1960 = vmul.f32 %v1958, %v1878
    %1962 = vset.pattern.permute.xlu0 0
    %1963 = vperm.xlu0 %1962, %v1951
    %v1964 = vpop.permute.xlu0 %1963
    %v1966 = vmul.f32 %v1964, %v1901
    %v1967 = vadd.f32 %v1960, %v1966
    %1969 = vset.pattern.permute.xlu0 0
    %1970 = vperm.xlu0 %1969, %v1954
    %v1971 = vpop.permute.xlu0 %1970
    %v1973 = vmul.f32 %v1971, %v1924
    %v1974 = vadd.f32 %v1967, %v1973
    %1975 = vst [vmem:[#allocation2] sm:$0xff] %v1878
    %1976 = vst [vmem:[#allocation2 + $0x8] sm:$0xff] %v1901
    %1977 = vst [vmem:[#allocation2 + $0x10] sm:$0xff] %v1924
    %v1978 = vld [vmem:[#allocation2] sm:$0xff]
    %v1979 = vld [vmem:[#allocation2 + $0x8] sm:$0xff]
    %v1980 = vld [vmem:[#allocation2 + $0x10] sm:$0xff]
    %v1981 = vld [vmem:[%s4] sm:$0xff]
    %v1982 = vld [vmem:[%s4 + $0x8] sm:$0xff]
    %v1983 = vld [vmem:[%s4 + $0x10] sm:$0xff]
    %v1984 = vld [vmem:[%s4 + $0x18] sm:$0xff]
    %v1985 = vld [vmem:[%s4 + $0x20] sm:$0xff]
    %v1986 = vld [vmem:[%s4 + $0x28] sm:$0xff]
    %v1987 = vld [vmem:[%s4 + $0x30] sm:$0xff]
    %v1988 = vld [vmem:[%s4 + $0x38] sm:$0xff]
    %v1989 = vld [vmem:[%s4 + $0x40] sm:$0xff]
    %v1990 = vld [vmem:[%s4 + $0x48] sm:$0xff]
    %v1991 = vld [vmem:[%s4 + $0x50] sm:$0xff]
    %v1992 = vld [vmem:[%s4 + $0x58] sm:$0xff]
    %v1993 = vld [vmem:[%s4 + $0x60] sm:$0xff]
    %v1994 = vld [vmem:[%s4 + $0x68] sm:$0xff]
    %v1995 = vld [vmem:[%s4 + $0x70] sm:$0xff]
    %v1996 = vld [vmem:[%s4 + $0x78] sm:$0xff]
    %v1997 = vld [vmem:[%s4 + $0x80] sm:$0xff]
    %v1998 = vld [vmem:[%s4 + $0x88] sm:$0xff]
    %v1999 = vld [vmem:[%s4 + $0x90] sm:$0xff]
    %v2000 = vld [vmem:[%s4 + $0x98] sm:$0xff]
    %v2001 = vld [vmem:[%s4 + $0xa0] sm:$0xff]
    %v2002 = vld [vmem:[%s4 + $0xa8] sm:$0xff]
    %v2003 = vld [vmem:[%s4 + $0xb0] sm:$0xff]
    %v2004 = vld [vmem:[%s4 + $0xb8] sm:$0xff]
    %v2005 = vld [vmem:[%s4 + $0xc0] sm:$0xff]
    %v2006 = vld [vmem:[%s4 + $0xc8] sm:$0xff]
    %v2007 = vld [vmem:[%s4 + $0xd0] sm:$0xff]
    %v2008 = vld [vmem:[%s4 + $0xd8] sm:$0xff]
    %v2009 = vld [vmem:[%s4 + $0xe0] sm:$0xff]
    %v2010 = vld [vmem:[%s4 + $0xe8] sm:$0xff]
    %v2011 = vld [vmem:[%s4 + $0xf0] sm:$0xff]
    %v2012 = vld [vmem:[%s4 + $0xf8] sm:$0xff]
    %v2013 = vld [vmem:[%s4 + $0x100] sm:$0xff]
    %v2014 = vld [vmem:[%s4 + $0x108] sm:$0xff]
    %v2015 = vld [vmem:[%s4 + $0x110] sm:$0xff]
    %v2016 = vld [vmem:[%s4 + $0x118] sm:$0xff]
    %v2017 = vld [vmem:[%s4 + $0x120] sm:$0xff]
    %v2018 = vld [vmem:[%s4 + $0x128] sm:$0xff]
    %v2019 = vld [vmem:[%s4 + $0x130] sm:$0xff]
    %v2020 = vld [vmem:[%s4 + $0x138] sm:$0xff]
    %v2021 = vld [vmem:[%s4 + $0x140] sm:$0xff]
    %v2022 = vld [vmem:[%s4 + $0x148] sm:$0xff]
    %v2023 = vld [vmem:[%s4 + $0x150] sm:$0xff]
    %v2024 = vld [vmem:[%s4 + $0x158] sm:$0xff]
    %v2025 = vld [vmem:[%s4 + $0x160] sm:$0xff]
    %v2026 = vld [vmem:[%s4 + $0x168] sm:$0xff]
    %v2027 = vld [vmem:[%s4 + $0x170] sm:$0xff]
    %v2028 = vld [vmem:[%s4 + $0x178] sm:$0xff]
    %v2029 = vand.u32 %v2027, 4294901760
    %2030 = vmatprep.subr.mxu0 %v2029
    %v2031 = vand.u32 %v2026, 4294901760
    %2032 = vmatpush1.msra.mxu0 %v2031
    %v2033 = vand.u32 %v2024, 4294901760
    %2034 = vmatprep.subr.mxu0 %v2033
    %v2035 = vand.u32 %v2023, 4294901760
    %2036 = vmatpush1.msra.mxu0 %v2035
    %v2037 = vand.u32 %v2021, 4294901760
    %2038 = vmatprep.subr.mxu0 %v2037
    %v2039 = vand.u32 %v2020, 4294901760
    %2040 = vmatpush1.msra.mxu0 %v2039
    %v2041 = vand.u32 %v2018, 4294901760
    %2042 = vmatprep.subr.mxu0 %v2041
    %v2043 = vand.u32 %v2017, 4294901760
    %2044 = vmatpush1.msra.mxu0 %v2043
    %v2045 = vand.u32 %v2015, 4294901760
    %2046 = vmatprep.subr.mxu0 %v2045
    %v2047 = vand.u32 %v2014, 4294901760
    %2048 = vmatpush1.msra.mxu0 %v2047
    %v2049 = vand.u32 %v2012, 4294901760
    %2050 = vmatprep.subr.mxu0 %v2049
    %v2051 = vand.u32 %v2011, 4294901760
    %2052 = vmatpush1.msra.mxu0 %v2051
    %v2053 = vand.u32 %v2009, 4294901760
    %2054 = vmatprep.subr.mxu0 %v2053
    %v2055 = vand.u32 %v2008, 4294901760
    %2056 = vmatpush1.msra.mxu0 %v2055
    %v2057 = vand.u32 %v2006, 4294901760
    %2058 = vmatprep.subr.mxu0 %v2057
    %v2059 = vand.u32 %v2005, 4294901760
    %2060 = vmatpush1.msra.mxu0 %v2059
    %v2061 = vand.u32 %v2003, 4294901760
    %2062 = vmatprep.subr.mxu0 %v2061
    %v2063 = vand.u32 %v2002, 4294901760
    %2064 = vmatpush1.msra.mxu0 %v2063
    %v2065 = vand.u32 %v2000, 4294901760
    %2066 = vmatprep.subr.mxu0 %v2065
    %v2067 = vand.u32 %v1999, 4294901760
    %2068 = vmatpush1.msra.mxu0 %v2067
    %v2069 = vand.u32 %v1997, 4294901760
    %2070 = vmatprep.subr.mxu0 %v2069
    %v2071 = vand.u32 %v1996, 4294901760
    %2072 = vmatpush1.msra.mxu0 %v2071
    %v2073 = vand.u32 %v1994, 4294901760
    %2074 = vmatprep.subr.mxu0 %v2073
    %v2075 = vand.u32 %v1993, 4294901760
    %2076 = vmatpush1.msra.mxu0 %v2075
    %v2077 = vand.u32 %v1991, 4294901760
    %2078 = vmatprep.subr.mxu0 %v2077
    %v2079 = vand.u32 %v1990, 4294901760
    %2080 = vmatpush1.msra.mxu0 %v2079
    %v2081 = vand.u32 %v1988, 4294901760
    %2082 = vmatprep.subr.mxu0 %v2081
    %v2083 = vand.u32 %v1987, 4294901760
    %2084 = vmatpush1.msra.mxu0 %v2083
    %v2085 = vand.u32 %v1985, 4294901760
    %2086 = vmatprep.subr.mxu0 %v2085
    %v2087 = vand.u32 %v1984, 4294901760
    %2088 = vmatpush1.msra.mxu0 %v2087
    %v2089 = vand.u32 %v1982, 4294901760
    %2090 = vmatprep.subr.mxu0 %v2089
    %v2091 = vand.u32 %v1981, 4294901760
    %2092 = vmatpush1.msra.mxu0 %v2091
    %2093 = vmatprep.subr.mxu0 0.0
    %2094 = vmatpush2.msra.mxu0 0.0
    %2095 = vmatprep.subr.mxu0 0.0
    %2096 = vmatpush2.msra.mxu0 0.0
    %2097 = vmatprep.subr.mxu0 0.0
    %2098 = vmatpush2.msra.mxu0 0.0
    %2099 = vmatprep.subr.mxu0 0.0
    %2100 = vmatpush2.msra.mxu0 0.0
    %2101 = vmatprep.subr.mxu0 0.0
    %2102 = vmatpush2.msra.mxu0 0.0
    %2103 = vmatprep.subr.mxu0 0.0
    %2104 = vmatpush2.msra.mxu0 0.0
    %2105 = vmatprep.subr.mxu0 0.0
    %2106 = vmatpush2.msra.mxu0 0.0
    %2107 = vmatprep.subr.mxu0 0.0
    %2108 = vmatpush2.msra.mxu0 0.0
    %2109 = vmatprep.subr.mxu0 0.0
    %2110 = vmatpush2.msra.mxu0 0.0
    %2111 = vmatprep.subr.mxu0 0.0
    %2112 = vmatpush2.msra.mxu0 0.0
    %2113 = vmatprep.subr.mxu0 0.0
    %2114 = vmatpush2.msra.mxu0 0.0
    %2115 = vmatprep.subr.mxu0 0.0
    %2116 = vmatpush2.msra.mxu0 0.0
    %2117 = vmatprep.subr.mxu0 0.0
    %2118 = vmatpush2.msra.mxu0 0.0
    %2119 = vmatprep.subr.mxu0 0.0
    %2120 = vmatpush2.msra.mxu0 0.0
    %2121 = vmatprep.subr.mxu0 0.0
    %2122 = vmatpush2.msra.mxu0 0.0
    %2123 = vmatprep.subr.mxu0 0.0
    %2124 = vmatpush2.msra.mxu0 0.0
    %2125 = vmatprep.mubr.f32.mxu0 0.0
    %v2126 = vand.u32 %v1978, 4294901760
    %v2127 = vsub.f32 %v1978, %v2126
    %v2128 = vand.u32 %v2127, 4294901760
    %v2129 = vsub.f32 %v2127, %v2128
    %v2130 = vand.u32 %v2129, 4294901760
    %2131 = vmatmul.mubr.f32.gmra.mxu0 %v2130
    %v2132 = vpop.f32.mrf.mxu0
    %v2133 = vadd.f32 0.0, %v2132
    %v2134 = vpop.f32.mrf.mxu0
    %2135 = vmatprep.mubr.f32.mxu0 0.0
    %v2136 = vand.u32 %v1979, 4294901760
    %v2137 = vsub.f32 %v1979, %v2136
    %v2138 = vand.u32 %v2137, 4294901760
    %v2139 = vsub.f32 %v2137, %v2138
    %v2140 = vand.u32 %v2139, 4294901760
    %2141 = vmatmul.mubr.f32.gmra.mxu0 %v2140
    %v2142 = vpop.f32.mrf.mxu0
    %v2143 = vadd.f32 0.0, %v2142
    %v2144 = vpop.f32.mrf.mxu0
    %v2145 = vadd.f32 0.0, %v2144
    %2146 = vmatprep.mubr.f32.mxu0 0.0
    %v2147 = vand.u32 %v1980, 4294901760
    %v2148 = vsub.f32 %v1980, %v2147
    %v2149 = vand.u32 %v2148, 4294901760
    %v2150 = vsub.f32 %v2148, %v2149
    %v2151 = vand.u32 %v2150, 4294901760
    %2152 = vmatmul.mubr.f32.gmra.mxu0 %v2151
    %v2153 = vpop.f32.mrf.mxu0
    %v2154 = vpop.f32.mrf.mxu0
    %v2155 = vadd.f32 0.0, %v2154
    %2156 = vdwg.mxu0
    %v2157 = vand.u32 %v2027, 4294901760
    %v2158 = vsub.f32 %v2027, %v2157
    %v2159 = vand.u32 %v2158, 4294901760
    %v2160 = vsub.f32 %v2158, %v2159
    %v2161 = vand.u32 %v2160, 4294901760
    %2162 = vmatprep.subr.mxu0 %v2161
    %v2163 = vand.u32 %v2026, 4294901760
    %v2164 = vsub.f32 %v2026, %v2163
    %v2165 = vand.u32 %v2164, 4294901760
    %v2166 = vsub.f32 %v2164, %v2165
    %v2167 = vand.u32 %v2166, 4294901760
    %2168 = vmatpush1.msra.mxu0 %v2167
    %v2169 = vand.u32 %v2024, 4294901760
    %v2170 = vsub.f32 %v2024, %v2169
    %v2171 = vand.u32 %v2170, 4294901760
    %v2172 = vsub.f32 %v2170, %v2171
    %v2173 = vand.u32 %v2172, 4294901760
    %2174 = vmatprep.subr.mxu0 %v2173
    %v2175 = vand.u32 %v2023, 4294901760
    %v2176 = vsub.f32 %v2023, %v2175
    %v2177 = vand.u32 %v2176, 4294901760
    %v2178 = vsub.f32 %v2176, %v2177
    %v2179 = vand.u32 %v2178, 4294901760
    %2180 = vmatpush1.msra.mxu0 %v2179
    %v2181 = vand.u32 %v2021, 4294901760
    %v2182 = vsub.f32 %v2021, %v2181
    %v2183 = vand.u32 %v2182, 4294901760
    %v2184 = vsub.f32 %v2182, %v2183
    %v2185 = vand.u32 %v2184, 4294901760
    %2186 = vmatprep.subr.mxu0 %v2185
    %v2187 = vand.u32 %v2020, 4294901760
    %v2188 = vsub.f32 %v2020, %v2187
    %v2189 = vand.u32 %v2188, 4294901760
    %v2190 = vsub.f32 %v2188, %v2189
    %v2191 = vand.u32 %v2190, 4294901760
    %2192 = vmatpush1.msra.mxu0 %v2191
    %v2193 = vand.u32 %v2018, 4294901760
    %v2194 = vsub.f32 %v2018, %v2193
    %v2195 = vand.u32 %v2194, 4294901760
    %v2196 = vsub.f32 %v2194, %v2195
    %v2197 = vand.u32 %v2196, 4294901760
    %2198 = vmatprep.subr.mxu0 %v2197
    %v2199 = vand.u32 %v2017, 4294901760
    %v2200 = vsub.f32 %v2017, %v2199
    %v2201 = vand.u32 %v2200, 4294901760
    %v2202 = vsub.f32 %v2200, %v2201
    %v2203 = vand.u32 %v2202, 4294901760
    %2204 = vmatpush1.msra.mxu0 %v2203
    %v2205 = vand.u32 %v2015, 4294901760
    %v2206 = vsub.f32 %v2015, %v2205
    %v2207 = vand.u32 %v2206, 4294901760
    %v2208 = vsub.f32 %v2206, %v2207
    %v2209 = vand.u32 %v2208, 4294901760
    %2210 = vmatprep.subr.mxu0 %v2209
    %v2211 = vand.u32 %v2014, 4294901760
    %v2212 = vsub.f32 %v2014, %v2211
    %v2213 = vand.u32 %v2212, 4294901760
    %v2214 = vsub.f32 %v2212, %v2213
    %v2215 = vand.u32 %v2214, 4294901760
    %2216 = vmatpush1.msra.mxu0 %v2215
    %v2217 = vand.u32 %v2012, 4294901760
    %v2218 = vsub.f32 %v2012, %v2217
    %v2219 = vand.u32 %v2218, 4294901760
    %v2220 = vsub.f32 %v2218, %v2219
    %v2221 = vand.u32 %v2220, 4294901760
    %2222 = vmatprep.subr.mxu0 %v2221
    %v2223 = vand.u32 %v2011, 4294901760
    %v2224 = vsub.f32 %v2011, %v2223
    %v2225 = vand.u32 %v2224, 4294901760
    %v2226 = vsub.f32 %v2224, %v2225
    %v2227 = vand.u32 %v2226, 4294901760
    %2228 = vmatpush1.msra.mxu0 %v2227
    %v2229 = vand.u32 %v2009, 4294901760
    %v2230 = vsub.f32 %v2009, %v2229
    %v2231 = vand.u32 %v2230, 4294901760
    %v2232 = vsub.f32 %v2230, %v2231
    %v2233 = vand.u32 %v2232, 4294901760
    %2234 = vmatprep.subr.mxu0 %v2233
    %v2235 = vand.u32 %v2008, 4294901760
    %v2236 = vsub.f32 %v2008, %v2235
    %v2237 = vand.u32 %v2236, 4294901760
    %v2238 = vsub.f32 %v2236, %v2237
    %v2239 = vand.u32 %v2238, 4294901760
    %2240 = vmatpush1.msra.mxu0 %v2239
    %v2241 = vand.u32 %v2006, 4294901760
    %v2242 = vsub.f32 %v2006, %v2241
    %v2243 = vand.u32 %v2242, 4294901760
    %v2244 = vsub.f32 %v2242, %v2243
    %v2245 = vand.u32 %v2244, 4294901760
    %2246 = vmatprep.subr.mxu0 %v2245
    %v2247 = vand.u32 %v2005, 4294901760
    %v2248 = vsub.f32 %v2005, %v2247
    %v2249 = vand.u32 %v2248, 4294901760
    %v2250 = vsub.f32 %v2248, %v2249
    %v2251 = vand.u32 %v2250, 4294901760
    %2252 = vmatpush1.msra.mxu0 %v2251
    %v2253 = vand.u32 %v2003, 4294901760
    %v2254 = vsub.f32 %v2003, %v2253
    %v2255 = vand.u32 %v2254, 4294901760
    %v2256 = vsub.f32 %v2254, %v2255
    %v2257 = vand.u32 %v2256, 4294901760
    %2258 = vmatprep.subr.mxu0 %v2257
    %v2259 = vand.u32 %v2002, 4294901760
    %v2260 = vsub.f32 %v2002, %v2259
    %v2261 = vand.u32 %v2260, 4294901760
    %v2262 = vsub.f32 %v2260, %v2261
    %v2263 = vand.u32 %v2262, 4294901760
    %2264 = vmatpush1.msra.mxu0 %v2263
    %v2265 = vand.u32 %v2000, 4294901760
    %v2266 = vsub.f32 %v2000, %v2265
    %v2267 = vand.u32 %v2266, 4294901760
    %v2268 = vsub.f32 %v2266, %v2267
    %v2269 = vand.u32 %v2268, 4294901760
    %2270 = vmatprep.subr.mxu0 %v2269
    %v2271 = vand.u32 %v1999, 4294901760
    %v2272 = vsub.f32 %v1999, %v2271
    %v2273 = vand.u32 %v2272, 4294901760
    %v2274 = vsub.f32 %v2272, %v2273
    %v2275 = vand.u32 %v2274, 4294901760
    %2276 = vmatpush1.msra.mxu0 %v2275
    %v2277 = vand.u32 %v1997, 4294901760
    %v2278 = vsub.f32 %v1997, %v2277
    %v2279 = vand.u32 %v2278, 4294901760
    %v2280 = vsub.f32 %v2278, %v2279
    %v2281 = vand.u32 %v2280, 4294901760
    %2282 = vmatprep.subr.mxu0 %v2281
    %v2283 = vand.u32 %v1996, 4294901760
    %v2284 = vsub.f32 %v1996, %v2283
    %v2285 = vand.u32 %v2284, 4294901760
    %v2286 = vsub.f32 %v2284, %v2285
    %v2287 = vand.u32 %v2286, 4294901760
    %2288 = vmatpush1.msra.mxu0 %v2287
    %v2289 = vand.u32 %v1994, 4294901760
    %v2290 = vsub.f32 %v1994, %v2289
    %v2291 = vand.u32 %v2290, 4294901760
    %v2292 = vsub.f32 %v2290, %v2291
    %v2293 = vand.u32 %v2292, 4294901760
    %2294 = vmatprep.subr.mxu0 %v2293
    %v2295 = vand.u32 %v1993, 4294901760
    %v2296 = vsub.f32 %v1993, %v2295
    %v2297 = vand.u32 %v2296, 4294901760
    %v2298 = vsub.f32 %v2296, %v2297
    %v2299 = vand.u32 %v2298, 4294901760
    %2300 = vmatpush1.msra.mxu0 %v2299
    %v2301 = vand.u32 %v1991, 4294901760
    %v2302 = vsub.f32 %v1991, %v2301
    %v2303 = vand.u32 %v2302, 4294901760
    %v2304 = vsub.f32 %v2302, %v2303
    %v2305 = vand.u32 %v2304, 4294901760
    %2306 = vmatprep.subr.mxu0 %v2305
    %v2307 = vand.u32 %v1990, 4294901760
    %v2308 = vsub.f32 %v1990, %v2307
    %v2309 = vand.u32 %v2308, 4294901760
    %v2310 = vsub.f32 %v2308, %v2309
    %v2311 = vand.u32 %v2310, 4294901760
    %2312 = vmatpush1.msra.mxu0 %v2311
    %v2313 = vand.u32 %v1988, 4294901760
    %v2314 = vsub.f32 %v1988, %v2313
    %v2315 = vand.u32 %v2314, 4294901760
    %v2316 = vsub.f32 %v2314, %v2315
    %v2317 = vand.u32 %v2316, 4294901760
    %2318 = vmatprep.subr.mxu0 %v2317
    %v2319 = vand.u32 %v1987, 4294901760
    %v2320 = vsub.f32 %v1987, %v2319
    %v2321 = vand.u32 %v2320, 4294901760
    %v2322 = vsub.f32 %v2320, %v2321
    %v2323 = vand.u32 %v2322, 4294901760
    %2324 = vmatpush1.msra.mxu0 %v2323
    %v2325 = vand.u32 %v1985, 4294901760
    %v2326 = vsub.f32 %v1985, %v2325
    %v2327 = vand.u32 %v2326, 4294901760
    %v2328 = vsub.f32 %v2326, %v2327
    %v2329 = vand.u32 %v2328, 4294901760
    %2330 = vmatprep.subr.mxu0 %v2329
    %v2331 = vand.u32 %v1984, 4294901760
    %v2332 = vsub.f32 %v1984, %v2331
    %v2333 = vand.u32 %v2332, 4294901760
    %v2334 = vsub.f32 %v2332, %v2333
    %v2335 = vand.u32 %v2334, 4294901760
    %2336 = vmatpush1.msra.mxu0 %v2335
    %v2337 = vand.u32 %v1982, 4294901760
    %v2338 = vsub.f32 %v1982, %v2337
    %v2339 = vand.u32 %v2338, 4294901760
    %v2340 = vsub.f32 %v2338, %v2339
    %v2341 = vand.u32 %v2340, 4294901760
    %2342 = vmatprep.subr.mxu0 %v2341
    %v2343 = vand.u32 %v1981, 4294901760
    %v2344 = vsub.f32 %v1981, %v2343
    %v2345 = vand.u32 %v2344, 4294901760
    %v2346 = vsub.f32 %v2344, %v2345
    %v2347 = vand.u32 %v2346, 4294901760
    %2348 = vmatpush1.msra.mxu0 %v2347
    %2349 = vmatprep.subr.mxu0 0.0
    %2350 = vmatpush2.msra.mxu0 0.0
    %2351 = vmatprep.subr.mxu0 0.0
    %2352 = vmatpush2.msra.mxu0 0.0
    %2353 = vmatprep.subr.mxu0 0.0
    %2354 = vmatpush2.msra.mxu0 0.0
    %2355 = vmatprep.subr.mxu0 0.0
    %2356 = vmatpush2.msra.mxu0 0.0
    %2357 = vmatprep.subr.mxu0 0.0
    %2358 = vmatpush2.msra.mxu0 0.0
    %2359 = vmatprep.subr.mxu0 0.0
    %2360 = vmatpush2.msra.mxu0 0.0
    %2361 = vmatprep.subr.mxu0 0.0
    %2362 = vmatpush2.msra.mxu0 0.0
    %2363 = vmatprep.subr.mxu0 0.0
    %2364 = vmatpush2.msra.mxu0 0.0
    %2365 = vmatprep.subr.mxu0 0.0
    %2366 = vmatpush2.msra.mxu0 0.0
    %2367 = vmatprep.subr.mxu0 0.0
    %2368 = vmatpush2.msra.mxu0 0.0
    %2369 = vmatprep.subr.mxu0 0.0
    %2370 = vmatpush2.msra.mxu0 0.0
    %2371 = vmatprep.subr.mxu0 0.0
    %2372 = vmatpush2.msra.mxu0 0.0
    %2373 = vmatprep.subr.mxu0 0.0
    %2374 = vmatpush2.msra.mxu0 0.0
    %2375 = vmatprep.subr.mxu0 0.0
    %2376 = vmatpush2.msra.mxu0 0.0
    %2377 = vmatprep.subr.mxu0 0.0
    %2378 = vmatpush2.msra.mxu0 0.0
    %2379 = vmatprep.subr.mxu0 0.0
    %2380 = vmatpush2.msra.mxu0 0.0
    %2381 = vmatprep.mubr.f32.mxu0 0.0
    %v2382 = vand.u32 %v1978, 4294901760
    %2383 = vmatmul.mubr.f32.gmra.mxu0 %v2382
    %v2384 = vpop.f32.mrf.mxu0
    %v2385 = vadd.f32 %v2133, %v2384
    %v2386 = vpop.f32.mrf.mxu0
    %2387 = vmatprep.mubr.f32.mxu0 0.0
    %v2388 = vand.u32 %v1979, 4294901760
    %2389 = vmatmul.mubr.f32.gmra.mxu0 %v2388
    %v2390 = vpop.f32.mrf.mxu0
    %v2391 = vadd.f32 %v2143, %v2390
    %v2392 = vpop.f32.mrf.mxu0
    %v2393 = vadd.f32 %v2145, %v2392
    %2394 = vmatprep.mubr.f32.mxu0 0.0
    %v2395 = vand.u32 %v1980, 4294901760
    %2396 = vmatmul.mubr.f32.gmra.mxu0 %v2395
    %v2397 = vpop.f32.mrf.mxu0
    %v2398 = vpop.f32.mrf.mxu0
    %v2399 = vadd.f32 %v2155, %v2398
    %2400 = vdwg.mxu0
    %v2401 = vand.u32 %v2027, 4294901760
    %v2402 = vsub.f32 %v2027, %v2401
    %2403 = vmatprep.subr.mxu0 %v2402
    %v2404 = vand.u32 %v2026, 4294901760
    %v2405 = vsub.f32 %v2026, %v2404
    %2406 = vmatpush1.msra.mxu0 %v2405
    %v2407 = vand.u32 %v2024, 4294901760
    %v2408 = vsub.f32 %v2024, %v2407
    %2409 = vmatprep.subr.mxu0 %v2408
    %v2410 = vand.u32 %v2023, 4294901760
    %v2411 = vsub.f32 %v2023, %v2410
    %2412 = vmatpush1.msra.mxu0 %v2411
    %v2413 = vand.u32 %v2021, 4294901760
    %v2414 = vsub.f32 %v2021, %v2413
    %2415 = vmatprep.subr.mxu0 %v2414
    %v2416 = vand.u32 %v2020, 4294901760
    %v2417 = vsub.f32 %v2020, %v2416
    %2418 = vmatpush1.msra.mxu0 %v2417
    %v2419 = vand.u32 %v2018, 4294901760
    %v2420 = vsub.f32 %v2018, %v2419
    %2421 = vmatprep.subr.mxu0 %v2420
    %v2422 = vand.u32 %v2017, 4294901760
    %v2423 = vsub.f32 %v2017, %v2422
    %2424 = vmatpush1.msra.mxu0 %v2423
    %v2425 = vand.u32 %v2015, 4294901760
    %v2426 = vsub.f32 %v2015, %v2425
    %2427 = vmatprep.subr.mxu0 %v2426
    %v2428 = vand.u32 %v2014, 4294901760
    %v2429 = vsub.f32 %v2014, %v2428
    %2430 = vmatpush1.msra.mxu0 %v2429
    %v2431 = vand.u32 %v2012, 4294901760
    %v2432 = vsub.f32 %v2012, %v2431
    %2433 = vmatprep.subr.mxu0 %v2432
    %v2434 = vand.u32 %v2011, 4294901760
    %v2435 = vsub.f32 %v2011, %v2434
    %2436 = vmatpush1.msra.mxu0 %v2435
    %v2437 = vand.u32 %v2009, 4294901760
    %v2438 = vsub.f32 %v2009, %v2437
    %2439 = vmatprep.subr.mxu0 %v2438
    %v2440 = vand.u32 %v2008, 4294901760
    %v2441 = vsub.f32 %v2008, %v2440
    %2442 = vmatpush1.msra.mxu0 %v2441
    %v2443 = vand.u32 %v2006, 4294901760
    %v2444 = vsub.f32 %v2006, %v2443
    %2445 = vmatprep.subr.mxu0 %v2444
    %v2446 = vand.u32 %v2005, 4294901760
    %v2447 = vsub.f32 %v2005, %v2446
    %2448 = vmatpush1.msra.mxu0 %v2447
    %v2449 = vand.u32 %v2003, 4294901760
    %v2450 = vsub.f32 %v2003, %v2449
    %2451 = vmatprep.subr.mxu0 %v2450
    %v2452 = vand.u32 %v2002, 4294901760
    %v2453 = vsub.f32 %v2002, %v2452
    %2454 = vmatpush1.msra.mxu0 %v2453
    %v2455 = vand.u32 %v2000, 4294901760
    %v2456 = vsub.f32 %v2000, %v2455
    %2457 = vmatprep.subr.mxu0 %v2456
    %v2458 = vand.u32 %v1999, 4294901760
    %v2459 = vsub.f32 %v1999, %v2458
    %2460 = vmatpush1.msra.mxu0 %v2459
    %v2461 = vand.u32 %v1997, 4294901760
    %v2462 = vsub.f32 %v1997, %v2461
    %2463 = vmatprep.subr.mxu0 %v2462
    %v2464 = vand.u32 %v1996, 4294901760
    %v2465 = vsub.f32 %v1996, %v2464
    %2466 = vmatpush1.msra.mxu0 %v2465
    %v2467 = vand.u32 %v1994, 4294901760
    %v2468 = vsub.f32 %v1994, %v2467
    %2469 = vmatprep.subr.mxu0 %v2468
    %v2470 = vand.u32 %v1993, 4294901760
    %v2471 = vsub.f32 %v1993, %v2470
    %2472 = vmatpush1.msra.mxu0 %v2471
    %v2473 = vand.u32 %v1991, 4294901760
    %v2474 = vsub.f32 %v1991, %v2473
    %2475 = vmatprep.subr.mxu0 %v2474
    %v2476 = vand.u32 %v1990, 4294901760
    %v2477 = vsub.f32 %v1990, %v2476
    %2478 = vmatpush1.msra.mxu0 %v2477
    %v2479 = vand.u32 %v1988, 4294901760
    %v2480 = vsub.f32 %v1988, %v2479
    %2481 = vmatprep.subr.mxu0 %v2480
    %v2482 = vand.u32 %v1987, 4294901760
    %v2483 = vsub.f32 %v1987, %v2482
    %2484 = vmatpush1.msra.mxu0 %v2483
    %v2485 = vand.u32 %v1985, 4294901760
    %v2486 = vsub.f32 %v1985, %v2485
    %2487 = vmatprep.subr.mxu0 %v2486
    %v2488 = vand.u32 %v1984, 4294901760
    %v2489 = vsub.f32 %v1984, %v2488
    %2490 = vmatpush1.msra.mxu0 %v2489
    %v2491 = vand.u32 %v1982, 4294901760
    %v2492 = vsub.f32 %v1982, %v2491
    %2493 = vmatprep.subr.mxu0 %v2492
    %v2494 = vand.u32 %v1981, 4294901760
    %v2495 = vsub.f32 %v1981, %v2494
    %2496 = vmatpush1.msra.mxu0 %v2495
    %2497 = vmatprep.subr.mxu0 0.0
    %2498 = vmatpush2.msra.mxu0 0.0
    %2499 = vmatprep.subr.mxu0 0.0
    %2500 = vmatpush2.msra.mxu0 0.0
    %2501 = vmatprep.subr.mxu0 0.0
    %2502 = vmatpush2.msra.mxu0 0.0
    %2503 = vmatprep.subr.mxu0 0.0
    %2504 = vmatpush2.msra.mxu0 0.0
    %2505 = vmatprep.subr.mxu0 0.0
    %2506 = vmatpush2.msra.mxu0 0.0
    %2507 = vmatprep.subr.mxu0 0.0
    %2508 = vmatpush2.msra.mxu0 0.0
    %2509 = vmatprep.subr.mxu0 0.0
    %2510 = vmatpush2.msra.mxu0 0.0
    %2511 = vmatprep.subr.mxu0 0.0
    %2512 = vmatpush2.msra.mxu0 0.0
    %2513 = vmatprep.subr.mxu0 0.0
    %2514 = vmatpush2.msra.mxu0 0.0
    %2515 = vmatprep.subr.mxu0 0.0
    %2516 = vmatpush2.msra.mxu0 0.0
    %2517 = vmatprep.subr.mxu0 0.0
    %2518 = vmatpush2.msra.mxu0 0.0
    %2519 = vmatprep.subr.mxu0 0.0
    %2520 = vmatpush2.msra.mxu0 0.0
    %2521 = vmatprep.subr.mxu0 0.0
    %2522 = vmatpush2.msra.mxu0 0.0
    %2523 = vmatprep.subr.mxu0 0.0
    %2524 = vmatpush2.msra.mxu0 0.0
    %2525 = vmatprep.subr.mxu0 0.0
    %2526 = vmatpush2.msra.mxu0 0.0
    %2527 = vmatprep.subr.mxu0 0.0
    %2528 = vmatpush2.msra.mxu0 0.0
    %2529 = vmatprep.mubr.f32.mxu0 0.0
    %v2530 = vand.u32 %v1978, 4294901760
    %v2531 = vsub.f32 %v1978, %v2530
    %2532 = vmatmul.mubr.f32.gmra.mxu0 %v2531
    %v2533 = vpop.f32.mrf.mxu0
    %v2534 = vadd.f32 %v2385, %v2533
    %v2535 = vpop.f32.mrf.mxu0
    %2536 = vmatprep.mubr.f32.mxu0 0.0
    %v2537 = vand.u32 %v1979, 4294901760
    %v2538 = vsub.f32 %v1979, %v2537
    %2539 = vmatmul.mubr.f32.gmra.mxu0 %v2538
    %v2540 = vpop.f32.mrf.mxu0
    %v2541 = vadd.f32 %v2391, %v2540
    %v2542 = vpop.f32.mrf.mxu0
    %v2543 = vadd.f32 %v2393, %v2542
    %2544 = vmatprep.mubr.f32.mxu0 0.0
    %v2545 = vand.u32 %v1980, 4294901760
    %v2546 = vsub.f32 %v1980, %v2545
    %2547 = vmatmul.mubr.f32.gmra.mxu0 %v2546
    %v2548 = vpop.f32.mrf.mxu0
    %v2549 = vpop.f32.mrf.mxu0
    %v2550 = vadd.f32 %v2399, %v2549
    %2551 = vdwg.mxu0
    %v2552 = vand.u32 %v2027, 4294901760
    %2553 = vmatprep.subr.mxu0 %v2552
    %v2554 = vand.u32 %v2026, 4294901760
    %2555 = vmatpush1.msra.mxu0 %v2554
    %v2556 = vand.u32 %v2024, 4294901760
    %2557 = vmatprep.subr.mxu0 %v2556
    %v2558 = vand.u32 %v2023, 4294901760
    %2559 = vmatpush1.msra.mxu0 %v2558
    %v2560 = vand.u32 %v2021, 4294901760
    %2561 = vmatprep.subr.mxu0 %v2560
    %v2562 = vand.u32 %v2020, 4294901760
    %2563 = vmatpush1.msra.mxu0 %v2562
    %v2564 = vand.u32 %v2018, 4294901760
    %2565 = vmatprep.subr.mxu0 %v2564
    %v2566 = vand.u32 %v2017, 4294901760
    %2567 = vmatpush1.msra.mxu0 %v2566
    %v2568 = vand.u32 %v2015, 4294901760
    %2569 = vmatprep.subr.mxu0 %v2568
    %v2570 = vand.u32 %v2014, 4294901760
    %2571 = vmatpush1.msra.mxu0 %v2570
    %v2572 = vand.u32 %v2012, 4294901760
    %2573 = vmatprep.subr.mxu0 %v2572
    %v2574 = vand.u32 %v2011, 4294901760
    %2575 = vmatpush1.msra.mxu0 %v2574
    %v2576 = vand.u32 %v2009, 4294901760
    %2577 = vmatprep.subr.mxu0 %v2576
    %v2578 = vand.u32 %v2008, 4294901760
    %2579 = vmatpush1.msra.mxu0 %v2578
    %v2580 = vand.u32 %v2006, 4294901760
    %2581 = vmatprep.subr.mxu0 %v2580
    %v2582 = vand.u32 %v2005, 4294901760
    %2583 = vmatpush1.msra.mxu0 %v2582
    %v2584 = vand.u32 %v2003, 4294901760
    %2585 = vmatprep.subr.mxu0 %v2584
    %v2586 = vand.u32 %v2002, 4294901760
    %2587 = vmatpush1.msra.mxu0 %v2586
    %v2588 = vand.u32 %v2000, 4294901760
    %2589 = vmatprep.subr.mxu0 %v2588
    %v2590 = vand.u32 %v1999, 4294901760
    %2591 = vmatpush1.msra.mxu0 %v2590
    %v2592 = vand.u32 %v1997, 4294901760
    %2593 = vmatprep.subr.mxu0 %v2592
    %v2594 = vand.u32 %v1996, 4294901760
    %2595 = vmatpush1.msra.mxu0 %v2594
    %v2596 = vand.u32 %v1994, 4294901760
    %2597 = vmatprep.subr.mxu0 %v2596
    %v2598 = vand.u32 %v1993, 4294901760
    %2599 = vmatpush1.msra.mxu0 %v2598
    %v2600 = vand.u32 %v1991, 4294901760
    %2601 = vmatprep.subr.mxu0 %v2600
    %v2602 = vand.u32 %v1990, 4294901760
    %2603 = vmatpush1.msra.mxu0 %v2602
    %v2604 = vand.u32 %v1988, 4294901760
    %2605 = vmatprep.subr.mxu0 %v2604
    %v2606 = vand.u32 %v1987, 4294901760
    %2607 = vmatpush1.msra.mxu0 %v2606
    %v2608 = vand.u32 %v1985, 4294901760
    %2609 = vmatprep.subr.mxu0 %v2608
    %v2610 = vand.u32 %v1984, 4294901760
    %2611 = vmatpush1.msra.mxu0 %v2610
    %v2612 = vand.u32 %v1982, 4294901760
    %2613 = vmatprep.subr.mxu0 %v2612
    %v2614 = vand.u32 %v1981, 4294901760
    %2615 = vmatpush1.msra.mxu0 %v2614
    %2616 = vmatprep.subr.mxu0 0.0
    %2617 = vmatpush2.msra.mxu0 0.0
    %2618 = vmatprep.subr.mxu0 0.0
    %2619 = vmatpush2.msra.mxu0 0.0
    %2620 = vmatprep.subr.mxu0 0.0
    %2621 = vmatpush2.msra.mxu0 0.0
    %2622 = vmatprep.subr.mxu0 0.0
    %2623 = vmatpush2.msra.mxu0 0.0
    %2624 = vmatprep.subr.mxu0 0.0
    %2625 = vmatpush2.msra.mxu0 0.0
    %2626 = vmatprep.subr.mxu0 0.0
    %2627 = vmatpush2.msra.mxu0 0.0
    %2628 = vmatprep.subr.mxu0 0.0
    %2629 = vmatpush2.msra.mxu0 0.0
    %2630 = vmatprep.subr.mxu0 0.0
    %2631 = vmatpush2.msra.mxu0 0.0
    %2632 = vmatprep.subr.mxu0 0.0
    %2633 = vmatpush2.msra.mxu0 0.0
    %2634 = vmatprep.subr.mxu0 0.0
    %2635 = vmatpush2.msra.mxu0 0.0
    %2636 = vmatprep.subr.mxu0 0.0
    %2637 = vmatpush2.msra.mxu0 0.0
    %2638 = vmatprep.subr.mxu0 0.0
    %2639 = vmatpush2.msra.mxu0 0.0
    %2640 = vmatprep.subr.mxu0 0.0
    %2641 = vmatpush2.msra.mxu0 0.0
    %2642 = vmatprep.subr.mxu0 0.0
    %2643 = vmatpush2.msra.mxu0 0.0
    %2644 = vmatprep.subr.mxu0 0.0
    %2645 = vmatpush2.msra.mxu0 0.0
    %2646 = vmatprep.subr.mxu0 0.0
    %2647 = vmatpush2.msra.mxu0 0.0
    %2648 = vmatprep.mubr.f32.mxu0 0.0
    %v2649 = vand.u32 %v1978, 4294901760
    %v2650 = vsub.f32 %v1978, %v2649
    %v2651 = vand.u32 %v2650, 4294901760
    %2652 = vmatmul.mubr.f32.gmra.mxu0 %v2651
    %v2653 = vpop.f32.mrf.mxu0
    %v2654 = vadd.f32 %v2534, %v2653
    %v2655 = vpop.f32.mrf.mxu0
    %2656 = vmatprep.mubr.f32.mxu0 0.0
    %v2657 = vand.u32 %v1979, 4294901760
    %v2658 = vsub.f32 %v1979, %v2657
    %v2659 = vand.u32 %v2658, 4294901760
    %2660 = vmatmul.mubr.f32.gmra.mxu0 %v2659
    %v2661 = vpop.f32.mrf.mxu0
    %v2662 = vadd.f32 %v2541, %v2661
    %v2663 = vpop.f32.mrf.mxu0
    %v2664 = vadd.f32 %v2543, %v2663
    %2665 = vmatprep.mubr.f32.mxu0 0.0
    %v2666 = vand.u32 %v1980, 4294901760
    %v2667 = vsub.f32 %v1980, %v2666
    %v2668 = vand.u32 %v2667, 4294901760
    %2669 = vmatmul.mubr.f32.gmra.mxu0 %v2668
    %v2670 = vpop.f32.mrf.mxu0
    %v2671 = vpop.f32.mrf.mxu0
    %v2672 = vadd.f32 %v2550, %v2671
    %2673 = vdwg.mxu0
    %v2674 = vand.u32 %v2027, 4294901760
    %v2675 = vsub.f32 %v2027, %v2674
    %v2676 = vand.u32 %v2675, 4294901760
    %2677 = vmatprep.subr.mxu0 %v2676
    %v2678 = vand.u32 %v2026, 4294901760
    %v2679 = vsub.f32 %v2026, %v2678
    %v2680 = vand.u32 %v2679, 4294901760
    %2681 = vmatpush1.msra.mxu0 %v2680
    %v2682 = vand.u32 %v2024, 4294901760
    %v2683 = vsub.f32 %v2024, %v2682
    %v2684 = vand.u32 %v2683, 4294901760
    %2685 = vmatprep.subr.mxu0 %v2684
    %v2686 = vand.u32 %v2023, 4294901760
    %v2687 = vsub.f32 %v2023, %v2686
    %v2688 = vand.u32 %v2687, 4294901760
    %2689 = vmatpush1.msra.mxu0 %v2688
    %v2690 = vand.u32 %v2021, 4294901760
    %v2691 = vsub.f32 %v2021, %v2690
    %v2692 = vand.u32 %v2691, 4294901760
    %2693 = vmatprep.subr.mxu0 %v2692
    %v2694 = vand.u32 %v2020, 4294901760
    %v2695 = vsub.f32 %v2020, %v2694
    %v2696 = vand.u32 %v2695, 4294901760
    %2697 = vmatpush1.msra.mxu0 %v2696
    %v2698 = vand.u32 %v2018, 4294901760
    %v2699 = vsub.f32 %v2018, %v2698
    %v2700 = vand.u32 %v2699, 4294901760
    %2701 = vmatprep.subr.mxu0 %v2700
    %v2702 = vand.u32 %v2017, 4294901760
    %v2703 = vsub.f32 %v2017, %v2702
    %v2704 = vand.u32 %v2703, 4294901760
    %2705 = vmatpush1.msra.mxu0 %v2704
    %v2706 = vand.u32 %v2015, 4294901760
    %v2707 = vsub.f32 %v2015, %v2706
    %v2708 = vand.u32 %v2707, 4294901760
    %2709 = vmatprep.subr.mxu0 %v2708
    %v2710 = vand.u32 %v2014, 4294901760
    %v2711 = vsub.f32 %v2014, %v2710
    %v2712 = vand.u32 %v2711, 4294901760
    %2713 = vmatpush1.msra.mxu0 %v2712
    %v2714 = vand.u32 %v2012, 4294901760
    %v2715 = vsub.f32 %v2012, %v2714
    %v2716 = vand.u32 %v2715, 4294901760
    %2717 = vmatprep.subr.mxu0 %v2716
    %v2718 = vand.u32 %v2011, 4294901760
    %v2719 = vsub.f32 %v2011, %v2718
    %v2720 = vand.u32 %v2719, 4294901760
    %2721 = vmatpush1.msra.mxu0 %v2720
    %v2722 = vand.u32 %v2009, 4294901760
    %v2723 = vsub.f32 %v2009, %v2722
    %v2724 = vand.u32 %v2723, 4294901760
    %2725 = vmatprep.subr.mxu0 %v2724
    %v2726 = vand.u32 %v2008, 4294901760
    %v2727 = vsub.f32 %v2008, %v2726
    %v2728 = vand.u32 %v2727, 4294901760
    %2729 = vmatpush1.msra.mxu0 %v2728
    %v2730 = vand.u32 %v2006, 4294901760
    %v2731 = vsub.f32 %v2006, %v2730
    %v2732 = vand.u32 %v2731, 4294901760
    %2733 = vmatprep.subr.mxu0 %v2732
    %v2734 = vand.u32 %v2005, 4294901760
    %v2735 = vsub.f32 %v2005, %v2734
    %v2736 = vand.u32 %v2735, 4294901760
    %2737 = vmatpush1.msra.mxu0 %v2736
    %v2738 = vand.u32 %v2003, 4294901760
    %v2739 = vsub.f32 %v2003, %v2738
    %v2740 = vand.u32 %v2739, 4294901760
    %2741 = vmatprep.subr.mxu0 %v2740
    %v2742 = vand.u32 %v2002, 4294901760
    %v2743 = vsub.f32 %v2002, %v2742
    %v2744 = vand.u32 %v2743, 4294901760
    %2745 = vmatpush1.msra.mxu0 %v2744
    %v2746 = vand.u32 %v2000, 4294901760
    %v2747 = vsub.f32 %v2000, %v2746
    %v2748 = vand.u32 %v2747, 4294901760
    %2749 = vmatprep.subr.mxu0 %v2748
    %v2750 = vand.u32 %v1999, 4294901760
    %v2751 = vsub.f32 %v1999, %v2750
    %v2752 = vand.u32 %v2751, 4294901760
    %2753 = vmatpush1.msra.mxu0 %v2752
    %v2754 = vand.u32 %v1997, 4294901760
    %v2755 = vsub.f32 %v1997, %v2754
    %v2756 = vand.u32 %v2755, 4294901760
    %2757 = vmatprep.subr.mxu0 %v2756
    %v2758 = vand.u32 %v1996, 4294901760
    %v2759 = vsub.f32 %v1996, %v2758
    %v2760 = vand.u32 %v2759, 4294901760
    %2761 = vmatpush1.msra.mxu0 %v2760
    %v2762 = vand.u32 %v1994, 4294901760
    %v2763 = vsub.f32 %v1994, %v2762
    %v2764 = vand.u32 %v2763, 4294901760
    %2765 = vmatprep.subr.mxu0 %v2764
    %v2766 = vand.u32 %v1993, 4294901760
    %v2767 = vsub.f32 %v1993, %v2766
    %v2768 = vand.u32 %v2767, 4294901760
    %2769 = vmatpush1.msra.mxu0 %v2768
    %v2770 = vand.u32 %v1991, 4294901760
    %v2771 = vsub.f32 %v1991, %v2770
    %v2772 = vand.u32 %v2771, 4294901760
    %2773 = vmatprep.subr.mxu0 %v2772
    %v2774 = vand.u32 %v1990, 4294901760
    %v2775 = vsub.f32 %v1990, %v2774
    %v2776 = vand.u32 %v2775, 4294901760
    %2777 = vmatpush1.msra.mxu0 %v2776
    %v2778 = vand.u32 %v1988, 4294901760
    %v2779 = vsub.f32 %v1988, %v2778
    %v2780 = vand.u32 %v2779, 4294901760
    %2781 = vmatprep.subr.mxu0 %v2780
    %v2782 = vand.u32 %v1987, 4294901760
    %v2783 = vsub.f32 %v1987, %v2782
    %v2784 = vand.u32 %v2783, 4294901760
    %2785 = vmatpush1.msra.mxu0 %v2784
    %v2786 = vand.u32 %v1985, 4294901760
    %v2787 = vsub.f32 %v1985, %v2786
    %v2788 = vand.u32 %v2787, 4294901760
    %2789 = vmatprep.subr.mxu0 %v2788
    %v2790 = vand.u32 %v1984, 4294901760
    %v2791 = vsub.f32 %v1984, %v2790
    %v2792 = vand.u32 %v2791, 4294901760
    %2793 = vmatpush1.msra.mxu0 %v2792
    %v2794 = vand.u32 %v1982, 4294901760
    %v2795 = vsub.f32 %v1982, %v2794
    %v2796 = vand.u32 %v2795, 4294901760
    %2797 = vmatprep.subr.mxu0 %v2796
    %v2798 = vand.u32 %v1981, 4294901760
    %v2799 = vsub.f32 %v1981, %v2798
    %v2800 = vand.u32 %v2799, 4294901760
    %2801 = vmatpush1.msra.mxu0 %v2800
    %2802 = vmatprep.subr.mxu0 0.0
    %2803 = vmatpush2.msra.mxu0 0.0
    %2804 = vmatprep.subr.mxu0 0.0
    %2805 = vmatpush2.msra.mxu0 0.0
    %2806 = vmatprep.subr.mxu0 0.0
    %2807 = vmatpush2.msra.mxu0 0.0
    %2808 = vmatprep.subr.mxu0 0.0
    %2809 = vmatpush2.msra.mxu0 0.0
    %2810 = vmatprep.subr.mxu0 0.0
    %2811 = vmatpush2.msra.mxu0 0.0
    %2812 = vmatprep.subr.mxu0 0.0
    %2813 = vmatpush2.msra.mxu0 0.0
    %2814 = vmatprep.subr.mxu0 0.0
    %2815 = vmatpush2.msra.mxu0 0.0
    %2816 = vmatprep.subr.mxu0 0.0
    %2817 = vmatpush2.msra.mxu0 0.0
    %2818 = vmatprep.subr.mxu0 0.0
    %2819 = vmatpush2.msra.mxu0 0.0
    %2820 = vmatprep.subr.mxu0 0.0
    %2821 = vmatpush2.msra.mxu0 0.0
    %2822 = vmatprep.subr.mxu0 0.0
    %2823 = vmatpush2.msra.mxu0 0.0
    %2824 = vmatprep.subr.mxu0 0.0
    %2825 = vmatpush2.msra.mxu0 0.0
    %2826 = vmatprep.subr.mxu0 0.0
    %2827 = vmatpush2.msra.mxu0 0.0
    %2828 = vmatprep.subr.mxu0 0.0
    %2829 = vmatpush2.msra.mxu0 0.0
    %2830 = vmatprep.subr.mxu0 0.0
    %2831 = vmatpush2.msra.mxu0 0.0
    %2832 = vmatprep.subr.mxu0 0.0
    %2833 = vmatpush2.msra.mxu0 0.0
    %2834 = vmatprep.mubr.f32.mxu0 0.0
    %v2835 = vand.u32 %v1978, 4294901760
    %2836 = vmatmul.mubr.f32.gmra.mxu0 %v2835
    %v2837 = vpop.f32.mrf.mxu0
    %v2838 = vadd.f32 %v2654, %v2837
    %v2839 = vpop.f32.mrf.mxu0
    %2840 = vmatprep.mubr.f32.mxu0 0.0
    %v2841 = vand.u32 %v1979, 4294901760
    %2842 = vmatmul.mubr.f32.gmra.mxu0 %v2841
    %v2843 = vpop.f32.mrf.mxu0
    %v2844 = vadd.f32 %v2662, %v2843
    %v2845 = vpop.f32.mrf.mxu0
    %v2846 = vadd.f32 %v2664, %v2845
    %2847 = vmatprep.mubr.f32.mxu0 0.0
    %v2848 = vand.u32 %v1980, 4294901760
    %2849 = vmatmul.mubr.f32.gmra.mxu0 %v2848
    %v2850 = vpop.f32.mrf.mxu0
    %v2851 = vpop.f32.mrf.mxu0
    %v2852 = vadd.f32 %v2672, %v2851
    %2853 = vdwg.mxu0
    %v2854 = vand.u32 %v2027, 4294901760
    %2855 = vmatprep.subr.mxu0 %v2854
    %v2856 = vand.u32 %v2026, 4294901760
    %2857 = vmatpush1.msra.mxu0 %v2856
    %v2858 = vand.u32 %v2024, 4294901760
    %2859 = vmatprep.subr.mxu0 %v2858
    %v2860 = vand.u32 %v2023, 4294901760
    %2861 = vmatpush1.msra.mxu0 %v2860
    %v2862 = vand.u32 %v2021, 4294901760
    %2863 = vmatprep.subr.mxu0 %v2862
    %v2864 = vand.u32 %v2020, 4294901760
    %2865 = vmatpush1.msra.mxu0 %v2864
    %v2866 = vand.u32 %v2018, 4294901760
    %2867 = vmatprep.subr.mxu0 %v2866
    %v2868 = vand.u32 %v2017, 4294901760
    %2869 = vmatpush1.msra.mxu0 %v2868
    %v2870 = vand.u32 %v2015, 4294901760
    %2871 = vmatprep.subr.mxu0 %v2870
    %v2872 = vand.u32 %v2014, 4294901760
    %2873 = vmatpush1.msra.mxu0 %v2872
    %v2874 = vand.u32 %v2012, 4294901760
    %2875 = vmatprep.subr.mxu0 %v2874
    %v2876 = vand.u32 %v2011, 4294901760
    %2877 = vmatpush1.msra.mxu0 %v2876
    %v2878 = vand.u32 %v2009, 4294901760
    %2879 = vmatprep.subr.mxu0 %v2878
    %v2880 = vand.u32 %v2008, 4294901760
    %2881 = vmatpush1.msra.mxu0 %v2880
    %v2882 = vand.u32 %v2006, 4294901760
    %2883 = vmatprep.subr.mxu0 %v2882
    %v2884 = vand.u32 %v2005, 4294901760
    %2885 = vmatpush1.msra.mxu0 %v2884
    %v2886 = vand.u32 %v2003, 4294901760
    %2887 = vmatprep.subr.mxu0 %v2886
    %v2888 = vand.u32 %v2002, 4294901760
    %2889 = vmatpush1.msra.mxu0 %v2888
    %v2890 = vand.u32 %v2000, 4294901760
    %2891 = vmatprep.subr.mxu0 %v2890
    %v2892 = vand.u32 %v1999, 4294901760
    %2893 = vmatpush1.msra.mxu0 %v2892
    %v2894 = vand.u32 %v1997, 4294901760
    %2895 = vmatprep.subr.mxu0 %v2894
    %v2896 = vand.u32 %v1996, 4294901760
    %2897 = vmatpush1.msra.mxu0 %v2896
    %v2898 = vand.u32 %v1994, 4294901760
    %2899 = vmatprep.subr.mxu0 %v2898
    %v2900 = vand.u32 %v1993, 4294901760
    %2901 = vmatpush1.msra.mxu0 %v2900
    %v2902 = vand.u32 %v1991, 4294901760
    %2903 = vmatprep.subr.mxu0 %v2902
    %v2904 = vand.u32 %v1990, 4294901760
    %2905 = vmatpush1.msra.mxu0 %v2904
    %v2906 = vand.u32 %v1988, 4294901760
    %2907 = vmatprep.subr.mxu0 %v2906
    %v2908 = vand.u32 %v1987, 4294901760
    %2909 = vmatpush1.msra.mxu0 %v2908
    %v2910 = vand.u32 %v1985, 4294901760
    %2911 = vmatprep.subr.mxu0 %v2910
    %v2912 = vand.u32 %v1984, 4294901760
    %2913 = vmatpush1.msra.mxu0 %v2912
    %v2914 = vand.u32 %v1982, 4294901760
    %2915 = vmatprep.subr.mxu0 %v2914
    %v2916 = vand.u32 %v1981, 4294901760
    %2917 = vmatpush1.msra.mxu0 %v2916
    %2918 = vmatprep.subr.mxu0 0.0
    %2919 = vmatpush2.msra.mxu0 0.0
    %2920 = vmatprep.subr.mxu0 0.0
    %2921 = vmatpush2.msra.mxu0 0.0
    %2922 = vmatprep.subr.mxu0 0.0
    %2923 = vmatpush2.msra.mxu0 0.0
    %2924 = vmatprep.subr.mxu0 0.0
    %2925 = vmatpush2.msra.mxu0 0.0
    %2926 = vmatprep.subr.mxu0 0.0
    %2927 = vmatpush2.msra.mxu0 0.0
    %2928 = vmatprep.subr.mxu0 0.0
    %2929 = vmatpush2.msra.mxu0 0.0
    %2930 = vmatprep.subr.mxu0 0.0
    %2931 = vmatpush2.msra.mxu0 0.0
    %2932 = vmatprep.subr.mxu0 0.0
    %2933 = vmatpush2.msra.mxu0 0.0
    %2934 = vmatprep.subr.mxu0 0.0
    %2935 = vmatpush2.msra.mxu0 0.0
    %2936 = vmatprep.subr.mxu0 0.0
    %2937 = vmatpush2.msra.mxu0 0.0
    %2938 = vmatprep.subr.mxu0 0.0
    %2939 = vmatpush2.msra.mxu0 0.0
    %2940 = vmatprep.subr.mxu0 0.0
    %2941 = vmatpush2.msra.mxu0 0.0
    %2942 = vmatprep.subr.mxu0 0.0
    %2943 = vmatpush2.msra.mxu0 0.0
    %2944 = vmatprep.subr.mxu0 0.0
    %2945 = vmatpush2.msra.mxu0 0.0
    %2946 = vmatprep.subr.mxu0 0.0
    %2947 = vmatpush2.msra.mxu0 0.0
    %2948 = vmatprep.subr.mxu0 0.0
    %2949 = vmatpush2.msra.mxu0 0.0
    %2950 = vmatprep.mubr.f32.mxu0 0.0
    %v2951 = vand.u32 %v1978, 4294901760
    %2952 = vmatmul.mubr.f32.gmra.mxu0 %v2951
    %v2953 = vpop.f32.mrf.mxu0
    %v2954 = vadd.f32 %v2838, %v2953
    %v2955 = vpop.f32.mrf.mxu0
    %2956 = vmatprep.mubr.f32.mxu0 0.0
    %v2957 = vand.u32 %v1979, 4294901760
    %2958 = vmatmul.mubr.f32.gmra.mxu0 %v2957
    %v2959 = vpop.f32.mrf.mxu0
    %v2960 = vadd.f32 %v2844, %v2959
    %v2961 = vpop.f32.mrf.mxu0
    %v2962 = vadd.f32 %v2846, %v2961
    %2963 = vmatprep.mubr.f32.mxu0 0.0
    %v2964 = vand.u32 %v1980, 4294901760
    %2965 = vmatmul.mubr.f32.gmra.mxu0 %v2964
    %v2966 = vpop.f32.mrf.mxu0
    %v2967 = vpop.f32.mrf.mxu0
    %v2968 = vadd.f32 %v2852, %v2967
    %2969 = vdwg.mxu0
    %2970 = vmatprep.subr.mxu0 0.0
    %v2971 = vand.u32 %v2028, 4294901760
    %2972 = vmatpush1.msra.mxu0 %v2971
    %2973 = vmatprep.subr.mxu0 0.0
    %v2974 = vand.u32 %v2025, 4294901760
    %2975 = vmatpush1.msra.mxu0 %v2974
    %2976 = vmatprep.subr.mxu0 0.0
    %v2977 = vand.u32 %v2022, 4294901760
    %2978 = vmatpush1.msra.mxu0 %v2977
    %2979 = vmatprep.subr.mxu0 0.0
    %v2980 = vand.u32 %v2019, 4294901760
    %2981 = vmatpush1.msra.mxu0 %v2980
    %2982 = vmatprep.subr.mxu0 0.0
    %v2983 = vand.u32 %v2016, 4294901760
    %2984 = vmatpush1.msra.mxu0 %v2983
    %2985 = vmatprep.subr.mxu0 0.0
    %v2986 = vand.u32 %v2013, 4294901760
    %2987 = vmatpush1.msra.mxu0 %v2986
    %2988 = vmatprep.subr.mxu0 0.0
    %v2989 = vand.u32 %v2010, 4294901760
    %2990 = vmatpush1.msra.mxu0 %v2989
    %2991 = vmatprep.subr.mxu0 0.0
    %v2992 = vand.u32 %v2007, 4294901760
    %2993 = vmatpush1.msra.mxu0 %v2992
    %2994 = vmatprep.subr.mxu0 0.0
    %v2995 = vand.u32 %v2004, 4294901760
    %2996 = vmatpush1.msra.mxu0 %v2995
    %2997 = vmatprep.subr.mxu0 0.0
    %v2998 = vand.u32 %v2001, 4294901760
    %2999 = vmatpush1.msra.mxu0 %v2998
    %3000 = vmatprep.subr.mxu0 0.0
    %v3001 = vand.u32 %v1998, 4294901760
    %3002 = vmatpush1.msra.mxu0 %v3001
    %3003 = vmatprep.subr.mxu0 0.0
    %v3004 = vand.u32 %v1995, 4294901760
    %3005 = vmatpush1.msra.mxu0 %v3004
    %3006 = vmatprep.subr.mxu0 0.0
    %v3007 = vand.u32 %v1992, 4294901760
    %3008 = vmatpush1.msra.mxu0 %v3007
    %3009 = vmatprep.subr.mxu0 0.0
    %v3010 = vand.u32 %v1989, 4294901760
    %3011 = vmatpush1.msra.mxu0 %v3010
    %3012 = vmatprep.subr.mxu0 0.0
    %v3013 = vand.u32 %v1986, 4294901760
    %3014 = vmatpush1.msra.mxu0 %v3013
    %3015 = vmatprep.subr.mxu0 0.0
    %v3016 = vand.u32 %v1983, 4294901760
    %3017 = vmatpush1.msra.mxu0 %v3016
    %3018 = vmatprep.subr.mxu0 0.0
    %3019 = vmatpush2.msra.mxu0 0.0
    %3020 = vmatprep.subr.mxu0 0.0
    %3021 = vmatpush2.msra.mxu0 0.0
    %3022 = vmatprep.subr.mxu0 0.0
    %3023 = vmatpush2.msra.mxu0 0.0
    %3024 = vmatprep.subr.mxu0 0.0
    %3025 = vmatpush2.msra.mxu0 0.0
    %3026 = vmatprep.subr.mxu0 0.0
    %3027 = vmatpush2.msra.mxu0 0.0
    %3028 = vmatprep.subr.mxu0 0.0
    %3029 = vmatpush2.msra.mxu0 0.0
    %3030 = vmatprep.subr.mxu0 0.0
    %3031 = vmatpush2.msra.mxu0 0.0
    %3032 = vmatprep.subr.mxu0 0.0
    %3033 = vmatpush2.msra.mxu0 0.0
    %3034 = vmatprep.subr.mxu0 0.0
    %3035 = vmatpush2.msra.mxu0 0.0
    %3036 = vmatprep.subr.mxu0 0.0
    %3037 = vmatpush2.msra.mxu0 0.0
    %3038 = vmatprep.subr.mxu0 0.0
    %3039 = vmatpush2.msra.mxu0 0.0
    %3040 = vmatprep.subr.mxu0 0.0
    %3041 = vmatpush2.msra.mxu0 0.0
    %3042 = vmatprep.subr.mxu0 0.0
    %3043 = vmatpush2.msra.mxu0 0.0
    %3044 = vmatprep.subr.mxu0 0.0
    %3045 = vmatpush2.msra.mxu0 0.0
    %3046 = vmatprep.subr.mxu0 0.0
    %3047 = vmatpush2.msra.mxu0 0.0
    %3048 = vmatprep.subr.mxu0 0.0
    %3049 = vmatpush2.msra.mxu0 0.0
    %3050 = vmatprep.mubr.f32.mxu0 0.0
    %v3051 = vand.u32 %v1978, 4294901760
    %v3052 = vsub.f32 %v1978, %v3051
    %v3053 = vand.u32 %v3052, 4294901760
    %v3054 = vsub.f32 %v3052, %v3053
    %v3055 = vand.u32 %v3054, 4294901760
    %3056 = vmatmul.mubr.f32.gmra.mxu0 %v3055
    %v3057 = vpop.f32.mrf.mxu0
    %v3058 = vadd.f32 0.0, %v3057
    %v3059 = vpop.f32.mrf.mxu0
    %3060 = vmatprep.mubr.f32.mxu0 0.0
    %v3061 = vand.u32 %v1979, 4294901760
    %v3062 = vsub.f32 %v1979, %v3061
    %v3063 = vand.u32 %v3062, 4294901760
    %v3064 = vsub.f32 %v3062, %v3063
    %v3065 = vand.u32 %v3064, 4294901760
    %3066 = vmatmul.mubr.f32.gmra.mxu0 %v3065
    %v3067 = vpop.f32.mrf.mxu0
    %v3068 = vadd.f32 0.0, %v3067
    %v3069 = vpop.f32.mrf.mxu0
    %3070 = vmatprep.mubr.f32.mxu0 0.0
    %v3071 = vand.u32 %v1980, 4294901760
    %v3072 = vsub.f32 %v1980, %v3071
    %v3073 = vand.u32 %v3072, 4294901760
    %v3074 = vsub.f32 %v3072, %v3073
    %v3075 = vand.u32 %v3074, 4294901760
    %3076 = vmatmul.mubr.f32.gmra.mxu0 %v3075
    %v3077 = vpop.f32.mrf.mxu0
    %v3078 = vadd.f32 0.0, %v3077
    %v3079 = vpop.f32.mrf.mxu0
    %3080 = vdwg.mxu0
    %3081 = vmatprep.subr.mxu0 0.0
    %v3082 = vand.u32 %v2028, 4294901760
    %v3083 = vsub.f32 %v2028, %v3082
    %v3084 = vand.u32 %v3083, 4294901760
    %v3085 = vsub.f32 %v3083, %v3084
    %v3086 = vand.u32 %v3085, 4294901760
    %3087 = vmatpush1.msra.mxu0 %v3086
    %3088 = vmatprep.subr.mxu0 0.0
    %v3089 = vand.u32 %v2025, 4294901760
    %v3090 = vsub.f32 %v2025, %v3089
    %v3091 = vand.u32 %v3090, 4294901760
    %v3092 = vsub.f32 %v3090, %v3091
    %v3093 = vand.u32 %v3092, 4294901760
    %3094 = vmatpush1.msra.mxu0 %v3093
    %3095 = vmatprep.subr.mxu0 0.0
    %v3096 = vand.u32 %v2022, 4294901760
    %v3097 = vsub.f32 %v2022, %v3096
    %v3098 = vand.u32 %v3097, 4294901760
    %v3099 = vsub.f32 %v3097, %v3098
    %v3100 = vand.u32 %v3099, 4294901760
    %3101 = vmatpush1.msra.mxu0 %v3100
    %3102 = vmatprep.subr.mxu0 0.0
    %v3103 = vand.u32 %v2019, 4294901760
    %v3104 = vsub.f32 %v2019, %v3103
    %v3105 = vand.u32 %v3104, 4294901760
    %v3106 = vsub.f32 %v3104, %v3105
    %v3107 = vand.u32 %v3106, 4294901760
    %3108 = vmatpush1.msra.mxu0 %v3107
    %3109 = vmatprep.subr.mxu0 0.0
    %v3110 = vand.u32 %v2016, 4294901760
    %v3111 = vsub.f32 %v2016, %v3110
    %v3112 = vand.u32 %v3111, 4294901760
    %v3113 = vsub.f32 %v3111, %v3112
    %v3114 = vand.u32 %v3113, 4294901760
    %3115 = vmatpush1.msra.mxu0 %v3114
    %3116 = vmatprep.subr.mxu0 0.0
    %v3117 = vand.u32 %v2013, 4294901760
    %v3118 = vsub.f32 %v2013, %v3117
    %v3119 = vand.u32 %v3118, 4294901760
    %v3120 = vsub.f32 %v3118, %v3119
    %v3121 = vand.u32 %v3120, 4294901760
    %3122 = vmatpush1.msra.mxu0 %v3121
    %3123 = vmatprep.subr.mxu0 0.0
    %v3124 = vand.u32 %v2010, 4294901760
    %v3125 = vsub.f32 %v2010, %v3124
    %v3126 = vand.u32 %v3125, 4294901760
    %v3127 = vsub.f32 %v3125, %v3126
    %v3128 = vand.u32 %v3127, 4294901760
    %3129 = vmatpush1.msra.mxu0 %v3128
    %3130 = vmatprep.subr.mxu0 0.0
    %v3131 = vand.u32 %v2007, 4294901760
    %v3132 = vsub.f32 %v2007, %v3131
    %v3133 = vand.u32 %v3132, 4294901760
    %v3134 = vsub.f32 %v3132, %v3133
    %v3135 = vand.u32 %v3134, 4294901760
    %3136 = vmatpush1.msra.mxu0 %v3135
    %3137 = vmatprep.subr.mxu0 0.0
    %v3138 = vand.u32 %v2004, 4294901760
    %v3139 = vsub.f32 %v2004, %v3138
    %v3140 = vand.u32 %v3139, 4294901760
    %v3141 = vsub.f32 %v3139, %v3140
    %v3142 = vand.u32 %v3141, 4294901760
    %3143 = vmatpush1.msra.mxu0 %v3142
    %3144 = vmatprep.subr.mxu0 0.0
    %v3145 = vand.u32 %v2001, 4294901760
    %v3146 = vsub.f32 %v2001, %v3145
    %v3147 = vand.u32 %v3146, 4294901760
    %v3148 = vsub.f32 %v3146, %v3147
    %v3149 = vand.u32 %v3148, 4294901760
    %3150 = vmatpush1.msra.mxu0 %v3149
    %3151 = vmatprep.subr.mxu0 0.0
    %v3152 = vand.u32 %v1998, 4294901760
    %v3153 = vsub.f32 %v1998, %v3152
    %v3154 = vand.u32 %v3153, 4294901760
    %v3155 = vsub.f32 %v3153, %v3154
    %v3156 = vand.u32 %v3155, 4294901760
    %3157 = vmatpush1.msra.mxu0 %v3156
    %3158 = vmatprep.subr.mxu0 0.0
    %v3159 = vand.u32 %v1995, 4294901760
    %v3160 = vsub.f32 %v1995, %v3159
    %v3161 = vand.u32 %v3160, 4294901760
    %v3162 = vsub.f32 %v3160, %v3161
    %v3163 = vand.u32 %v3162, 4294901760
    %3164 = vmatpush1.msra.mxu0 %v3163
    %3165 = vmatprep.subr.mxu0 0.0
    %v3166 = vand.u32 %v1992, 4294901760
    %v3167 = vsub.f32 %v1992, %v3166
    %v3168 = vand.u32 %v3167, 4294901760
    %v3169 = vsub.f32 %v3167, %v3168
    %v3170 = vand.u32 %v3169, 4294901760
    %3171 = vmatpush1.msra.mxu0 %v3170
    %3172 = vmatprep.subr.mxu0 0.0
    %v3173 = vand.u32 %v1989, 4294901760
    %v3174 = vsub.f32 %v1989, %v3173
    %v3175 = vand.u32 %v3174, 4294901760
    %v3176 = vsub.f32 %v3174, %v3175
    %v3177 = vand.u32 %v3176, 4294901760
    %3178 = vmatpush1.msra.mxu0 %v3177
    %3179 = vmatprep.subr.mxu0 0.0
    %v3180 = vand.u32 %v1986, 4294901760
    %v3181 = vsub.f32 %v1986, %v3180
    %v3182 = vand.u32 %v3181, 4294901760
    %v3183 = vsub.f32 %v3181, %v3182
    %v3184 = vand.u32 %v3183, 4294901760
    %3185 = vmatpush1.msra.mxu0 %v3184
    %3186 = vmatprep.subr.mxu0 0.0
    %v3187 = vand.u32 %v1983, 4294901760
    %v3188 = vsub.f32 %v1983, %v3187
    %v3189 = vand.u32 %v3188, 4294901760
    %v3190 = vsub.f32 %v3188, %v3189
    %v3191 = vand.u32 %v3190, 4294901760
    %3192 = vmatpush1.msra.mxu0 %v3191
    %3193 = vmatprep.subr.mxu0 0.0
    %3194 = vmatpush2.msra.mxu0 0.0
    %3195 = vmatprep.subr.mxu0 0.0
    %3196 = vmatpush2.msra.mxu0 0.0
    %3197 = vmatprep.subr.mxu0 0.0
    %3198 = vmatpush2.msra.mxu0 0.0
    %3199 = vmatprep.subr.mxu0 0.0
    %3200 = vmatpush2.msra.mxu0 0.0
    %3201 = vmatprep.subr.mxu0 0.0
    %3202 = vmatpush2.msra.mxu0 0.0
    %3203 = vmatprep.subr.mxu0 0.0
    %3204 = vmatpush2.msra.mxu0 0.0
    %3205 = vmatprep.subr.mxu0 0.0
    %3206 = vmatpush2.msra.mxu0 0.0
    %3207 = vmatprep.subr.mxu0 0.0
    %3208 = vmatpush2.msra.mxu0 0.0
    %3209 = vmatprep.subr.mxu0 0.0
    %3210 = vmatpush2.msra.mxu0 0.0
    %3211 = vmatprep.subr.mxu0 0.0
    %3212 = vmatpush2.msra.mxu0 0.0
    %3213 = vmatprep.subr.mxu0 0.0
    %3214 = vmatpush2.msra.mxu0 0.0
    %3215 = vmatprep.subr.mxu0 0.0
    %3216 = vmatpush2.msra.mxu0 0.0
    %3217 = vmatprep.subr.mxu0 0.0
    %3218 = vmatpush2.msra.mxu0 0.0
    %3219 = vmatprep.subr.mxu0 0.0
    %3220 = vmatpush2.msra.mxu0 0.0
    %3221 = vmatprep.subr.mxu0 0.0
    %3222 = vmatpush2.msra.mxu0 0.0
    %3223 = vmatprep.subr.mxu0 0.0
    %3224 = vmatpush2.msra.mxu0 0.0
    %3225 = vmatprep.mubr.f32.mxu0 0.0
    %v3226 = vand.u32 %v1978, 4294901760
    %3227 = vmatmul.mubr.f32.gmra.mxu0 %v3226
    %v3228 = vpop.f32.mrf.mxu0
    %v3229 = vadd.f32 %v3058, %v3228
    %v3230 = vpop.f32.mrf.mxu0
    %3231 = vmatprep.mubr.f32.mxu0 0.0
    %v3232 = vand.u32 %v1979, 4294901760
    %3233 = vmatmul.mubr.f32.gmra.mxu0 %v3232
    %v3234 = vpop.f32.mrf.mxu0
    %v3235 = vadd.f32 %v3068, %v3234
    %v3236 = vpop.f32.mrf.mxu0
    %3237 = vmatprep.mubr.f32.mxu0 0.0
    %v3238 = vand.u32 %v1980, 4294901760
    %3239 = vmatmul.mubr.f32.gmra.mxu0 %v3238
    %v3240 = vpop.f32.mrf.mxu0
    %v3241 = vadd.f32 %v3078, %v3240
    %v3242 = vpop.f32.mrf.mxu0
    %3243 = vdwg.mxu0
    %3244 = vmatprep.subr.mxu0 0.0
    %v3245 = vand.u32 %v2028, 4294901760
    %v3246 = vsub.f32 %v2028, %v3245
    %3247 = vmatpush1.msra.mxu0 %v3246
    %3248 = vmatprep.subr.mxu0 0.0
    %v3249 = vand.u32 %v2025, 4294901760
    %v3250 = vsub.f32 %v2025, %v3249
    %3251 = vmatpush1.msra.mxu0 %v3250
    %3252 = vmatprep.subr.mxu0 0.0
    %v3253 = vand.u32 %v2022, 4294901760
    %v3254 = vsub.f32 %v2022, %v3253
    %3255 = vmatpush1.msra.mxu0 %v3254
    %3256 = vmatprep.subr.mxu0 0.0
    %v3257 = vand.u32 %v2019, 4294901760
    %v3258 = vsub.f32 %v2019, %v3257
    %3259 = vmatpush1.msra.mxu0 %v3258
    %3260 = vmatprep.subr.mxu0 0.0
    %v3261 = vand.u32 %v2016, 4294901760
    %v3262 = vsub.f32 %v2016, %v3261
    %3263 = vmatpush1.msra.mxu0 %v3262
    %3264 = vmatprep.subr.mxu0 0.0
    %v3265 = vand.u32 %v2013, 4294901760
    %v3266 = vsub.f32 %v2013, %v3265
    %3267 = vmatpush1.msra.mxu0 %v3266
    %3268 = vmatprep.subr.mxu0 0.0
    %v3269 = vand.u32 %v2010, 4294901760
    %v3270 = vsub.f32 %v2010, %v3269
    %3271 = vmatpush1.msra.mxu0 %v3270
    %3272 = vmatprep.subr.mxu0 0.0
    %v3273 = vand.u32 %v2007, 4294901760
    %v3274 = vsub.f32 %v2007, %v3273
    %3275 = vmatpush1.msra.mxu0 %v3274
    %3276 = vmatprep.subr.mxu0 0.0
    %v3277 = vand.u32 %v2004, 4294901760
    %v3278 = vsub.f32 %v2004, %v3277
    %3279 = vmatpush1.msra.mxu0 %v3278
    %3280 = vmatprep.subr.mxu0 0.0
    %v3281 = vand.u32 %v2001, 4294901760
    %v3282 = vsub.f32 %v2001, %v3281
    %3283 = vmatpush1.msra.mxu0 %v3282
    %3284 = vmatprep.subr.mxu0 0.0
    %v3285 = vand.u32 %v1998, 4294901760
    %v3286 = vsub.f32 %v1998, %v3285
    %3287 = vmatpush1.msra.mxu0 %v3286
    %3288 = vmatprep.subr.mxu0 0.0
    %v3289 = vand.u32 %v1995, 4294901760
    %v3290 = vsub.f32 %v1995, %v3289
    %3291 = vmatpush1.msra.mxu0 %v3290
    %3292 = vmatprep.subr.mxu0 0.0
    %v3293 = vand.u32 %v1992, 4294901760
    %v3294 = vsub.f32 %v1992, %v3293
    %3295 = vmatpush1.msra.mxu0 %v3294
    %3296 = vmatprep.subr.mxu0 0.0
    %v3297 = vand.u32 %v1989, 4294901760
    %v3298 = vsub.f32 %v1989, %v3297
    %3299 = vmatpush1.msra.mxu0 %v3298
    %3300 = vmatprep.subr.mxu0 0.0
    %v3301 = vand.u32 %v1986, 4294901760
    %v3302 = vsub.f32 %v1986, %v3301
    %3303 = vmatpush1.msra.mxu0 %v3302
    %3304 = vmatprep.subr.mxu0 0.0
    %v3305 = vand.u32 %v1983, 4294901760
    %v3306 = vsub.f32 %v1983, %v3305
    %3307 = vmatpush1.msra.mxu0 %v3306
    %3308 = vmatprep.subr.mxu0 0.0
    %3309 = vmatpush2.msra.mxu0 0.0
    %3310 = vmatprep.subr.mxu0 0.0
    %3311 = vmatpush2.msra.mxu0 0.0
    %3312 = vmatprep.subr.mxu0 0.0
    %3313 = vmatpush2.msra.mxu0 0.0
    %3314 = vmatprep.subr.mxu0 0.0
    %3315 = vmatpush2.msra.mxu0 0.0
    %3316 = vmatprep.subr.mxu0 0.0
    %3317 = vmatpush2.msra.mxu0 0.0
    %3318 = vmatprep.subr.mxu0 0.0
    %3319 = vmatpush2.msra.mxu0 0.0
    %3320 = vmatprep.subr.mxu0 0.0
    %3321 = vmatpush2.msra.mxu0 0.0
    %3322 = vmatprep.subr.mxu0 0.0
    %3323 = vmatpush2.msra.mxu0 0.0
    %3324 = vmatprep.subr.mxu0 0.0
    %3325 = vmatpush2.msra.mxu0 0.0
    %3326 = vmatprep.subr.mxu0 0.0
    %3327 = vmatpush2.msra.mxu0 0.0
    %3328 = vmatprep.subr.mxu0 0.0
    %3329 = vmatpush2.msra.mxu0 0.0
    %3330 = vmatprep.subr.mxu0 0.0
    %3331 = vmatpush2.msra.mxu0 0.0
    %3332 = vmatprep.subr.mxu0 0.0
    %3333 = vmatpush2.msra.mxu0 0.0
    %3334 = vmatprep.subr.mxu0 0.0
    %3335 = vmatpush2.msra.mxu0 0.0
    %3336 = vmatprep.subr.mxu0 0.0
    %3337 = vmatpush2.msra.mxu0 0.0
    %3338 = vmatprep.subr.mxu0 0.0
    %3339 = vmatpush2.msra.mxu0 0.0
    %3340 = vmatprep.mubr.f32.mxu0 0.0
    %v3341 = vand.u32 %v1978, 4294901760
    %v3342 = vsub.f32 %v1978, %v3341
    %3343 = vmatmul.mubr.f32.gmra.mxu0 %v3342
    %v3344 = vpop.f32.mrf.mxu0
    %v3345 = vadd.f32 %v3229, %v3344
    %v3346 = vpop.f32.mrf.mxu0
    %3347 = vmatprep.mubr.f32.mxu0 0.0
    %v3348 = vand.u32 %v1979, 4294901760
    %v3349 = vsub.f32 %v1979, %v3348
    %3350 = vmatmul.mubr.f32.gmra.mxu0 %v3349
    %v3351 = vpop.f32.mrf.mxu0
    %v3352 = vadd.f32 %v3235, %v3351
    %v3353 = vpop.f32.mrf.mxu0
    %3354 = vmatprep.mubr.f32.mxu0 0.0
    %v3355 = vand.u32 %v1980, 4294901760
    %v3356 = vsub.f32 %v1980, %v3355
    %3357 = vmatmul.mubr.f32.gmra.mxu0 %v3356
    %v3358 = vpop.f32.mrf.mxu0
    %v3359 = vadd.f32 %v3241, %v3358
    %v3360 = vpop.f32.mrf.mxu0
    %3361 = vdwg.mxu0
    %3362 = vmatprep.subr.mxu0 0.0
    %v3363 = vand.u32 %v2028, 4294901760
    %3364 = vmatpush1.msra.mxu0 %v3363
    %3365 = vmatprep.subr.mxu0 0.0
    %v3366 = vand.u32 %v2025, 4294901760
    %3367 = vmatpush1.msra.mxu0 %v3366
    %3368 = vmatprep.subr.mxu0 0.0
    %v3369 = vand.u32 %v2022, 4294901760
    %3370 = vmatpush1.msra.mxu0 %v3369
    %3371 = vmatprep.subr.mxu0 0.0
    %v3372 = vand.u32 %v2019, 4294901760
    %3373 = vmatpush1.msra.mxu0 %v3372
    %3374 = vmatprep.subr.mxu0 0.0
    %v3375 = vand.u32 %v2016, 4294901760
    %3376 = vmatpush1.msra.mxu0 %v3375
    %3377 = vmatprep.subr.mxu0 0.0
    %v3378 = vand.u32 %v2013, 4294901760
    %3379 = vmatpush1.msra.mxu0 %v3378
    %3380 = vmatprep.subr.mxu0 0.0
    %v3381 = vand.u32 %v2010, 4294901760
    %3382 = vmatpush1.msra.mxu0 %v3381
    %3383 = vmatprep.subr.mxu0 0.0
    %v3384 = vand.u32 %v2007, 4294901760
    %3385 = vmatpush1.msra.mxu0 %v3384
    %3386 = vmatprep.subr.mxu0 0.0
    %v3387 = vand.u32 %v2004, 4294901760
    %3388 = vmatpush1.msra.mxu0 %v3387
    %3389 = vmatprep.subr.mxu0 0.0
    %v3390 = vand.u32 %v2001, 4294901760
    %3391 = vmatpush1.msra.mxu0 %v3390
    %3392 = vmatprep.subr.mxu0 0.0
    %v3393 = vand.u32 %v1998, 4294901760
    %3394 = vmatpush1.msra.mxu0 %v3393
    %3395 = vmatprep.subr.mxu0 0.0
    %v3396 = vand.u32 %v1995, 4294901760
    %3397 = vmatpush1.msra.mxu0 %v3396
    %3398 = vmatprep.subr.mxu0 0.0
    %v3399 = vand.u32 %v1992, 4294901760
    %3400 = vmatpush1.msra.mxu0 %v3399
    %3401 = vmatprep.subr.mxu0 0.0
    %v3402 = vand.u32 %v1989, 4294901760
    %3403 = vmatpush1.msra.mxu0 %v3402
    %3404 = vmatprep.subr.mxu0 0.0
    %v3405 = vand.u32 %v1986, 4294901760
    %3406 = vmatpush1.msra.mxu0 %v3405
    %3407 = vmatprep.subr.mxu0 0.0
    %v3408 = vand.u32 %v1983, 4294901760
    %3409 = vmatpush1.msra.mxu0 %v3408
    %3410 = vmatprep.subr.mxu0 0.0
    %3411 = vmatpush2.msra.mxu0 0.0
    %3412 = vmatprep.subr.mxu0 0.0
    %3413 = vmatpush2.msra.mxu0 0.0
    %3414 = vmatprep.subr.mxu0 0.0
    %3415 = vmatpush2.msra.mxu0 0.0
    %3416 = vmatprep.subr.mxu0 0.0
    %3417 = vmatpush2.msra.mxu0 0.0
    %3418 = vmatprep.subr.mxu0 0.0
    %3419 = vmatpush2.msra.mxu0 0.0
    %3420 = vmatprep.subr.mxu0 0.0
    %3421 = vmatpush2.msra.mxu0 0.0
    %3422 = vmatprep.subr.mxu0 0.0
    %3423 = vmatpush2.msra.mxu0 0.0
    %3424 = vmatprep.subr.mxu0 0.0
    %3425 = vmatpush2.msra.mxu0 0.0
    %3426 = vmatprep.subr.mxu0 0.0
    %3427 = vmatpush2.msra.mxu0 0.0
    %3428 = vmatprep.subr.mxu0 0.0
    %3429 = vmatpush2.msra.mxu0 0.0
    %3430 = vmatprep.subr.mxu0 0.0
    %3431 = vmatpush2.msra.mxu0 0.0
    %3432 = vmatprep.subr.mxu0 0.0
    %3433 = vmatpush2.msra.mxu0 0.0
    %3434 = vmatprep.subr.mxu0 0.0
    %3435 = vmatpush2.msra.mxu0 0.0
    %3436 = vmatprep.subr.mxu0 0.0
    %3437 = vmatpush2.msra.mxu0 0.0
    %3438 = vmatprep.subr.mxu0 0.0
    %3439 = vmatpush2.msra.mxu0 0.0
    %3440 = vmatprep.subr.mxu0 0.0
    %3441 = vmatpush2.msra.mxu0 0.0
    %3442 = vmatprep.mubr.f32.mxu0 0.0
    %v3443 = vand.u32 %v1978, 4294901760
    %v3444 = vsub.f32 %v1978, %v3443
    %v3445 = vand.u32 %v3444, 4294901760
    %3446 = vmatmul.mubr.f32.gmra.mxu0 %v3445
    %v3447 = vpop.f32.mrf.mxu0
    %v3448 = vadd.f32 %v3345, %v3447
    %v3449 = vpop.f32.mrf.mxu0
    %3450 = vmatprep.mubr.f32.mxu0 0.0
    %v3451 = vand.u32 %v1979, 4294901760
    %v3452 = vsub.f32 %v1979, %v3451
    %v3453 = vand.u32 %v3452, 4294901760
    %3454 = vmatmul.mubr.f32.gmra.mxu0 %v3453
    %v3455 = vpop.f32.mrf.mxu0
    %v3456 = vadd.f32 %v3352, %v3455
    %v3457 = vpop.f32.mrf.mxu0
    %3458 = vmatprep.mubr.f32.mxu0 0.0
    %v3459 = vand.u32 %v1980, 4294901760
    %v3460 = vsub.f32 %v1980, %v3459
    %v3461 = vand.u32 %v3460, 4294901760
    %3462 = vmatmul.mubr.f32.gmra.mxu0 %v3461
    %v3463 = vpop.f32.mrf.mxu0
    %v3464 = vadd.f32 %v3359, %v3463
    %v3465 = vpop.f32.mrf.mxu0
    %3466 = vdwg.mxu0
    %3467 = vmatprep.subr.mxu0 0.0
    %v3468 = vand.u32 %v2028, 4294901760
    %v3469 = vsub.f32 %v2028, %v3468
    %v3470 = vand.u32 %v3469, 4294901760
    %3471 = vmatpush1.msra.mxu0 %v3470
    %3472 = vmatprep.subr.mxu0 0.0
    %v3473 = vand.u32 %v2025, 4294901760
    %v3474 = vsub.f32 %v2025, %v3473
    %v3475 = vand.u32 %v3474, 4294901760
    %3476 = vmatpush1.msra.mxu0 %v3475
    %3477 = vmatprep.subr.mxu0 0.0
    %v3478 = vand.u32 %v2022, 4294901760
    %v3479 = vsub.f32 %v2022, %v3478
    %v3480 = vand.u32 %v3479, 4294901760
    %3481 = vmatpush1.msra.mxu0 %v3480
    %3482 = vmatprep.subr.mxu0 0.0
    %v3483 = vand.u32 %v2019, 4294901760
    %v3484 = vsub.f32 %v2019, %v3483
    %v3485 = vand.u32 %v3484, 4294901760
    %3486 = vmatpush1.msra.mxu0 %v3485
    %3487 = vmatprep.subr.mxu0 0.0
    %v3488 = vand.u32 %v2016, 4294901760
    %v3489 = vsub.f32 %v2016, %v3488
    %v3490 = vand.u32 %v3489, 4294901760
    %3491 = vmatpush1.msra.mxu0 %v3490
    %3492 = vmatprep.subr.mxu0 0.0
    %v3493 = vand.u32 %v2013, 4294901760
    %v3494 = vsub.f32 %v2013, %v3493
    %v3495 = vand.u32 %v3494, 4294901760
    %3496 = vmatpush1.msra.mxu0 %v3495
    %3497 = vmatprep.subr.mxu0 0.0
    %v3498 = vand.u32 %v2010, 4294901760
    %v3499 = vsub.f32 %v2010, %v3498
    %v3500 = vand.u32 %v3499, 4294901760
    %3501 = vmatpush1.msra.mxu0 %v3500
    %3502 = vmatprep.subr.mxu0 0.0
    %v3503 = vand.u32 %v2007, 4294901760
    %v3504 = vsub.f32 %v2007, %v3503
    %v3505 = vand.u32 %v3504, 4294901760
    %3506 = vmatpush1.msra.mxu0 %v3505
    %3507 = vmatprep.subr.mxu0 0.0
    %v3508 = vand.u32 %v2004, 4294901760
    %v3509 = vsub.f32 %v2004, %v3508
    %v3510 = vand.u32 %v3509, 4294901760
    %3511 = vmatpush1.msra.mxu0 %v3510
    %3512 = vmatprep.subr.mxu0 0.0
    %v3513 = vand.u32 %v2001, 4294901760
    %v3514 = vsub.f32 %v2001, %v3513
    %v3515 = vand.u32 %v3514, 4294901760
    %3516 = vmatpush1.msra.mxu0 %v3515
    %3517 = vmatprep.subr.mxu0 0.0
    %v3518 = vand.u32 %v1998, 4294901760
    %v3519 = vsub.f32 %v1998, %v3518
    %v3520 = vand.u32 %v3519, 4294901760
    %3521 = vmatpush1.msra.mxu0 %v3520
    %3522 = vmatprep.subr.mxu0 0.0
    %v3523 = vand.u32 %v1995, 4294901760
    %v3524 = vsub.f32 %v1995, %v3523
    %v3525 = vand.u32 %v3524, 4294901760
    %3526 = vmatpush1.msra.mxu0 %v3525
    %3527 = vmatprep.subr.mxu0 0.0
    %v3528 = vand.u32 %v1992, 4294901760
    %v3529 = vsub.f32 %v1992, %v3528
    %v3530 = vand.u32 %v3529, 4294901760
    %3531 = vmatpush1.msra.mxu0 %v3530
    %3532 = vmatprep.subr.mxu0 0.0
    %v3533 = vand.u32 %v1989, 4294901760
    %v3534 = vsub.f32 %v1989, %v3533
    %v3535 = vand.u32 %v3534, 4294901760
    %3536 = vmatpush1.msra.mxu0 %v3535
    %3537 = vmatprep.subr.mxu0 0.0
    %v3538 = vand.u32 %v1986, 4294901760
    %v3539 = vsub.f32 %v1986, %v3538
    %v3540 = vand.u32 %v3539, 4294901760
    %3541 = vmatpush1.msra.mxu0 %v3540
    %3542 = vmatprep.subr.mxu0 0.0
    %v3543 = vand.u32 %v1983, 4294901760
    %v3544 = vsub.f32 %v1983, %v3543
    %v3545 = vand.u32 %v3544, 4294901760
    %3546 = vmatpush1.msra.mxu0 %v3545
    %3547 = vmatprep.subr.mxu0 0.0
    %3548 = vmatpush2.msra.mxu0 0.0
    %3549 = vmatprep.subr.mxu0 0.0
    %3550 = vmatpush2.msra.mxu0 0.0
    %3551 = vmatprep.subr.mxu0 0.0
    %3552 = vmatpush2.msra.mxu0 0.0
    %3553 = vmatprep.subr.mxu0 0.0
    %3554 = vmatpush2.msra.mxu0 0.0
    %3555 = vmatprep.subr.mxu0 0.0
    %3556 = vmatpush2.msra.mxu0 0.0
    %3557 = vmatprep.subr.mxu0 0.0
    %3558 = vmatpush2.msra.mxu0 0.0
    %3559 = vmatprep.subr.mxu0 0.0
    %3560 = vmatpush2.msra.mxu0 0.0
    %3561 = vmatprep.subr.mxu0 0.0
    %3562 = vmatpush2.msra.mxu0 0.0
    %3563 = vmatprep.subr.mxu0 0.0
    %3564 = vmatpush2.msra.mxu0 0.0
    %3565 = vmatprep.subr.mxu0 0.0
    %3566 = vmatpush2.msra.mxu0 0.0
    %3567 = vmatprep.subr.mxu0 0.0
    %3568 = vmatpush2.msra.mxu0 0.0
    %3569 = vmatprep.subr.mxu0 0.0
    %3570 = vmatpush2.msra.mxu0 0.0
    %3571 = vmatprep.subr.mxu0 0.0
    %3572 = vmatpush2.msra.mxu0 0.0
    %3573 = vmatprep.subr.mxu0 0.0
    %3574 = vmatpush2.msra.mxu0 0.0
    %3575 = vmatprep.subr.mxu0 0.0
    %3576 = vmatpush2.msra.mxu0 0.0
    %3577 = vmatprep.subr.mxu0 0.0
    %3578 = vmatpush2.msra.mxu0 0.0
    %3579 = vmatprep.mubr.f32.mxu0 0.0
    %v3580 = vand.u32 %v1978, 4294901760
    %3581 = vmatmul.mubr.f32.gmra.mxu0 %v3580
    %v3582 = vpop.f32.mrf.mxu0
    %v3583 = vadd.f32 %v3448, %v3582
    %v3584 = vpop.f32.mrf.mxu0
    %3585 = vmatprep.mubr.f32.mxu0 0.0
    %v3586 = vand.u32 %v1979, 4294901760
    %3587 = vmatmul.mubr.f32.gmra.mxu0 %v3586
    %v3588 = vpop.f32.mrf.mxu0
    %v3589 = vadd.f32 %v3456, %v3588
    %v3590 = vpop.f32.mrf.mxu0
    %3591 = vmatprep.mubr.f32.mxu0 0.0
    %v3592 = vand.u32 %v1980, 4294901760
    %3593 = vmatmul.mubr.f32.gmra.mxu0 %v3592
    %v3594 = vpop.f32.mrf.mxu0
    %v3595 = vadd.f32 %v3464, %v3594
    %v3596 = vpop.f32.mrf.mxu0
    %3597 = vdwg.mxu0
    %3598 = vmatprep.subr.mxu0 0.0
    %v3599 = vand.u32 %v2028, 4294901760
    %3600 = vmatpush1.msra.mxu0 %v3599
    %3601 = vmatprep.subr.mxu0 0.0
    %v3602 = vand.u32 %v2025, 4294901760
    %3603 = vmatpush1.msra.mxu0 %v3602
    %3604 = vmatprep.subr.mxu0 0.0
    %v3605 = vand.u32 %v2022, 4294901760
    %3606 = vmatpush1.msra.mxu0 %v3605
    %3607 = vmatprep.subr.mxu0 0.0
    %v3608 = vand.u32 %v2019, 4294901760
    %3609 = vmatpush1.msra.mxu0 %v3608
    %3610 = vmatprep.subr.mxu0 0.0
    %v3611 = vand.u32 %v2016, 4294901760
    %3612 = vmatpush1.msra.mxu0 %v3611
    %3613 = vmatprep.subr.mxu0 0.0
    %v3614 = vand.u32 %v2013, 4294901760
    %3615 = vmatpush1.msra.mxu0 %v3614
    %3616 = vmatprep.subr.mxu0 0.0
    %v3617 = vand.u32 %v2010, 4294901760
    %3618 = vmatpush1.msra.mxu0 %v3617
    %3619 = vmatprep.subr.mxu0 0.0
    %v3620 = vand.u32 %v2007, 4294901760
    %3621 = vmatpush1.msra.mxu0 %v3620
    %3622 = vmatprep.subr.mxu0 0.0
    %v3623 = vand.u32 %v2004, 4294901760
    %3624 = vmatpush1.msra.mxu0 %v3623
    %3625 = vmatprep.subr.mxu0 0.0
    %v3626 = vand.u32 %v2001, 4294901760
    %3627 = vmatpush1.msra.mxu0 %v3626
    %3628 = vmatprep.subr.mxu0 0.0
    %v3629 = vand.u32 %v1998, 4294901760
    %3630 = vmatpush1.msra.mxu0 %v3629
    %3631 = vmatprep.subr.mxu0 0.0
    %v3632 = vand.u32 %v1995, 4294901760
    %3633 = vmatpush1.msra.mxu0 %v3632
    %3634 = vmatprep.subr.mxu0 0.0
    %v3635 = vand.u32 %v1992, 4294901760
    %3636 = vmatpush1.msra.mxu0 %v3635
    %3637 = vmatprep.subr.mxu0 0.0
    %v3638 = vand.u32 %v1989, 4294901760
    %3639 = vmatpush1.msra.mxu0 %v3638
    %3640 = vmatprep.subr.mxu0 0.0
    %v3641 = vand.u32 %v1986, 4294901760
    %3642 = vmatpush1.msra.mxu0 %v3641
    %3643 = vmatprep.subr.mxu0 0.0
    %v3644 = vand.u32 %v1983, 4294901760
    %3645 = vmatpush1.msra.mxu0 %v3644
    %3646 = vmatprep.subr.mxu0 0.0
    %3647 = vmatpush2.msra.mxu0 0.0
    %3648 = vmatprep.subr.mxu0 0.0
    %3649 = vmatpush2.msra.mxu0 0.0
    %3650 = vmatprep.subr.mxu0 0.0
    %3651 = vmatpush2.msra.mxu0 0.0
    %3652 = vmatprep.subr.mxu0 0.0
    %3653 = vmatpush2.msra.mxu0 0.0
    %3654 = vmatprep.subr.mxu0 0.0
    %3655 = vmatpush2.msra.mxu0 0.0
    %3656 = vmatprep.subr.mxu0 0.0
    %3657 = vmatpush2.msra.mxu0 0.0
    %3658 = vmatprep.subr.mxu0 0.0
    %3659 = vmatpush2.msra.mxu0 0.0
    %3660 = vmatprep.subr.mxu0 0.0
    %3661 = vmatpush2.msra.mxu0 0.0
    %3662 = vmatprep.subr.mxu0 0.0
    %3663 = vmatpush2.msra.mxu0 0.0
    %3664 = vmatprep.subr.mxu0 0.0
    %3665 = vmatpush2.msra.mxu0 0.0
    %3666 = vmatprep.subr.mxu0 0.0
    %3667 = vmatpush2.msra.mxu0 0.0
    %3668 = vmatprep.subr.mxu0 0.0
    %3669 = vmatpush2.msra.mxu0 0.0
    %3670 = vmatprep.subr.mxu0 0.0
    %3671 = vmatpush2.msra.mxu0 0.0
    %3672 = vmatprep.subr.mxu0 0.0
    %3673 = vmatpush2.msra.mxu0 0.0
    %3674 = vmatprep.subr.mxu0 0.0
    %3675 = vmatpush2.msra.mxu0 0.0
    %3676 = vmatprep.subr.mxu0 0.0
    %3677 = vmatpush2.msra.mxu0 0.0
    %3678 = vmatprep.mubr.f32.mxu0 0.0
    %v3679 = vand.u32 %v1978, 4294901760
    %3680 = vmatmul.mubr.f32.gmra.mxu0 %v3679
    %v3681 = vpop.f32.mrf.mxu0
    %v3682 = vadd.f32 %v3583, %v3681
    %v3683 = vpop.f32.mrf.mxu0
    %3684 = vmatprep.mubr.f32.mxu0 0.0
    %v3685 = vand.u32 %v1979, 4294901760
    %3686 = vmatmul.mubr.f32.gmra.mxu0 %v3685
    %v3687 = vpop.f32.mrf.mxu0
    %v3688 = vadd.f32 %v3589, %v3687
    %v3689 = vpop.f32.mrf.mxu0
    %3690 = vmatprep.mubr.f32.mxu0 0.0
    %v3691 = vand.u32 %v1980, 4294901760
    %3692 = vmatmul.mubr.f32.gmra.mxu0 %v3691
    %v3693 = vpop.f32.mrf.mxu0
    %v3694 = vadd.f32 %v3595, %v3693
    %v3695 = vpop.f32.mrf.mxu0
    %3696 = vdwg.mxu0
    %v3697 = vld [vmem:[%s8] sm:$0x1]
    %v3698 = vld [vmem:[%s9] sm:$0x1]
    %v3699 = vld [vmem:[%s10] sm:$0x1]
    %v3700 = vadd.f32 %v2954, %v2962
    %v3702 = vlaneseq
    %v3703 = vshrl.u32 %v3702, 7
    %v3704 = vsub.s32 0, %v3703
    %v3705 = vrot.slane %v3697, %v3704
    %v3707 = vadd.f32 %v3700, %v3705
    %v3708 = vrot.slane %v3707, 4
    %v3709 = vadd.f32 %v3707, %v3708
    %v3710 = vrot.slane %v3709, 2
    %v3711 = vadd.f32 %v3709, %v3710
    %v3712 = vrot.slane %v3711, 1
    %v3713 = vadd.f32 %v3711, %v3712
    %v3714 = vmul.f32 %v3713, %v1851
    %v3715 = vsub.f32 %v3707, %v3714
    %v3716 = vmul.f32 %v3715, %v3715
    %v3717 = vrot.slane %v3716, 4
    %v3718 = vadd.f32 %v3716, %v3717
    %v3719 = vrot.slane %v3718, 2
    %v3720 = vadd.f32 %v3718, %v3719
    %v3721 = vrot.slane %v3720, 1
    %v3722 = vadd.f32 %v3720, %v3721
    %v3723 = vmul.f32 %v3722, %v1851
    %v3724 = vadd.f32 %v3723, 1e-05
    %v3725 = vrsqrt.pop %v3724
    %v3726 = vmul.f32 %v3715, %v3725
    %v3728 = vlaneseq
    %v3729 = vshrl.u32 %v3728, 7
    %v3730 = vsub.s32 0, %v3729
    %v3731 = vrot.slane %v3698, %v3730
    %v3733 = vmul.f32 %v3726, %v3731
    %v3735 = vlaneseq
    %v3736 = vshrl.u32 %v3735, 7
    %v3737 = vsub.s32 0, %v3736
    %v3738 = vrot.slane %v3699, %v3737
    %v3740 = vadd.f32 %v3733, %v3738
    %v3741 = vadd.f32 %v2954, %v2968
    %v3742 = vadd.f32 %v3741, %v3705
    %v3743 = vrot.slane %v3742, 4
    %v3744 = vadd.f32 %v3742, %v3743
    %v3745 = vrot.slane %v3744, 2
    %v3746 = vadd.f32 %v3744, %v3745
    %v3747 = vrot.slane %v3746, 1
    %v3748 = vadd.f32 %v3746, %v3747
    %v3749 = vmul.f32 %v3748, %v1851
    %v3750 = vsub.f32 %v3742, %v3749
    %v3751 = vmul.f32 %v3750, %v3750
    %v3752 = vrot.slane %v3751, 4
    %v3753 = vadd.f32 %v3751, %v3752
    %v3754 = vrot.slane %v3753, 2
    %v3755 = vadd.f32 %v3753, %v3754
    %v3756 = vrot.slane %v3755, 1
    %v3757 = vadd.f32 %v3755, %v3756
    %v3758 = vmul.f32 %v3757, %v1851
    %v3759 = vadd.f32 %v3758, 1e-05
    %v3760 = vrsqrt.pop %v3759
    %v3761 = vmul.f32 %v3750, %v3760
    %v3762 = vmul.f32 %v3761, %v3731
    %v3763 = vadd.f32 %v3762, %v3738
    %v3764 = vadd.f32 %v2960, %v2968
    %v3765 = vadd.f32 %v3764, %v3705
    %v3766 = vrot.slane %v3765, 4
    %v3767 = vadd.f32 %v3765, %v3766
    %v3768 = vrot.slane %v3767, 2
    %v3769 = vadd.f32 %v3767, %v3768
    %v3770 = vrot.slane %v3769, 1
    %v3771 = vadd.f32 %v3769, %v3770
    %v3772 = vmul.f32 %v3771, %v1851
    %v3773 = vsub.f32 %v3765, %v3772
    %v3774 = vmul.f32 %v3773, %v3773
    %v3775 = vrot.slane %v3774, 4
    %v3776 = vadd.f32 %v3774, %v3775
    %v3777 = vrot.slane %v3776, 2
    %v3778 = vadd.f32 %v3776, %v3777
    %v3779 = vrot.slane %v3778, 1
    %v3780 = vadd.f32 %v3778, %v3779
    %v3781 = vmul.f32 %v3780, %v1851
    %v3782 = vadd.f32 %v3781, 1e-05
    %v3783 = vrsqrt.pop %v3782
    %v3784 = vmul.f32 %v3773, %v3783
    %v3785 = vmul.f32 %v3784, %v3731
    %v3786 = vadd.f32 %v3785, %v3738
    %v3787 = vld [vmem:[%s11] sm:$0x1]
    %v3788 = vld [vmem:[%s12] sm:$0x1]
    %v3789 = vld [vmem:[%s13] sm:$0x1]
    %v3790 = vadd.f32 %v1819, %v3694
    %v3792 = vlaneseq
    %v3793 = vshrl.u32 %v3792, 7
    %v3794 = vsub.s32 0, %v3793
    %v3795 = vrot.slane %v3787, %v3794
    %v3797 = vadd.f32 %v3790, %v3795
    %v3798 = vrot.slane %v3797, 4
    %v3799 = vadd.f32 %v3797, %v3798
    %v3800 = vrot.slane %v3799, 2
    %v3801 = vadd.f32 %v3799, %v3800
    %v3802 = vrot.slane %v3801, 1
    %v3803 = vadd.f32 %v3801, %v3802
    %v3804 = vmul.f32 %v3803, %v1851
    %v3805 = vsub.f32 %v3797, %v3804
    %v3806 = vmul.f32 %v3805, %v3805
    %v3807 = vrot.slane %v3806, 4
    %v3808 = vadd.f32 %v3806, %v3807
    %v3809 = vrot.slane %v3808, 2
    %v3810 = vadd.f32 %v3808, %v3809
    %v3811 = vrot.slane %v3810, 1
    %v3812 = vadd.f32 %v3810, %v3811
    %v3813 = vmul.f32 %v3812, %v1851
    %v3814 = vadd.f32 %v3813, 1e-05
    %v3815 = vrsqrt.pop %v3814
    %v3816 = vmul.f32 %v3805, %v3815
    %v3818 = vlaneseq
    %v3819 = vshrl.u32 %v3818, 7
    %v3820 = vsub.s32 0, %v3819
    %v3821 = vrot.slane %v3788, %v3820
    %v3823 = vmul.f32 %v3816, %v3821
    %v3825 = vlaneseq
    %v3826 = vshrl.u32 %v3825, 7
    %v3827 = vsub.s32 0, %v3826
    %v3828 = vrot.slane %v3789, %v3827
    %v3830 = vadd.f32 %v3823, %v3828
    %v3831 = vadd.f32 %v1825, %v3688
    %v3832 = vadd.f32 %v3831, %v3795
    %v3833 = vrot.slane %v3832, 4
    %v3834 = vadd.f32 %v3832, %v3833
    %v3835 = vrot.slane %v3834, 2
    %v3836 = vadd.f32 %v3834, %v3835
    %v3837 = vrot.slane %v3836, 1
    %v3838 = vadd.f32 %v3836, %v3837
    %v3839 = vmul.f32 %v3838, %v1851
    %v3840 = vsub.f32 %v3832, %v3839
    %v3841 = vmul.f32 %v3840, %v3840
    %v3842 = vrot.slane %v3841, 4
    %v3843 = vadd.f32 %v3841, %v3842
    %v3844 = vrot.slane %v3843, 2
    %v3845 = vadd.f32 %v3843, %v3844
    %v3846 = vrot.slane %v3845, 1
    %v3847 = vadd.f32 %v3845, %v3846
    %v3848 = vmul.f32 %v3847, %v1851
    %v3849 = vadd.f32 %v3848, 1e-05
    %v3850 = vrsqrt.pop %v3849
    %v3851 = vmul.f32 %v3840, %v3850
    %v3852 = vmul.f32 %v3851, %v3821
    %v3853 = vadd.f32 %v3852, %v3828
    %v3854 = vadd.f32 %v1831, %v3682
    %v3855 = vadd.f32 %v3854, %v3795
    %v3856 = vrot.slane %v3855, 4
    %v3857 = vadd.f32 %v3855, %v3856
    %v3858 = vrot.slane %v3857, 2
    %v3859 = vadd.f32 %v3857, %v3858
    %v3860 = vrot.slane %v3859, 1
    %v3861 = vadd.f32 %v3859, %v3860
    %v3862 = vmul.f32 %v3861, %v1851
    %v3863 = vsub.f32 %v3855, %v3862
    %v3864 = vmul.f32 %v3863, %v3863
    %v3865 = vrot.slane %v3864, 4
    %v3866 = vadd.f32 %v3864, %v3865
    %v3867 = vrot.slane %v3866, 2
    %v3868 = vadd.f32 %v3866, %v3867
    %v3869 = vrot.slane %v3868, 1
    %v3870 = vadd.f32 %v3868, %v3869
    %v3871 = vmul.f32 %v3870, %v1851
    %v3872 = vadd.f32 %v3871, 1e-05
    %v3873 = vrsqrt.pop %v3872
    %v3874 = vmul.f32 %v3863, %v3873
    %v3875 = vmul.f32 %v3874, %v3821
    %v3876 = vadd.f32 %v3875, %v3828
    %v3877 = vmul.f32 %v1878, %v1901
    %3878 = vadd.xlane.f32.xlu0 %v3877
    %v3879 = vpop.xlane.xlu0 %3878
    %v3880 = vmul.f32 %v1878, %v1924
    %3881 = vadd.xlane.f32.xlu0 %v3880
    %v3882 = vpop.xlane.xlu0 %3881
    %v3883 = vmul.f32 %v1901, %v1924
    %3884 = vadd.xlane.f32.xlu0 %v3883
    %v3885 = vpop.xlane.xlu0 %3884
    %v3886 = vadd.f32 %v1948, %v1951
    %v3887 = vadd.f32 %v3879, 0.5
    %v3888 = vrcp.pop %v3887
    %v3889 = vmul.f32 %v3886, %v3888
    %v3890 = vadd.f32 %v1948, %v1954
    %v3891 = vadd.f32 %v3882, 0.5
    %v3892 = vrcp.pop %v3891
    %v3893 = vmul.f32 %v3890, %v3892
    %v3894 = vadd.f32 %v1951, %v1954
    %v3895 = vadd.f32 %v3885, 0.5
    %v3896 = vrcp.pop %v3895
    %v3897 = vmul.f32 %v3894, %v3896
    %v3898 = vadd.f32 %v3893, %v3897
    %v3899 = vrcp.pop %v3898
    %v3900 = vmul.f32 %v3889, %v3899
    %v3901 = vadd.f32 %v3889, %v3897
    %v3902 = vrcp.pop %v3901
    %v3903 = vmul.f32 %v3893, %v3902
    %v3904 = vadd.f32 %v3889, %v3893
    %v3905 = vrcp.pop %v3904
    %v3906 = vmul.f32 %v3897, %v3905
    %v3907 = vmul.f32 %v50, %v1924
    %3908 = vadd.xlane.f32.xlu0 %v3907
    %v3909 = vpop.xlane.xlu0 %3908
    %v3910 = vmul.f32 %v51, %v1901
    %3911 = vadd.xlane.f32.xlu0 %v3910
    %v3912 = vpop.xlane.xlu0 %3911
    %v3913 = vmul.f32 %v52, %v1878
    %3914 = vadd.xlane.f32.xlu0 %v3913
    %v3915 = vpop.xlane.xlu0 %3914
    %v3916 = vadd.f32 %v92, %v1954
    %v3917 = vadd.f32 %v3909, 0.5
    %v3918 = vrcp.pop %v3917
    %v3919 = vmul.f32 %v3916, %v3918
    %v3920 = vadd.f32 %v94, %v1951
    %v3921 = vadd.f32 %v3912, 0.5
    %v3922 = vrcp.pop %v3921
    %v3923 = vmul.f32 %v3920, %v3922
    %v3924 = vadd.f32 %v96, %v1948
    %v3925 = vadd.f32 %v3915, 0.5
    %v3926 = vrcp.pop %v3925
    %v3927 = vmul.f32 %v3924, %v3926
    %v3928 = vadd.f32 %v3923, %v3927
    %v3929 = vrcp.pop %v3928
    %v3930 = vmul.f32 %v3919, %v3929
    %v3931 = vadd.f32 %v3919, %v3927
    %v3932 = vrcp.pop %v3931
    %v3933 = vmul.f32 %v3923, %v3932
    %v3934 = vadd.f32 %v3919, %v3923
    %v3935 = vrcp.pop %v3934
    %v3936 = vmul.f32 %v3927, %v3935
    %3938 = vset.pattern.permute.xlu0 0
    %3939 = vperm.xlu0 %3938, %v3930
    %v3940 = vpop.permute.xlu0 %3939
    %v3942 = vmul.f32 %v3940, %v3830
    %3944 = vset.pattern.permute.xlu0 0
    %3945 = vperm.xlu0 %3944, %v3933
    %v3946 = vpop.permute.xlu0 %3945
    %v3948 = vmul.f32 %v3946, %v3853
    %v3949 = vadd.f32 %v3942, %v3948
    %3951 = vset.pattern.permute.xlu0 0
    %3952 = vperm.xlu0 %3951, %v3936
    %v3953 = vpop.permute.xlu0 %3952
    %v3955 = vmul.f32 %v3953, %v3876
    %v3956 = vadd.f32 %v3949, %v3955
    %3958 = vset.pattern.permute.xlu0 0
    %3959 = vperm.xlu0 %3958, %v3900
    %v3960 = vpop.permute.xlu0 %3959
    %v3962 = vmul.f32 %v3960, %v3740
    %v3963 = vadd.f32 %v3956, %v3962
    %3965 = vset.pattern.permute.xlu0 0
    %3966 = vperm.xlu0 %3965, %v3903
    %v3967 = vpop.permute.xlu0 %3966
    %v3969 = vmul.f32 %v3967, %v3763
    %v3970 = vadd.f32 %v3963, %v3969
    %3972 = vset.pattern.permute.xlu0 0
    %3973 = vperm.xlu0 %3972, %v3906
    %v3974 = vpop.permute.xlu0 %3973
    %v3976 = vmul.f32 %v3974, %v3786
    %v3977 = vadd.f32 %v3970, %v3976
    %3978 = vst [vmem:[#allocation4] sm:$0xff] %v117
    %3979 = vst [vmem:[#allocation4 + $0x8] sm:$0xff] %v1974
    %3980 = vst [vmem:[#allocation4 + $0x10] sm:$0xff] %v3977
    // Predicated region
    $region58: #{gfn_forward.1} parent=1 // pred_check
      _
    $region59: #{gfn_forward.1} parent=1 // pred_check_branch
      %3982 = sbr.rel (0) target = $region61
    $region60: #{gfn_forward.1} parent=1 // pred_region
      %s3984 = ssub.s32 384, 384
      %3985 = vsyncadd [#allocation5], %s3984
      %s3987 = sshll.u32 [#allocation4], 4
      %s3988 = int_to_ptr.vmem [resolvable:$true] %s3987
      %3990 = dma.vmem_to_hbm [thread:$0]  %s3988, 384, %s14, [#allocation5]
    $region61: #{gfn_forward.1} parent=1 // pred_fallthru
      _
    // Predicated region
    $region62: #{gfn_forward.1} parent=1 // pred_check
      _
    $region63: #{gfn_forward.1} parent=1 // pred_check_branch
      %3992 = sbr.rel (0) target = $region65
    $region64: #{gfn_forward.1} parent=1 // pred_region
      %3993 = dma.done [#allocation5], 384
    $region65: #{gfn_forward.1} parent=1 // pred_fallthru
      _
    %3994 = vsyncpa [#allocation5], 1

</llo_original>
